<compile_context>
chip_gen: v5e
topology: v5e:2x2
jax: 0.10.0
libtpu: 0.0.40
codegen_flags: <defaults>
</compile_context>

<pallas_src>
import math
import functools

import jax
import jax.numpy as jnp
from jax.experimental import pallas as pl
from jax.experimental.pallas import tpu as pltpu


# ----------------------------------------------------------------------------
# Fused matmul kernels: out = (A @ W) [* row_scale] + bias [; leaky-ReLU]
# A, W are bf16; accumulation and epilogue are f32.
# ----------------------------------------------------------------------------
def _mm_bias_kernel(a_ref, w_ref, b_ref, o_ref, *, act):
    acc = jnp.dot(a_ref[...], w_ref[...], preferred_element_type=jnp.float32)
    acc = acc + b_ref[...]
    if act == "lrelu":
        acc = jnp.where(acc > 0.0, acc, 0.2 * acc)
    o_ref[...] = acc.astype(o_ref.dtype)


def _mm_scale_bias_kernel(a_ref, w_ref, s_ref, b_ref, o_ref, *, act):
    acc = jnp.dot(a_ref[...], w_ref[...], preferred_element_type=jnp.float32)
    acc = acc * s_ref[...]          # per-row demodulation scale (f32)
    acc = acc + b_ref[...]
    if act == "lrelu":
        acc = jnp.where(acc > 0.0, acc, 0.2 * acc)
    o_ref[...] = acc.astype(o_ref.dtype)


def fused_matmul(a, w, bias, row_scale=None, act=None, block_m=512):
    """(M,K)@(K,N) with fused scale/bias/leaky-ReLU epilogue on the MXU.

    Operands are passed unpadded (full-extent blocks). For large M the row
    dimension is tiled with a 'parallel' grid axis (K, N stay full-extent so
    the (8,128) rule is satisfied via the full-dim exception).
    """
    M, K = a.shape
    Kw, N = w.shape
    assert K == Kw, (a.shape, w.shape)
    a = a.astype(jnp.bfloat16)
    w = w.astype(jnp.bfloat16)
    bias2 = jnp.asarray(bias, jnp.float32).reshape(1, N)

    bm = M if M <= block_m else block_m
    grid = (pl.cdiv(M, bm),)

    in_specs = [
        pl.BlockSpec((bm, K), lambda i: (i, 0)),
        pl.BlockSpec((K, N), lambda i: (0, 0)),
    ]
    args = [a, w]
    if row_scale is not None:
        in_specs.append(pl.BlockSpec((bm, N), lambda i: (i, 0)))
        args.append(row_scale.astype(jnp.float32))
        kern = functools.partial(_mm_scale_bias_kernel, act=act)
    else:
        kern = functools.partial(_mm_bias_kernel, act=act)
    in_specs.append(pl.BlockSpec((1, N), lambda i: (0, 0)))
    args.append(bias2)

    return pl.pallas_call(
        kern,
        out_shape=jax.ShapeDtypeStruct((M, N), jnp.float32),
        grid=grid,
        in_specs=in_specs,
        out_specs=pl.BlockSpec((bm, N), lambda i: (i, 0)),
        compiler_params=pltpu.CompilerParams(dimension_semantics=("parallel",)),
    )(*args)


# ----------------------------------------------------------------------------
# Batched style affines: all (B, w_dim) @ (w_dim, gc) layers in ONE pallas call.
# ----------------------------------------------------------------------------
def _affine_kernel(a_ref, w_ref, b_ref, o_ref):
    r = jnp.einsum("lbk,lkn->lbn", a_ref[...], w_ref[...],
                   preferred_element_type=jnp.float32)
    o_ref[...] = (r + b_ref[...]).astype(o_ref.dtype)


def batched_affine(ws, aff_w, aff_b):
    """ws: (B, L, w_dim) f32 -> styles (L, B, gc) f32."""
    a = jnp.transpose(ws, (1, 0, 2)).astype(jnp.bfloat16)     # (L, B, w_dim)
    L, B, _ = a.shape
    N = aff_w.shape[-1]
    return pl.pallas_call(
        _affine_kernel,
        out_shape=jax.ShapeDtypeStruct((L, B, N), jnp.float32),
    )(a, aff_w, aff_b)


# ----------------------------------------------------------------------------
# NHWC im2col (channels stay on the lane axis; no layout transposes)
# ----------------------------------------------------------------------------
def _im2col_nhwc(x, kh, kw, stride, pad):
    B, H, W, C = x.shape
    xp = jnp.pad(x, ((0, 0), (pad, pad), (pad, pad), (0, 0)))
    Ho = (H + 2 * pad - kh) // stride + 1
    Wo = (W + 2 * pad - kw) // stride + 1
    cols = []
    for i in range(kh):
        for j in range(kw):
            cols.append(xp[:, i:i + stride * Ho:stride, j:j + stride * Wo:stride, :])
    col = jnp.concatenate(cols, axis=-1)                      # (B, Ho, Wo, kh*kw*C)
    return col.reshape(B * Ho * Wo, kh * kw * C), Ho, Wo


def conv2d_nhwc(x, w_flat, bias, kh, kw, stride, pad, act=None):
    """NHWC conv lowered to one fused Pallas matmul (bias + act fused)."""
    B = x.shape[0]
    col, Ho, Wo = _im2col_nhwc(x, kh, kw, stride, pad)
    y = fused_matmul(col, w_flat, bias, act=act)              # (B*Ho*Wo, Cout)
    return y.reshape(B, Ho, Wo, -1)


# ----------------------------------------------------------------------------
# StyleGAN2 modulated convs (fused input-scaling formulation, NHWC)
# ----------------------------------------------------------------------------
def modulated_conv3x3(x, w_flat, w_sq, style, bias, act="lrelu"):
    """y = demod(b,o) * conv3x3(x * s(b,i), w) + bias ; leaky-ReLU. All fused."""
    B, H, W, Cin = x.shape
    style = style.astype(jnp.float32)
    x_mod = x * style[:, None, None, :]                       # fused by XLA with im2col
    col, Ho, Wo = _im2col_nhwc(x_mod, 3, 3, 1, 1)
    # demodulation: tiny (B,Cin)@(Cin,Cout) done with plain jnp on the VPU
    d = jax.lax.rsqrt(jnp.dot(style * style, w_sq) + 1e-8)    # (B, Cout)
    row_scale = jnp.repeat(d, Ho * Wo, axis=0)                # (B*Ho*Wo, Cout)
    y = fused_matmul(col, w_flat, bias, row_scale=row_scale, act=act)
    return y.reshape(B, Ho, Wo, -1)


def modulated_conv1x1(x, w_flat, style, bias):
    """toRGB: 1x1 modulated conv, no demodulation, no activation."""
    B, H, W, Cin = x.shape
    x_mod = (x * style.astype(jnp.float32)[:, None, None, :]).reshape(B * H * W, Cin)
    y = fused_matmul(x_mod, w_flat, bias, act=None)
    return y.reshape(B, H, W, -1)


# ----------------------------------------------------------------------------
# Encoder e (simplified e4e): image -> W+ latents (B, n_ws, w_dim)
# ----------------------------------------------------------------------------
def encoder_forward(params, x_nhwc, n_ws, w_dim):
    h = conv2d_nhwc(x_nhwc, params["e_conv1_wf"], params["e_conv1_b"], 3, 3, 1, 1, "lrelu")
    h = conv2d_nhwc(h, params["e_conv2_wf"], params["e_conv2_b"], 3, 3, 2, 1, "lrelu")
    h = conv2d_nhwc(h, params["e_conv3_wf"], params["e_conv3_b"], 3, 3, 2, 1, "lrelu")
    feat = jnp.mean(h, axis=(1, 2))                            # (B, C)
    # fused [w0 | deltas] head: one matmul instead of two
    out = fused_matmul(feat, params["e_dense_wf"], params["e_dense_b"])
    w0 = out[:, :w_dim]
    deltas = out[:, w_dim:].reshape(-1, n_ws, w_dim)
    deltas = deltas.at[:, 0, :].set(0.0)                       # e4e: no offset on first latent
    ws = w0[:, None, :] + deltas
    return ws                                                  # (B, n_ws, w_dim)


# ----------------------------------------------------------------------------
# Generator g (simplified StyleGAN2 synthesis): W+ latents -> image (NHWC)
# ----------------------------------------------------------------------------
def generator_forward(params, ws, imsize):
    B = ws.shape[0]
    gc = params["g_const"].shape[-1]

    styles = batched_affine(ws, params["g_aff_w"], params["g_aff_b"])   # (n_ws, B, gc)

    x = jnp.broadcast_to(params["g_const"], (B,) + params["g_const"].shape[1:])  # (B,4,4,gc)

    # 4x4 block
    x = modulated_conv3x3(x, params["g_conv0_wf"], params["g_conv0_wsq"],
                          styles[0], params["g_conv0_b"])

    # upsampling blocks up to imsize (nearest-neighbor 2x upsample)
    li = 1
    res = 4
    while res < imsize:
        res *= 2
        x = jnp.repeat(jnp.repeat(x, 2, axis=1), 2, axis=2)
        for _ in range(2):
            x = modulated_conv3x3(x, params[f"g_conv{li}_wf"], params[f"g_conv{li}_wsq"],
                                  styles[li], params[f"g_conv{li}_b"])
            li += 1

    # toRGB: 1x1 modulated conv, no demodulation, no activation
    img = modulated_conv1x1(x, params["g_rgb_wf"], styles[li], params["g_rgb_b"])
    return img                                                 # (B, H, W, 3)


def e4e_initialized_forward(params, x, imsize, n_ws, w_dim):
    """forward(x): ws = e(x); return g(ws)  (matches E4eInitialized.forward)."""
    x_nhwc = jnp.transpose(x, (0, 2, 3, 1))                    # NCHW -> NHWC once
    ws = encoder_forward(params, x_nhwc, n_ws, w_dim)
    img = generator_forward(params, ws, imsize)
    return jnp.transpose(img, (0, 3, 1, 2))                    # back to NCHW once


# ----------------------------------------------------------------------------
# Deterministic synthetic parameter init (no checkpoint loading)
# Weights are stored pre-flattened (kh*kw*Cin, Cout) in bf16; demod w^2 sums in f32.
# ----------------------------------------------------------------------------
def init_params(key, imsize=16, w_dim=32, ec=16, gc=32):
    n_ws = 2 * int(math.log2(imsize)) - 2
    keys = iter(jax.random.split(key, 64))

    def nrm(shape, scale=0.1):
        return scale * jax.random.normal(next(keys), shape, jnp.float32)

    def conv_param(cin, cout, k):
        w = nrm((k, k, cin, cout))                             # HWIO
        wf = w.reshape(k * k * cin, cout).astype(jnp.bfloat16) # matmul layout
        wsq = jnp.sum(w * w, axis=(0, 1))                      # (cin, cout) f32 for demod
        return wf, wsq

    p = {}
    # encoder e
    p["e_conv1_wf"], _ = conv_param(3, ec, 3);        p["e_conv1_b"] = jnp.zeros((ec,), jnp.float32)
    p["e_conv2_wf"], _ = conv_param(ec, 2 * ec, 3);   p["e_conv2_b"] = jnp.zeros((2 * ec,), jnp.float32)
    p["e_conv3_wf"], _ = conv_param(2 * ec, 4 * ec, 3); p["e_conv3_b"] = jnp.zeros((4 * ec,), jnp.float32)
    p["e_dense_wf"] = jnp.concatenate(
        [nrm((4 * ec, w_dim)), nrm((4 * ec, n_ws * w_dim))], axis=1).astype(jnp.bfloat16)
    p["e_dense_b"] = jnp.zeros((w_dim + n_ws * w_dim,), jnp.float32)

    # generator g
    p["g_const"] = nrm((1, 4, 4, gc), 1.0)                     # NHWC const input
    n_conv = 1 + 2 * (int(math.log2(imsize)) - 2)              # n_conv + 1 == n_ws
    aff_w = []
    for li in range(n_conv):
        wf, wsq = conv_param(gc, gc, 3)
        p[f"g_conv{li}_wf"] = wf
        p[f"g_conv{li}_wsq"] = wsq
        p[f"g_conv{li}_b"] = jnp.zeros((gc,), jnp.float32)
        aff_w.append(nrm((w_dim, gc)))
    aff_w.append(nrm((w_dim, gc)))                             # toRGB affine
    p["g_aff_w"] = jnp.stack(aff_w, axis=0).astype(jnp.bfloat16)   # (n_ws, w_dim, gc)
    p["g_aff_b"] = jnp.ones((len(aff_w), 1, gc), jnp.float32)
    rgb_wf, _ = conv_param(gc, 3, 1)
    p["g_rgb_wf"] = rgb_wf                                     # (gc, 3)
    p["g_rgb_b"] = jnp.zeros((3,), jnp.float32)
    return p, n_ws


if __name__ == "__main__":
    imsize = 16
    batch = 2
    w_dim = 32

    key = jax.random.PRNGKey(0)
    pkey, xkey = jax.random.split(key)
    params, n_ws = init_params(pkey, imsize=imsize, w_dim=w_dim)
    x = jax.random.normal(xkey, (batch, 3, imsize, imsize), jnp.float32)

    fwd = jax.jit(functools.partial(e4e_initialized_forward,
                                    imsize=imsize, n_ws=n_ws, w_dim=w_dim))
    out = fwd(params, x)
    jax.block_until_ready(out)
    assert out.shape == (batch, 3, imsize, imsize), out.shape
    assert out.dtype == jnp.float32
    print("KERNEL_OK")
</pallas_src>

<mosaic_0001>
module attributes {stable_mosaic.version = 11 : i64} {
  func.func @_mm_bias_kernel(%arg0: i32, %arg1: memref<512x27xbf16, #tpu.memory_space<vmem>>, %arg2: memref<27x16xbf16, #tpu.memory_space<vmem>>, %arg3: memref<1x16xf32, #tpu.memory_space<vmem>>, %arg4: memref<512x16xf32, #tpu.memory_space<vmem>>) attributes {dimension_semantics = [#tpu.dimension_semantics<parallel>], iteration_bounds = array<i64: 1>, scalar_prefetch = 0 : i64, scratch_operands = 0 : i64, tpu.core_type = #tpu.core_type<tc>, window_params = [{transform_indices = @transform_0, window_bounds = array<i64: 512, 27>}, {pipeline_mode = #tpu.pipeline_mode<synchronous>, transform_indices = @transform_1, window_bounds = array<i64: 27, 16>}, {pipeline_mode = #tpu.pipeline_mode<synchronous>, transform_indices = @transform_2, window_bounds = array<i64: 1, 16>}, {transform_indices = @transform_3, window_bounds = array<i64: 512, 16>}]} {
    %c0 = arith.constant 0 : index
    %c0_0 = arith.constant 0 : index
    %0 = vector.load %arg1[%c0, %c0_0] : memref<512x27xbf16, #tpu.memory_space<vmem>>, vector<512x27xbf16>
    %c0_1 = arith.constant 0 : index
    %c0_2 = arith.constant 0 : index
    %1 = vector.load %arg2[%c0_1, %c0_2] : memref<27x16xbf16, #tpu.memory_space<vmem>>, vector<27x16xbf16>
    %cst = arith.constant dense<0.000000e+00> : vector<512x16xf32>
    %2 = tpu.matmul %0, %1, %cst {dimension_numbers = #tpu.dot_dimension_numbers<[1], [0], [0], [1], [0, 0, 1, 1], [], []>} : vector<512x27xbf16>, vector<27x16xbf16>, vector<512x16xf32> -> vector<512x16xf32>
    %c0_3 = arith.constant 0 : index
    %c0_4 = arith.constant 0 : index
    %3 = vector.load %arg3[%c0_3, %c0_4] : memref<1x16xf32, #tpu.memory_space<vmem>>, vector<1x16xf32>
    %4 = vector.broadcast %3 : vector<1x16xf32> to vector<512x16xf32>
    %5 = arith.addf %2, %4 : vector<512x16xf32>
    %cst_5 = arith.constant 0.000000e+00 : f32
    %6 = vector.broadcast %cst_5 : f32 to vector<512x16xf32>
    %7 = arith.cmpf ogt, %5, %6 : vector<512x16xf32>
    %cst_6 = arith.constant 2.000000e-01 : f32
    %8 = vector.broadcast %cst_6 : f32 to vector<512x16xf32>
    %9 = arith.mulf %8, %5 : vector<512x16xf32>
    %10 = arith.select %7, %5, %9 : vector<512x16xi1>, vector<512x16xf32>
    %c0_7 = arith.constant 0 : index
    %c0_8 = arith.constant 0 : index
    %11 = vector.load %arg4[%c0_7, %c0_8] : memref<512x16xf32, #tpu.memory_space<vmem>>, vector<512x16xf32>
    tpu.vector_store %arg4[%c0_7, %c0_8], %10 {strides = array<i32>} : memref<512x16xf32, #tpu.memory_space<vmem>>, vector<512x16xf32>,
    return
  }
  func.func @transform_0(%arg0: i32) -> (i32, i32) {
    %c0_i32 = arith.constant 0 : i32
    %c0_i32_0 = arith.constant 0 : i32
    return %arg0, %c0_i32 : i32, i32
  }
  func.func @transform_1(%arg0: i32) -> (i32, i32) {
    %c0_i32 = arith.constant 0 : i32
    %c0_i32_0 = arith.constant 0 : i32
    %c0_i32_1 = arith.constant 0 : i32
    return %c0_i32, %c0_i32_0 : i32, i32
  }
  func.func @transform_2(%arg0: i32) -> (i32, i32) {
    %c0_i32 = arith.constant 0 : i32
    %c0_i32_0 = arith.constant 0 : i32
    %c0_i32_1 = arith.constant 0 : i32
    return %c0_i32, %c0_i32_0 : i32, i32
  }
  func.func @transform_3(%arg0: i32) -> (i32, i32) {
    %c0_i32 = arith.constant 0 : i32
    %c0_i32_0 = arith.constant 0 : i32
    return %arg0, %c0_i32 : i32, i32
  }
}

module attributes {stable_mosaic.version = 11 : i64} {
  func.func @_mm_bias_kernel(%arg0: i32, %arg1: memref<128x144xbf16, #tpu.memory_space<vmem>>, %arg2: memref<144x32xbf16, #tpu.memory_space<vmem>>, %arg3: memref<1x32xf32, #tpu.memory_space<vmem>>, %arg4: memref<128x32xf32, #tpu.memory_space<vmem>>) attributes {dimension_semantics = [#tpu.dimension_semantics<parallel>], iteration_bounds = array<i64: 1>, scalar_prefetch = 0 : i64, scratch_operands = 0 : i64, tpu.core_type = #tpu.core_type<tc>, window_params = [{transform_indices = @transform_0, window_bounds = array<i64: 128, 144>}, {pipeline_mode = #tpu.pipeline_mode<synchronous>, transform_indices = @transform_1, window_bounds = array<i64: 144, 32>}, {pipeline_mode = #tpu.pipeline_mode<synchronous>, transform_indices = @transform_2, window_bounds = array<i64: 1, 32>}, {transform_indices = @transform_3, window_bounds = array<i64: 128, 32>}]} {
    %c0 = arith.constant 0 : index
    %c0_0 = arith.constant 0 : index
    %0 = vector.load %arg1[%c0, %c0_0] : memref<128x144xbf16, #tpu.memory_space<vmem>>, vector<128x144xbf16>
    %c0_1 = arith.constant 0 : index
    %c0_2 = arith.constant 0 : index
    %1 = vector.load %arg2[%c0_1, %c0_2] : memref<144x32xbf16, #tpu.memory_space<vmem>>, vector<144x32xbf16>
    %cst = arith.constant dense<0.000000e+00> : vector<128x32xf32>
    %2 = tpu.matmul %0, %1, %cst {dimension_numbers = #tpu.dot_dimension_numbers<[1], [0], [0], [1], [0, 0, 1, 1], [], []>} : vector<128x144xbf16>, vector<144x32xbf16>, vector<128x32xf32> -> vector<128x32xf32>
    %c0_3 = arith.constant 0 : index
    %c0_4 = arith.constant 0 : index
    %3 = vector.load %arg3[%c0_3, %c0_4] : memref<1x32xf32, #tpu.memory_space<vmem>>, vector<1x32xf32>
    %4 = vector.broadcast %3 : vector<1x32xf32> to vector<128x32xf32>
    %5 = arith.addf %2, %4 : vector<128x32xf32>
    %cst_5 = arith.constant 0.000000e+00 : f32
    %6 = vector.broadcast %cst_5 : f32 to vector<128x32xf32>
    %7 = arith.cmpf ogt, %5, %6 : vector<128x32xf32>
    %cst_6 = arith.constant 2.000000e-01 : f32
    %8 = vector.broadcast %cst_6 : f32 to vector<128x32xf32>
    %9 = arith.mulf %8, %5 : vector<128x32xf32>
    %10 = arith.select %7, %5, %9 : vector<128x32xi1>, vector<128x32xf32>
    %c0_7 = arith.constant 0 : index
    %c0_8 = arith.constant 0 : index
    %11 = vector.load %arg4[%c0_7, %c0_8] : memref<128x32xf32, #tpu.memory_space<vmem>>, vector<128x32xf32>
    tpu.vector_store %arg4[%c0_7, %c0_8], %10 {strides = array<i32>} : memref<128x32xf32, #tpu.memory_space<vmem>>, vector<128x32xf32>,
    return
  }
  func.func @transform_0(%arg0: i32) -> (i32, i32) {
    %c0_i32 = arith.constant 0 : i32
    %c0_i32_0 = arith.constant 0 : i32
    return %arg0, %c0_i32 : i32, i32
  }
  func.func @transform_1(%arg0: i32) -> (i32, i32) {
    %c0_i32 = arith.constant 0 : i32
    %c0_i32_0 = arith.constant 0 : i32
    %c0_i32_1 = arith.constant 0 : i32
    return %c0_i32, %c0_i32_0 : i32, i32
  }
  func.func @transform_2(%arg0: i32) -> (i32, i32) {
    %c0_i32 = arith.constant 0 : i32
    %c0_i32_0 = arith.constant 0 : i32
    %c0_i32_1 = arith.constant 0 : i32
    return %c0_i32, %c0_i32_0 : i32, i32
  }
  func.func @transform_3(%arg0: i32) -> (i32, i32) {
    %c0_i32 = arith.constant 0 : i32
    %c0_i32_0 = arith.constant 0 : i32
    return %arg0, %c0_i32 : i32, i32
  }
}

module attributes {stable_mosaic.version = 11 : i64} {
  func.func @_mm_bias_kernel(%arg0: i32, %arg1: memref<32x288xbf16, #tpu.memory_space<vmem>>, %arg2: memref<288x64xbf16, #tpu.memory_space<vmem>>, %arg3: memref<1x64xf32, #tpu.memory_space<vmem>>, %arg4: memref<32x64xf32, #tpu.memory_space<vmem>>) attributes {dimension_semantics = [#tpu.dimension_semantics<parallel>], iteration_bounds = array<i64: 1>, scalar_prefetch = 0 : i64, scratch_operands = 0 : i64, tpu.core_type = #tpu.core_type<tc>, window_params = [{transform_indices = @transform_0, window_bounds = array<i64: 32, 288>}, {pipeline_mode = #tpu.pipeline_mode<synchronous>, transform_indices = @transform_1, window_bounds = array<i64: 288, 64>}, {pipeline_mode = #tpu.pipeline_mode<synchronous>, transform_indices = @transform_2, window_bounds = array<i64: 1, 64>}, {transform_indices = @transform_3, window_bounds = array<i64: 32, 64>}]} {
    %c0 = arith.constant 0 : index
    %c0_0 = arith.constant 0 : index
    %0 = vector.load %arg1[%c0, %c0_0] : memref<32x288xbf16, #tpu.memory_space<vmem>>, vector<32x288xbf16>
    %c0_1 = arith.constant 0 : index
    %c0_2 = arith.constant 0 : index
    %1 = vector.load %arg2[%c0_1, %c0_2] : memref<288x64xbf16, #tpu.memory_space<vmem>>, vector<288x64xbf16>
    %cst = arith.constant dense<0.000000e+00> : vector<32x64xf32>
    %2 = tpu.matmul %0, %1, %cst {dimension_numbers = #tpu.dot_dimension_numbers<[1], [0], [0], [1], [0, 0, 1, 1], [], []>} : vector<32x288xbf16>, vector<288x64xbf16>, vector<32x64xf32> -> vector<32x64xf32>
    %c0_3 = arith.constant 0 : index
    %c0_4 = arith.constant 0 : index
    %3 = vector.load %arg3[%c0_3, %c0_4] : memref<1x64xf32, #tpu.memory_space<vmem>>, vector<1x64xf32>
    %4 = vector.broadcast %3 : vector<1x64xf32> to vector<32x64xf32>
    %5 = arith.addf %2, %4 : vector<32x64xf32>
    %cst_5 = arith.constant 0.000000e+00 : f32
    %6 = vector.broadcast %cst_5 : f32 to vector<32x64xf32>
    %7 = arith.cmpf ogt, %5, %6 : vector<32x64xf32>
    %cst_6 = arith.constant 2.000000e-01 : f32
    %8 = vector.broadcast %cst_6 : f32 to vector<32x64xf32>
    %9 = arith.mulf %8, %5 : vector<32x64xf32>
    %10 = arith.select %7, %5, %9 : vector<32x64xi1>, vector<32x64xf32>
    %c0_7 = arith.constant 0 : index
    %c0_8 = arith.constant 0 : index
    %11 = vector.load %arg4[%c0_7, %c0_8] : memref<32x64xf32, #tpu.memory_space<vmem>>, vector<32x64xf32>
    tpu.vector_store %arg4[%c0_7, %c0_8], %10 {strides = array<i32>} : memref<32x64xf32, #tpu.memory_space<vmem>>, vector<32x64xf32>,
    return
  }
  func.func @transform_0(%arg0: i32) -> (i32, i32) {
    %c0_i32 = arith.constant 0 : i32
    %c0_i32_0 = arith.constant 0 : i32
    return %arg0, %c0_i32 : i32, i32
  }
  func.func @transform_1(%arg0: i32) -> (i32, i32) {
    %c0_i32 = arith.constant 0 : i32
    %c0_i32_0 = arith.constant 0 : i32
    %c0_i32_1 = arith.constant 0 : i32
    return %c0_i32, %c0_i32_0 : i32, i32
  }
  func.func @transform_2(%arg0: i32) -> (i32, i32) {
    %c0_i32 = arith.constant 0 : i32
    %c0_i32_0 = arith.constant 0 : i32
    %c0_i32_1 = arith.constant 0 : i32
    return %c0_i32, %c0_i32_0 : i32, i32
  }
  func.func @transform_3(%arg0: i32) -> (i32, i32) {
    %c0_i32 = arith.constant 0 : i32
    %c0_i32_0 = arith.constant 0 : i32
    return %arg0, %c0_i32 : i32, i32
  }
}

module attributes {stable_mosaic.version = 11 : i64} {
  func.func @_mm_bias_kernel(%arg0: i32, %arg1: memref<2x64xbf16, #tpu.memory_space<vmem>>, %arg2: memref<64x224xbf16, #tpu.memory_space<vmem>>, %arg3: memref<1x224xf32, #tpu.memory_space<vmem>>, %arg4: memref<2x224xf32, #tpu.memory_space<vmem>>) attributes {dimension_semantics = [#tpu.dimension_semantics<parallel>], iteration_bounds = array<i64: 1>, scalar_prefetch = 0 : i64, scratch_operands = 0 : i64, tpu.core_type = #tpu.core_type<tc>, window_params = [{transform_indices = @transform_0, window_bounds = array<i64: 2, 64>}, {pipeline_mode = #tpu.pipeline_mode<synchronous>, transform_indices = @transform_1, window_bounds = array<i64: 64, 224>}, {pipeline_mode = #tpu.pipeline_mode<synchronous>, transform_indices = @transform_2, window_bounds = array<i64: 1, 224>}, {transform_indices = @transform_3, window_bounds = array<i64: 2, 224>}]} {
    %c0 = arith.constant 0 : index
    %c0_0 = arith.constant 0 : index
    %0 = vector.load %arg1[%c0, %c0_0] : memref<2x64xbf16, #tpu.memory_space<vmem>>, vector<2x64xbf16>
    %c0_1 = arith.constant 0 : index
    %c0_2 = arith.constant 0 : index
    %1 = vector.load %arg2[%c0_1, %c0_2] : memref<64x224xbf16, #tpu.memory_space<vmem>>, vector<64x224xbf16>
    %cst = arith.constant dense<0.000000e+00> : vector<2x224xf32>
    %2 = tpu.matmul %0, %1, %cst {dimension_numbers = #tpu.dot_dimension_numbers<[1], [0], [0], [1], [0, 0, 1, 1], [], []>} : vector<2x64xbf16>, vector<64x224xbf16>, vector<2x224xf32> -> vector<2x224xf32>
    %c0_3 = arith.constant 0 : index
    %c0_4 = arith.constant 0 : index
    %3 = vector.load %arg3[%c0_3, %c0_4] : memref<1x224xf32, #tpu.memory_space<vmem>>, vector<1x224xf32>
    %4 = vector.broadcast %3 : vector<1x224xf32> to vector<2x224xf32>
    %5 = arith.addf %2, %4 : vector<2x224xf32>
    %c0_5 = arith.constant 0 : index
    %c0_6 = arith.constant 0 : index
    %6 = vector.load %arg4[%c0_5, %c0_6] : memref<2x224xf32, #tpu.memory_space<vmem>>, vector<2x224xf32>
    tpu.vector_store %arg4[%c0_5, %c0_6], %5 {strides = array<i32>} : memref<2x224xf32, #tpu.memory_space<vmem>>, vector<2x224xf32>,
    return
  }
  func.func @transform_0(%arg0: i32) -> (i32, i32) {
    %c0_i32 = arith.constant 0 : i32
    %c0_i32_0 = arith.constant 0 : i32
    return %arg0, %c0_i32 : i32, i32
  }
  func.func @transform_1(%arg0: i32) -> (i32, i32) {
    %c0_i32 = arith.constant 0 : i32
    %c0_i32_0 = arith.constant 0 : i32
    %c0_i32_1 = arith.constant 0 : i32
    return %c0_i32, %c0_i32_0 : i32, i32
  }
  func.func @transform_2(%arg0: i32) -> (i32, i32) {
    %c0_i32 = arith.constant 0 : i32
    %c0_i32_0 = arith.constant 0 : i32
    %c0_i32_1 = arith.constant 0 : i32
    return %c0_i32, %c0_i32_0 : i32, i32
  }
  func.func @transform_3(%arg0: i32) -> (i32, i32) {
    %c0_i32 = arith.constant 0 : i32
    %c0_i32_0 = arith.constant 0 : i32
    return %arg0, %c0_i32 : i32, i32
  }
}

module attributes {stable_mosaic.version = 11 : i64} {
  func.func @_affine_kernel(%arg0: memref<6x2x32xbf16, #tpu.memory_space<vmem>>, %arg1: memref<6x32x32xbf16, #tpu.memory_space<vmem>>, %arg2: memref<6x1x32xf32, #tpu.memory_space<vmem>>, %arg3: memref<6x2x32xf32, #tpu.memory_space<vmem>>) attributes {dimension_semantics = [], scalar_prefetch = 0 : i64, scratch_operands = 0 : i64, tpu.core_type = #tpu.core_type<tc>} {
    %c0 = arith.constant 0 : index
    %c0_0 = arith.constant 0 : index
    %c0_1 = arith.constant 0 : index
    %0 = vector.load %arg0[%c0, %c0_0, %c0_1] : memref<6x2x32xbf16, #tpu.memory_space<vmem>>, vector<6x2x32xbf16>
    %c0_2 = arith.constant 0 : index
    %c0_3 = arith.constant 0 : index
    %c0_4 = arith.constant 0 : index
    %1 = vector.load %arg1[%c0_2, %c0_3, %c0_4] : memref<6x32x32xbf16, #tpu.memory_space<vmem>>, vector<6x32x32xbf16>
    "tpu.trace_start"() <{level = 10 : i32, message = "lbk,lkn->lbn"}> : () -> ()
    %cst = arith.constant dense<0.000000e+00> : vector<6x2x32xf32>
    %2 = tpu.matmul %0, %1, %cst {dimension_numbers = #tpu.dot_dimension_numbers<[2], [1], [1], [2], [0, 0, 0, 1, 1, 2], [0], [0]>} : vector<6x2x32xbf16>, vector<6x32x32xbf16>, vector<6x2x32xf32> -> vector<6x2x32xf32>
    "tpu.trace_stop"() : () -> ()
    %c0_5 = arith.constant 0 : index
    %c0_6 = arith.constant 0 : index
    %c0_7 = arith.constant 0 : index
    %3 = vector.load %arg2[%c0_5, %c0_6, %c0_7] : memref<6x1x32xf32, #tpu.memory_space<vmem>>, vector<6x1x32xf32>
    %4 = vector.broadcast %3 : vector<6x1x32xf32> to vector<6x2x32xf32>
    %5 = arith.addf %2, %4 : vector<6x2x32xf32>
    %c0_8 = arith.constant 0 : index
    %c0_9 = arith.constant 0 : index
    %c0_10 = arith.constant 0 : index
    %6 = vector.load %arg3[%c0_8, %c0_9, %c0_10] : memref<6x2x32xf32, #tpu.memory_space<vmem>>, vector<6x2x32xf32>
    tpu.vector_store %arg3[%c0_8, %c0_9, %c0_10], %5 {strides = array<i32>} : memref<6x2x32xf32, #tpu.memory_space<vmem>>, vector<6x2x32xf32>,
    return
  }
}

module attributes {stable_mosaic.version = 11 : i64} {
  func.func @_mm_scale_bias_kernel(%arg0: i32, %arg1: memref<32x288xbf16, #tpu.memory_space<vmem>>, %arg2: memref<288x32xbf16, #tpu.memory_space<vmem>>, %arg3: memref<32x32xf32, #tpu.memory_space<vmem>>, %arg4: memref<1x32xf32, #tpu.memory_space<vmem>>, %arg5: memref<32x32xf32, #tpu.memory_space<vmem>>) attributes {dimension_semantics = [#tpu.dimension_semantics<parallel>], iteration_bounds = array<i64: 1>, scalar_prefetch = 0 : i64, scratch_operands = 0 : i64, tpu.core_type = #tpu.core_type<tc>, window_params = [{transform_indices = @transform_0, window_bounds = array<i64: 32, 288>}, {pipeline_mode = #tpu.pipeline_mode<synchronous>, transform_indices = @transform_1, window_bounds = array<i64: 288, 32>}, {transform_indices = @transform_2, window_bounds = array<i64: 32, 32>}, {pipeline_mode = #tpu.pipeline_mode<synchronous>, transform_indices = @transform_3, window_bounds = array<i64: 1, 32>}, {transform_indices = @transform_4, window_bounds = array<i64: 32, 32>}]} {
    %c0 = arith.constant 0 : index
    %c0_0 = arith.constant 0 : index
    %0 = vector.load %arg1[%c0, %c0_0] : memref<32x288xbf16, #tpu.memory_space<vmem>>, vector<32x288xbf16>
    %c0_1 = arith.constant 0 : index
    %c0_2 = arith.constant 0 : index
    %1 = vector.load %arg2[%c0_1, %c0_2] : memref<288x32xbf16, #tpu.memory_space<vmem>>, vector<288x32xbf16>
    %cst = arith.constant dense<0.000000e+00> : vector<32x32xf32>
    %2 = tpu.matmul %0, %1, %cst {dimension_numbers = #tpu.dot_dimension_numbers<[1], [0], [0], [1], [0, 0, 1, 1], [], []>} : vector<32x288xbf16>, vector<288x32xbf16>, vector<32x32xf32> -> vector<32x32xf32>
    %c0_3 = arith.constant 0 : index
    %c0_4 = arith.constant 0 : index
    %3 = vector.load %arg3[%c0_3, %c0_4] : memref<32x32xf32, #tpu.memory_space<vmem>>, vector<32x32xf32>
    %4 = arith.mulf %2, %3 : vector<32x32xf32>
    %c0_5 = arith.constant 0 : index
    %c0_6 = arith.constant 0 : index
    %5 = vector.load %arg4[%c0_5, %c0_6] : memref<1x32xf32, #tpu.memory_space<vmem>>, vector<1x32xf32>
    %6 = vector.broadcast %5 : vector<1x32xf32> to vector<32x32xf32>
    %7 = arith.addf %4, %6 : vector<32x32xf32>
    %cst_7 = arith.constant 0.000000e+00 : f32
    %8 = vector.broadcast %cst_7 : f32 to vector<32x32xf32>
    %9 = arith.cmpf ogt, %7, %8 : vector<32x32xf32>
    %cst_8 = arith.constant 2.000000e-01 : f32
    %10 = vector.broadcast %cst_8 : f32 to vector<32x32xf32>
    %11 = arith.mulf %10, %7 : vector<32x32xf32>
    %12 = arith.select %9, %7, %11 : vector<32x32xi1>, vector<32x32xf32>
    %c0_9 = arith.constant 0 : index
    %c0_10 = arith.constant 0 : index
    %13 = vector.load %arg5[%c0_9, %c0_10] : memref<32x32xf32, #tpu.memory_space<vmem>>, vector<32x32xf32>
    tpu.vector_store %arg5[%c0_9, %c0_10], %12 {strides = array<i32>} : memref<32x32xf32, #tpu.memory_space<vmem>>, vector<32x32xf32>,
    return
  }
  func.func @transform_0(%arg0: i32) -> (i32, i32) {
    %c0_i32 = arith.constant 0 : i32
    %c0_i32_0 = arith.constant 0 : i32
    return %arg0, %c0_i32 : i32, i32
  }
  func.func @transform_1(%arg0: i32) -> (i32, i32) {
    %c0_i32 = arith.constant 0 : i32
    %c0_i32_0 = arith.constant 0 : i32
    %c0_i32_1 = arith.constant 0 : i32
    return %c0_i32, %c0_i32_0 : i32, i32
  }
  func.func @transform_2(%arg0: i32) -> (i32, i32) {
    %c0_i32 = arith.constant 0 : i32
    %c0_i32_0 = arith.constant 0 : i32
    return %arg0, %c0_i32 : i32, i32
  }
  func.func @transform_3(%arg0: i32) -> (i32, i32) {
    %c0_i32 = arith.constant 0 : i32
    %c0_i32_0 = arith.constant 0 : i32
    %c0_i32_1 = arith.constant 0 : i32
    return %c0_i32, %c0_i32_0 : i32, i32
  }
  func.func @transform_4(%arg0: i32) -> (i32, i32) {
    %c0_i32 = arith.constant 0 : i32
    %c0_i32_0 = arith.constant 0 : i32
    return %arg0, %c0_i32 : i32, i32
  }
}

module attributes {stable_mosaic.version = 11 : i64} {
  func.func @_mm_scale_bias_kernel(%arg0: i32, %arg1: memref<128x288xbf16, #tpu.memory_space<vmem>>, %arg2: memref<288x32xbf16, #tpu.memory_space<vmem>>, %arg3: memref<128x32xf32, #tpu.memory_space<vmem>>, %arg4: memref<1x32xf32, #tpu.memory_space<vmem>>, %arg5: memref<128x32xf32, #tpu.memory_space<vmem>>) attributes {dimension_semantics = [#tpu.dimension_semantics<parallel>], iteration_bounds = array<i64: 1>, scalar_prefetch = 0 : i64, scratch_operands = 0 : i64, tpu.core_type = #tpu.core_type<tc>, window_params = [{transform_indices = @transform_0, window_bounds = array<i64: 128, 288>}, {pipeline_mode = #tpu.pipeline_mode<synchronous>, transform_indices = @transform_1, window_bounds = array<i64: 288, 32>}, {transform_indices = @transform_2, window_bounds = array<i64: 128, 32>}, {pipeline_mode = #tpu.pipeline_mode<synchronous>, transform_indices = @transform_3, window_bounds = array<i64: 1, 32>}, {transform_indices = @transform_4, window_bounds = array<i64: 128, 32>}]} {
    %c0 = arith.constant 0 : index
    %c0_0 = arith.constant 0 : index
    %0 = vector.load %arg1[%c0, %c0_0] : memref<128x288xbf16, #tpu.memory_space<vmem>>, vector<128x288xbf16>
    %c0_1 = arith.constant 0 : index
    %c0_2 = arith.constant 0 : index
    %1 = vector.load %arg2[%c0_1, %c0_2] : memref<288x32xbf16, #tpu.memory_space<vmem>>, vector<288x32xbf16>
    %cst = arith.constant dense<0.000000e+00> : vector<128x32xf32>
    %2 = tpu.matmul %0, %1, %cst {dimension_numbers = #tpu.dot_dimension_numbers<[1], [0], [0], [1], [0, 0, 1, 1], [], []>} : vector<128x288xbf16>, vector<288x32xbf16>, vector<128x32xf32> -> vector<128x32xf32>
    %c0_3 = arith.constant 0 : index
    %c0_4 = arith.constant 0 : index
    %3 = vector.load %arg3[%c0_3, %c0_4] : memref<128x32xf32, #tpu.memory_space<vmem>>, vector<128x32xf32>
    %4 = arith.mulf %2, %3 : vector<128x32xf32>
    %c0_5 = arith.constant 0 : index
    %c0_6 = arith.constant 0 : index
    %5 = vector.load %arg4[%c0_5, %c0_6] : memref<1x32xf32, #tpu.memory_space<vmem>>, vector<1x32xf32>
    %6 = vector.broadcast %5 : vector<1x32xf32> to vector<128x32xf32>
    %7 = arith.addf %4, %6 : vector<128x32xf32>
    %cst_7 = arith.constant 0.000000e+00 : f32
    %8 = vector.broadcast %cst_7 : f32 to vector<128x32xf32>
    %9 = arith.cmpf ogt, %7, %8 : vector<128x32xf32>
    %cst_8 = arith.constant 2.000000e-01 : f32
    %10 = vector.broadcast %cst_8 : f32 to vector<128x32xf32>
    %11 = arith.mulf %10, %7 : vector<128x32xf32>
    %12 = arith.select %9, %7, %11 : vector<128x32xi1>, vector<128x32xf32>
    %c0_9 = arith.constant 0 : index
    %c0_10 = arith.constant 0 : index
    %13 = vector.load %arg5[%c0_9, %c0_10] : memref<128x32xf32, #tpu.memory_space<vmem>>, vector<128x32xf32>
    tpu.vector_store %arg5[%c0_9, %c0_10], %12 {strides = array<i32>} : memref<128x32xf32, #tpu.memory_space<vmem>>, vector<128x32xf32>,
    return
  }
  func.func @transform_0(%arg0: i32) -> (i32, i32) {
    %c0_i32 = arith.constant 0 : i32
    %c0_i32_0 = arith.constant 0 : i32
    return %arg0, %c0_i32 : i32, i32
  }
  func.func @transform_1(%arg0: i32) -> (i32, i32) {
    %c0_i32 = arith.constant 0 : i32
    %c0_i32_0 = arith.constant 0 : i32
    %c0_i32_1 = arith.constant 0 : i32
    return %c0_i32, %c0_i32_0 : i32, i32
  }
  func.func @transform_2(%arg0: i32) -> (i32, i32) {
    %c0_i32 = arith.constant 0 : i32
    %c0_i32_0 = arith.constant 0 : i32
    return %arg0, %c0_i32 : i32, i32
  }
  func.func @transform_3(%arg0: i32) -> (i32, i32) {
    %c0_i32 = arith.constant 0 : i32
    %c0_i32_0 = arith.constant 0 : i32
    %c0_i32_1 = arith.constant 0 : i32
    return %c0_i32, %c0_i32_0 : i32, i32
  }
  func.func @transform_4(%arg0: i32) -> (i32, i32) {
    %c0_i32 = arith.constant 0 : i32
    %c0_i32_0 = arith.constant 0 : i32
    return %arg0, %c0_i32 : i32, i32
  }
}

module attributes {stable_mosaic.version = 11 : i64} {
  func.func @_mm_scale_bias_kernel(%arg0: i32, %arg1: memref<512x288xbf16, #tpu.memory_space<vmem>>, %arg2: memref<288x32xbf16, #tpu.memory_space<vmem>>, %arg3: memref<512x32xf32, #tpu.memory_space<vmem>>, %arg4: memref<1x32xf32, #tpu.memory_space<vmem>>, %arg5: memref<512x32xf32, #tpu.memory_space<vmem>>) attributes {dimension_semantics = [#tpu.dimension_semantics<parallel>], iteration_bounds = array<i64: 1>, scalar_prefetch = 0 : i64, scratch_operands = 0 : i64, tpu.core_type = #tpu.core_type<tc>, window_params = [{transform_indices = @transform_0, window_bounds = array<i64: 512, 288>}, {pipeline_mode = #tpu.pipeline_mode<synchronous>, transform_indices = @transform_1, window_bounds = array<i64: 288, 32>}, {transform_indices = @transform_2, window_bounds = array<i64: 512, 32>}, {pipeline_mode = #tpu.pipeline_mode<synchronous>, transform_indices = @transform_3, window_bounds = array<i64: 1, 32>}, {transform_indices = @transform_4, window_bounds = array<i64: 512, 32>}]} {
    %c0 = arith.constant 0 : index
    %c0_0 = arith.constant 0 : index
    %0 = vector.load %arg1[%c0, %c0_0] : memref<512x288xbf16, #tpu.memory_space<vmem>>, vector<512x288xbf16>
    %c0_1 = arith.constant 0 : index
    %c0_2 = arith.constant 0 : index
    %1 = vector.load %arg2[%c0_1, %c0_2] : memref<288x32xbf16, #tpu.memory_space<vmem>>, vector<288x32xbf16>
    %cst = arith.constant dense<0.000000e+00> : vector<512x32xf32>
    %2 = tpu.matmul %0, %1, %cst {dimension_numbers = #tpu.dot_dimension_numbers<[1], [0], [0], [1], [0, 0, 1, 1], [], []>} : vector<512x288xbf16>, vector<288x32xbf16>, vector<512x32xf32> -> vector<512x32xf32>
    %c0_3 = arith.constant 0 : index
    %c0_4 = arith.constant 0 : index
    %3 = vector.load %arg3[%c0_3, %c0_4] : memref<512x32xf32, #tpu.memory_space<vmem>>, vector<512x32xf32>
    %4 = arith.mulf %2, %3 : vector<512x32xf32>
    %c0_5 = arith.constant 0 : index
    %c0_6 = arith.constant 0 : index
    %5 = vector.load %arg4[%c0_5, %c0_6] : memref<1x32xf32, #tpu.memory_space<vmem>>, vector<1x32xf32>
    %6 = vector.broadcast %5 : vector<1x32xf32> to vector<512x32xf32>
    %7 = arith.addf %4, %6 : vector<512x32xf32>
    %cst_7 = arith.constant 0.000000e+00 : f32
    %8 = vector.broadcast %cst_7 : f32 to vector<512x32xf32>
    %9 = arith.cmpf ogt, %7, %8 : vector<512x32xf32>
    %cst_8 = arith.constant 2.000000e-01 : f32
    %10 = vector.broadcast %cst_8 : f32 to vector<512x32xf32>
    %11 = arith.mulf %10, %7 : vector<512x32xf32>
    %12 = arith.select %9, %7, %11 : vector<512x32xi1>, vector<512x32xf32>
    %c0_9 = arith.constant 0 : index
    %c0_10 = arith.constant 0 : index
    %13 = vector.load %arg5[%c0_9, %c0_10] : memref<512x32xf32, #tpu.memory_space<vmem>>, vector<512x32xf32>
    tpu.vector_store %arg5[%c0_9, %c0_10], %12 {strides = array<i32>} : memref<512x32xf32, #tpu.memory_space<vmem>>, vector<512x32xf32>,
    return
  }
  func.func @transform_0(%arg0: i32) -> (i32, i32) {
    %c0_i32 = arith.constant 0 : i32
    %c0_i32_0 = arith.constant 0 : i32
    return %arg0, %c0_i32 : i32, i32
  }
  func.func @transform_1(%arg0: i32) -> (i32, i32) {
    %c0_i32 = arith.constant 0 : i32
    %c0_i32_0 = arith.constant 0 : i32
    %c0_i32_1 = arith.constant 0 : i32
    return %c0_i32, %c0_i32_0 : i32, i32
  }
  func.func @transform_2(%arg0: i32) -> (i32, i32) {
    %c0_i32 = arith.constant 0 : i32
    %c0_i32_0 = arith.constant 0 : i32
    return %arg0, %c0_i32 : i32, i32
  }
  func.func @transform_3(%arg0: i32) -> (i32, i32) {
    %c0_i32 = arith.constant 0 : i32
    %c0_i32_0 = arith.constant 0 : i32
    %c0_i32_1 = arith.constant 0 : i32
    return %c0_i32, %c0_i32_0 : i32, i32
  }
  func.func @transform_4(%arg0: i32) -> (i32, i32) {
    %c0_i32 = arith.constant 0 : i32
    %c0_i32_0 = arith.constant 0 : i32
    return %arg0, %c0_i32 : i32, i32
  }
}

module attributes {stable_mosaic.version = 11 : i64} {
  func.func @_mm_bias_kernel(%arg0: i32, %arg1: memref<512x32xbf16, #tpu.memory_space<vmem>>, %arg2: memref<32x3xbf16, #tpu.memory_space<vmem>>, %arg3: memref<1x3xf32, #tpu.memory_space<vmem>>, %arg4: memref<512x3xf32, #tpu.memory_space<vmem>>) attributes {dimension_semantics = [#tpu.dimension_semantics<parallel>], iteration_bounds = array<i64: 1>, scalar_prefetch = 0 : i64, scratch_operands = 0 : i64, tpu.core_type = #tpu.core_type<tc>, window_params = [{transform_indices = @transform_0, window_bounds = array<i64: 512, 32>}, {pipeline_mode = #tpu.pipeline_mode<synchronous>, transform_indices = @transform_1, window_bounds = array<i64: 32, 3>}, {pipeline_mode = #tpu.pipeline_mode<synchronous>, transform_indices = @transform_2, window_bounds = array<i64: 1, 3>}, {transform_indices = @transform_3, window_bounds = array<i64: 512, 3>}]} {
    %c0 = arith.constant 0 : index
    %c0_0 = arith.constant 0 : index
    %0 = vector.load %arg1[%c0, %c0_0] : memref<512x32xbf16, #tpu.memory_space<vmem>>, vector<512x32xbf16>
    %c0_1 = arith.constant 0 : index
    %c0_2 = arith.constant 0 : index
    %1 = vector.load %arg2[%c0_1, %c0_2] : memref<32x3xbf16, #tpu.memory_space<vmem>>, vector<32x3xbf16>
    %cst = arith.constant dense<0.000000e+00> : vector<512x3xf32>
    %2 = tpu.matmul %0, %1, %cst {dimension_numbers = #tpu.dot_dimension_numbers<[1], [0], [0], [1], [0, 0, 1, 1], [], []>} : vector<512x32xbf16>, vector<32x3xbf16>, vector<512x3xf32> -> vector<512x3xf32>
    %c0_3 = arith.constant 0 : index
    %c0_4 = arith.constant 0 : index
    %3 = vector.load %arg3[%c0_3, %c0_4] : memref<1x3xf32, #tpu.memory_space<vmem>>, vector<1x3xf32>
    %4 = vector.broadcast %3 : vector<1x3xf32> to vector<512x3xf32>
    %5 = arith.addf %2, %4 : vector<512x3xf32>
    %c0_5 = arith.constant 0 : index
    %c0_6 = arith.constant 0 : index
    %6 = vector.load %arg4[%c0_5, %c0_6] : memref<512x3xf32, #tpu.memory_space<vmem>>, vector<512x3xf32>
    tpu.vector_store %arg4[%c0_5, %c0_6], %5 {strides = array<i32>} : memref<512x3xf32, #tpu.memory_space<vmem>>, vector<512x3xf32>,
    return
  }
  func.func @transform_0(%arg0: i32) -> (i32, i32) {
    %c0_i32 = arith.constant 0 : i32
    %c0_i32_0 = arith.constant 0 : i32
    return %arg0, %c0_i32 : i32, i32
  }
  func.func @transform_1(%arg0: i32) -> (i32, i32) {
    %c0_i32 = arith.constant 0 : i32
    %c0_i32_0 = arith.constant 0 : i32
    %c0_i32_1 = arith.constant 0 : i32
    return %c0_i32, %c0_i32_0 : i32, i32
  }
  func.func @transform_2(%arg0: i32) -> (i32, i32) {
    %c0_i32 = arith.constant 0 : i32
    %c0_i32_0 = arith.constant 0 : i32
    %c0_i32_1 = arith.constant 0 : i32
    return %c0_i32, %c0_i32_0 : i32, i32
  }
  func.func @transform_3(%arg0: i32) -> (i32, i32) {
    %c0_i32 = arith.constant 0 : i32
    %c0_i32_0 = arith.constant 0 : i32
    return %arg0, %c0_i32 : i32, i32
  }
}

</mosaic_0001>

<llo_original>
// kernel: e4e_initialized_forward.11
$region0: #{e4e_initialized_forward.11}
  #allocation0 [shape = 'u32[]', space=smem, size = 0x4, offset = 0x4, fixed_abs, tag = 'smem constant byte address 0x4 - core index']
  #allocation1 [shape = 'u32[72,128]{1,0:T(1,128)}', space=vmem, size = 0x9000, scoped, tag = 'internal scratch']
  %s0 = inlined_call_operand.vmem [shape: bf16[512,27], index: 0, kind: input, shape index: {}]
  %s1 = inlined_call_operand.vmem [shape: bf16[27,16], index: 1, kind: input, shape index: {}]
  %s2 = inlined_call_operand.vmem [shape: f32[1,16], index: 2, kind: input, shape index: {}]
  %s3 = inlined_call_operand.vmem [shape: f32[512,16], index: 3, kind: output, shape index: {}]
  %s4 = sld [smem:[#allocation0]]
  $region22: #{e4e_initialized_forward.11} parent=0
    _
  %s6 = ssub.s32 1, %s4
  %s7 = scalar_select 0, %s6, %s4
  // Predicated region
  $region2: #{e4e_initialized_forward.11} parent=0 // pred_check
    _
  $region3: #{e4e_initialized_forward.11} parent=0 // pred_check_branch
    %9 = sbr.rel (0) target = $region5
  $region4: #{e4e_initialized_forward.11} parent=0 // pred_region
    _
  $region5: #{e4e_initialized_forward.11} parent=0 // pred_fallthru
    _
  // Predicated region
  $region6: #{e4e_initialized_forward.11} parent=0 // pred_check
    _
  $region7: #{e4e_initialized_forward.11} parent=0 // pred_check_branch
    %11 = sbr.rel (0) target = $region9
  $region8: #{e4e_initialized_forward.11} parent=0 // pred_region
    _
  $region9: #{e4e_initialized_forward.11} parent=0 // pred_fallthru
    _
  // Predicated region
  $region10: #{e4e_initialized_forward.11} parent=0 // pred_check
    _
  $region11: #{e4e_initialized_forward.11} parent=0 // pred_check_branch
    %13 = sbr.rel (0) target = $region13
  $region12: #{e4e_initialized_forward.11} parent=0 // pred_region
    _
  $region13: #{e4e_initialized_forward.11} parent=0 // pred_fallthru
    _
  %v15 = vld [vmem:[%s0] sm:$0xf]
  %v16 = vld [vmem:[%s0 + $0x4] sm:$0xf]
  %v17 = vld [vmem:[%s0 + $0x8] sm:$0xf]
  %v18 = vld [vmem:[%s0 + $0xc] sm:$0xf]
  %v19 = vld [vmem:[%s0 + $0x10] sm:$0xf]
  %v20 = vld [vmem:[%s0 + $0x14] sm:$0xf]
  %v21 = vld [vmem:[%s0 + $0x18] sm:$0xf]
  %v22 = vld [vmem:[%s0 + $0x1c] sm:$0xf]
  %v23 = vld [vmem:[%s0 + $0x20] sm:$0xf]
  %v24 = vld [vmem:[%s0 + $0x24] sm:$0xf]
  %v25 = vld [vmem:[%s0 + $0x28] sm:$0xf]
  %v26 = vld [vmem:[%s0 + $0x2c] sm:$0xf]
  %v27 = vld [vmem:[%s0 + $0x30] sm:$0xf]
  %v28 = vld [vmem:[%s0 + $0x34] sm:$0xf]
  %v29 = vld [vmem:[%s0 + $0x38] sm:$0xf]
  %v30 = vld [vmem:[%s0 + $0x3c] sm:$0xf]
  %v31 = vld [vmem:[%s0 + $0x40] sm:$0xf]
  %v32 = vld [vmem:[%s0 + $0x44] sm:$0xf]
  %v33 = vld [vmem:[%s0 + $0x48] sm:$0xf]
  %v34 = vld [vmem:[%s0 + $0x4c] sm:$0xf]
  %v35 = vld [vmem:[%s0 + $0x50] sm:$0xf]
  %v36 = vld [vmem:[%s0 + $0x54] sm:$0xf]
  %v37 = vld [vmem:[%s0 + $0x58] sm:$0xf]
  %v38 = vld [vmem:[%s0 + $0x5c] sm:$0xf]
  %v39 = vld [vmem:[%s0 + $0x60] sm:$0xf]
  %v40 = vld [vmem:[%s0 + $0x64] sm:$0xf]
  %v41 = vld [vmem:[%s0 + $0x68] sm:$0xf]
  %v42 = vld [vmem:[%s0 + $0x6c] sm:$0xf]
  %v43 = vld [vmem:[%s0 + $0x70] sm:$0xf]
  %v44 = vld [vmem:[%s0 + $0x74] sm:$0xf]
  %v45 = vld [vmem:[%s0 + $0x78] sm:$0xf]
  %v46 = vld [vmem:[%s0 + $0x7c] sm:$0xf]
  %v47 = vld [vmem:[%s0 + $0x80] sm:$0xf]
  %v48 = vld [vmem:[%s0 + $0x84] sm:$0xf]
  %v49 = vld [vmem:[%s0 + $0x88] sm:$0xf]
  %v50 = vld [vmem:[%s0 + $0x8c] sm:$0xf]
  %v51 = vld [vmem:[%s0 + $0x90] sm:$0xf]
  %v52 = vld [vmem:[%s0 + $0x94] sm:$0xf]
  %v53 = vld [vmem:[%s0 + $0x98] sm:$0xf]
  %v54 = vld [vmem:[%s0 + $0x9c] sm:$0xf]
  %v55 = vld [vmem:[%s0 + $0xa0] sm:$0xf]
  %v56 = vld [vmem:[%s0 + $0xa4] sm:$0xf]
  %v57 = vld [vmem:[%s0 + $0xa8] sm:$0xf]
  %v58 = vld [vmem:[%s0 + $0xac] sm:$0xf]
  %v59 = vld [vmem:[%s0 + $0xb0] sm:$0xf]
  %v60 = vld [vmem:[%s0 + $0xb4] sm:$0xf]
  %v61 = vld [vmem:[%s0 + $0xb8] sm:$0xf]
  %v62 = vld [vmem:[%s0 + $0xbc] sm:$0xf]
  %v63 = vld [vmem:[%s0 + $0xc0] sm:$0xf]
  %v64 = vld [vmem:[%s0 + $0xc4] sm:$0xf]
  %v65 = vld [vmem:[%s0 + $0xc8] sm:$0xf]
  %v66 = vld [vmem:[%s0 + $0xcc] sm:$0xf]
  %v67 = vld [vmem:[%s0 + $0xd0] sm:$0xf]
  %v68 = vld [vmem:[%s0 + $0xd4] sm:$0xf]
  %v69 = vld [vmem:[%s0 + $0xd8] sm:$0xf]
  %v70 = vld [vmem:[%s0 + $0xdc] sm:$0xf]
  %v71 = vld [vmem:[%s0 + $0xe0] sm:$0xf]
  %v72 = vld [vmem:[%s0 + $0xe4] sm:$0xf]
  %v73 = vld [vmem:[%s0 + $0xe8] sm:$0xf]
  %v74 = vld [vmem:[%s0 + $0xec] sm:$0xf]
  %v75 = vld [vmem:[%s0 + $0xf0] sm:$0xf]
  %v76 = vld [vmem:[%s0 + $0xf4] sm:$0xf]
  %v77 = vld [vmem:[%s0 + $0xf8] sm:$0xf]
  %v78 = vld [vmem:[%s0 + $0xfc] sm:$0xf]
  %v79 = vld [vmem:[%s1] sm:$0xf]
  %v80 = vld [vmem:[%s1 + $0x4] sm:$0xf]
  %v81 = vld [vmem:[%s1 + $0x8] sm:$0xf]
  %v82 = vld [vmem:[%s1 + $0xc] sm:$0x3]
  %v83 = vld [vmem:[%s2] sm:$0x1]
  %v85 = vperm.slane %v83, 0
  %v151 = vunpack.c.l.b16 %v15
  %v152 = vunpack.c.l.b16 %v16
  %v153 = vunpack.c.l.b16 %v17
  %v154 = vunpack.c.l.b16 %v18
  %v155 = vunpack.c.l.b16 %v19
  %v156 = vunpack.c.l.b16 %v20
  %v157 = vunpack.c.l.b16 %v21
  %v158 = vunpack.c.l.b16 %v22
  %v159 = vunpack.c.l.b16 %v23
  %v160 = vunpack.c.l.b16 %v24
  %v161 = vunpack.c.l.b16 %v25
  %v162 = vunpack.c.l.b16 %v26
  %v163 = vunpack.c.l.b16 %v27
  %v164 = vunpack.c.l.b16 %v28
  %v165 = vunpack.c.l.b16 %v29
  %v166 = vunpack.c.l.b16 %v30
  %v167 = vunpack.c.l.b16 %v31
  %v168 = vunpack.c.l.b16 %v32
  %v169 = vunpack.c.l.b16 %v33
  %v170 = vunpack.c.l.b16 %v34
  %v171 = vunpack.c.l.b16 %v35
  %v172 = vunpack.c.l.b16 %v36
  %v173 = vunpack.c.l.b16 %v37
  %v174 = vunpack.c.l.b16 %v38
  %v175 = vunpack.c.l.b16 %v39
  %v176 = vunpack.c.l.b16 %v40
  %v177 = vunpack.c.l.b16 %v41
  %v178 = vunpack.c.l.b16 %v42
  %v179 = vunpack.c.l.b16 %v43
  %v180 = vunpack.c.l.b16 %v44
  %v181 = vunpack.c.l.b16 %v45
  %v182 = vunpack.c.l.b16 %v46
  %v183 = vunpack.c.l.b16 %v47
  %v184 = vunpack.c.l.b16 %v48
  %v185 = vunpack.c.l.b16 %v49
  %v186 = vunpack.c.l.b16 %v50
  %v187 = vunpack.c.l.b16 %v51
  %v188 = vunpack.c.l.b16 %v52
  %v189 = vunpack.c.l.b16 %v53
  %v190 = vunpack.c.l.b16 %v54
  %v191 = vunpack.c.l.b16 %v55
  %v192 = vunpack.c.l.b16 %v56
  %v193 = vunpack.c.l.b16 %v57
  %v194 = vunpack.c.l.b16 %v58
  %v195 = vunpack.c.l.b16 %v59
  %v196 = vunpack.c.l.b16 %v60
  %v197 = vunpack.c.l.b16 %v61
  %v198 = vunpack.c.l.b16 %v62
  %v199 = vunpack.c.l.b16 %v63
  %v200 = vunpack.c.l.b16 %v64
  %v201 = vunpack.c.l.b16 %v65
  %v202 = vunpack.c.l.b16 %v66
  %v203 = vunpack.c.l.b16 %v67
  %v204 = vunpack.c.l.b16 %v68
  %v205 = vunpack.c.l.b16 %v69
  %v206 = vunpack.c.l.b16 %v70
  %v207 = vunpack.c.l.b16 %v71
  %v208 = vunpack.c.l.b16 %v72
  %v209 = vunpack.c.l.b16 %v73
  %v210 = vunpack.c.l.b16 %v74
  %v211 = vunpack.c.l.b16 %v75
  %v212 = vunpack.c.l.b16 %v76
  %v213 = vunpack.c.l.b16 %v77
  %v214 = vunpack.c.l.b16 %v78
  %v215 = vpack.c.b16 %v152, %v151
  %v216 = vpack.c.b16 %v154, %v153
  %v217 = vpack.c.b16 %v156, %v155
  %v218 = vpack.c.b16 %v158, %v157
  %v219 = vpack.c.b16 %v160, %v159
  %v220 = vpack.c.b16 %v162, %v161
  %v221 = vpack.c.b16 %v164, %v163
  %v222 = vpack.c.b16 %v166, %v165
  %v223 = vpack.c.b16 %v168, %v167
  %v224 = vpack.c.b16 %v170, %v169
  %v225 = vpack.c.b16 %v172, %v171
  %v226 = vpack.c.b16 %v174, %v173
  %v227 = vpack.c.b16 %v176, %v175
  %v228 = vpack.c.b16 %v178, %v177
  %v229 = vpack.c.b16 %v180, %v179
  %v230 = vpack.c.b16 %v182, %v181
  %v231 = vpack.c.b16 %v184, %v183
  %v232 = vpack.c.b16 %v186, %v185
  %v233 = vpack.c.b16 %v188, %v187
  %v234 = vpack.c.b16 %v190, %v189
  %v235 = vpack.c.b16 %v192, %v191
  %v236 = vpack.c.b16 %v194, %v193
  %v237 = vpack.c.b16 %v196, %v195
  %v238 = vpack.c.b16 %v198, %v197
  %v239 = vpack.c.b16 %v200, %v199
  %v240 = vpack.c.b16 %v202, %v201
  %v241 = vpack.c.b16 %v204, %v203
  %v242 = vpack.c.b16 %v206, %v205
  %v243 = vpack.c.b16 %v208, %v207
  %v244 = vpack.c.b16 %v210, %v209
  %v245 = vpack.c.b16 %v212, %v211
  %v246 = vpack.c.b16 %v214, %v213
  %v251 = vunpack.c.l.b16 %v79
  %v252 = vunpack.c.l.b16 %v80
  %v253 = vunpack.c.l.b16 %v81
  %v254 = vunpack.c.l.b16 %v82
  %v255 = vpack.c.b16 %v252, %v251
  %v256 = vpack.c.b16 %v254, %v253
  %vm258 = vcmask 220160
  %v260 = vsel %vm258, %v215, 0
  %v263 = vsel %vm258, %v216, 0
  %v266 = vsel %vm258, %v217, 0
  %v269 = vsel %vm258, %v218, 0
  %v272 = vsel %vm258, %v219, 0
  %v275 = vsel %vm258, %v220, 0
  %v278 = vsel %vm258, %v221, 0
  %v281 = vsel %vm258, %v222, 0
  %v284 = vsel %vm258, %v223, 0
  %v287 = vsel %vm258, %v224, 0
  %v290 = vsel %vm258, %v225, 0
  %v293 = vsel %vm258, %v226, 0
  %v296 = vsel %vm258, %v227, 0
  %v299 = vsel %vm258, %v228, 0
  %v302 = vsel %vm258, %v229, 0
  %v305 = vsel %vm258, %v230, 0
  %v308 = vsel %vm258, %v231, 0
  %v311 = vsel %vm258, %v232, 0
  %v314 = vsel %vm258, %v233, 0
  %v317 = vsel %vm258, %v234, 0
  %v320 = vsel %vm258, %v235, 0
  %v323 = vsel %vm258, %v236, 0
  %v326 = vsel %vm258, %v237, 0
  %v329 = vsel %vm258, %v238, 0
  %v332 = vsel %vm258, %v239, 0
  %v335 = vsel %vm258, %v240, 0
  %v338 = vsel %vm258, %v241, 0
  %v341 = vsel %vm258, %v242, 0
  %v344 = vsel %vm258, %v243, 0
  %v347 = vsel %vm258, %v244, 0
  %v350 = vsel %vm258, %v245, 0
  %v353 = vsel %vm258, %v246, 0
  %vm355 = vcmask 1044480
  %vm356 = vcmask 1045504
  %v357 = vsel %vm355, 4294967295, 65535
  %v358 = vsel %vm356, %v357, 0
  %v360 = vand.u32 %v256, %v358
  %362 = vmatpush.bf16.msra.mxu0 0
  %363 = vmatpush.bf16.msra.mxu0 0
  %364 = vmatpush.bf16.msra.mxu0 0
  %365 = vmatpush.bf16.msra.mxu0 0
  %366 = vmatpush.bf16.msra.mxu0 0
  %367 = vmatpush.bf16.msra.mxu0 0
  %368 = vmatpush.bf16.msra.mxu0 %v360
  %369 = vmatpush.bf16.msra.mxu0 %v255
  %370 = vmatmul.bf16.gmra.mxu0 %v260
  %v371 = vpop.f32.mrf.mxu0
  %v372 = vadd.f32 %v85, %v371
  %v373 = vpop.f32.mrf.mxu0
  %v374 = vadd.f32 %v85, %v373
  %375 = vmatmul.bf16.gmra.mxu0 %v263
  %v376 = vpop.f32.mrf.mxu0
  %v377 = vadd.f32 %v85, %v376
  %v378 = vpop.f32.mrf.mxu0
  %v379 = vadd.f32 %v85, %v378
  %380 = vmatmul.bf16.gmra.mxu0 %v266
  %v381 = vpop.f32.mrf.mxu0
  %v382 = vadd.f32 %v85, %v381
  %v383 = vpop.f32.mrf.mxu0
  %v384 = vadd.f32 %v85, %v383
  %385 = vmatmul.bf16.gmra.mxu0 %v269
  %v386 = vpop.f32.mrf.mxu0
  %v387 = vadd.f32 %v85, %v386
  %v388 = vpop.f32.mrf.mxu0
  %v389 = vadd.f32 %v85, %v388
  %390 = vmatmul.bf16.gmra.mxu0 %v272
  %v391 = vpop.f32.mrf.mxu0
  %v392 = vadd.f32 %v85, %v391
  %v393 = vpop.f32.mrf.mxu0
  %v394 = vadd.f32 %v85, %v393
  %395 = vmatmul.bf16.gmra.mxu0 %v275
  %v396 = vpop.f32.mrf.mxu0
  %v397 = vadd.f32 %v85, %v396
  %v398 = vpop.f32.mrf.mxu0
  %v399 = vadd.f32 %v85, %v398
  %400 = vmatmul.bf16.gmra.mxu0 %v278
  %v401 = vpop.f32.mrf.mxu0
  %v402 = vadd.f32 %v85, %v401
  %v403 = vpop.f32.mrf.mxu0
  %v404 = vadd.f32 %v85, %v403
  %405 = vmatmul.bf16.gmra.mxu0 %v281
  %v406 = vpop.f32.mrf.mxu0
  %v407 = vadd.f32 %v85, %v406
  %v408 = vpop.f32.mrf.mxu0
  %v409 = vadd.f32 %v85, %v408
  %410 = vmatmul.bf16.gmra.mxu0 %v284
  %v411 = vpop.f32.mrf.mxu0
  %v412 = vadd.f32 %v85, %v411
  %v413 = vpop.f32.mrf.mxu0
  %v414 = vadd.f32 %v85, %v413
  %415 = vmatmul.bf16.gmra.mxu0 %v287
  %v416 = vpop.f32.mrf.mxu0
  %v417 = vadd.f32 %v85, %v416
  %v418 = vpop.f32.mrf.mxu0
  %v419 = vadd.f32 %v85, %v418
  %420 = vmatmul.bf16.gmra.mxu0 %v290
  %v421 = vpop.f32.mrf.mxu0
  %v422 = vadd.f32 %v85, %v421
  %v423 = vpop.f32.mrf.mxu0
  %v424 = vadd.f32 %v85, %v423
  %425 = vmatmul.bf16.gmra.mxu0 %v293
  %v426 = vpop.f32.mrf.mxu0
  %v427 = vadd.f32 %v85, %v426
  %v428 = vpop.f32.mrf.mxu0
  %v429 = vadd.f32 %v85, %v428
  %430 = vmatmul.bf16.gmra.mxu0 %v296
  %v431 = vpop.f32.mrf.mxu0
  %v432 = vadd.f32 %v85, %v431
  %v433 = vpop.f32.mrf.mxu0
  %v434 = vadd.f32 %v85, %v433
  %435 = vmatmul.bf16.gmra.mxu0 %v299
  %v436 = vpop.f32.mrf.mxu0
  %v437 = vadd.f32 %v85, %v436
  %v438 = vpop.f32.mrf.mxu0
  %v439 = vadd.f32 %v85, %v438
  %440 = vmatmul.bf16.gmra.mxu0 %v302
  %v441 = vpop.f32.mrf.mxu0
  %v442 = vadd.f32 %v85, %v441
  %v443 = vpop.f32.mrf.mxu0
  %v444 = vadd.f32 %v85, %v443
  %445 = vmatmul.bf16.gmra.mxu0 %v305
  %v446 = vpop.f32.mrf.mxu0
  %v447 = vadd.f32 %v85, %v446
  %v448 = vpop.f32.mrf.mxu0
  %v449 = vadd.f32 %v85, %v448
  %450 = vmatmul.bf16.gmra.mxu0 %v308
  %v451 = vpop.f32.mrf.mxu0
  %v452 = vadd.f32 %v85, %v451
  %v453 = vpop.f32.mrf.mxu0
  %v454 = vadd.f32 %v85, %v453
  %455 = vmatmul.bf16.gmra.mxu0 %v311
  %v456 = vpop.f32.mrf.mxu0
  %v457 = vadd.f32 %v85, %v456
  %v458 = vpop.f32.mrf.mxu0
  %v459 = vadd.f32 %v85, %v458
  %460 = vmatmul.bf16.gmra.mxu0 %v314
  %v461 = vpop.f32.mrf.mxu0
  %v462 = vadd.f32 %v85, %v461
  %v463 = vpop.f32.mrf.mxu0
  %v464 = vadd.f32 %v85, %v463
  %465 = vmatmul.bf16.gmra.mxu0 %v317
  %v466 = vpop.f32.mrf.mxu0
  %v467 = vadd.f32 %v85, %v466
  %v468 = vpop.f32.mrf.mxu0
  %v469 = vadd.f32 %v85, %v468
  %470 = vmatmul.bf16.gmra.mxu0 %v320
  %v471 = vpop.f32.mrf.mxu0
  %v472 = vadd.f32 %v85, %v471
  %v473 = vpop.f32.mrf.mxu0
  %v474 = vadd.f32 %v85, %v473
  %475 = vmatmul.bf16.gmra.mxu0 %v323
  %v476 = vpop.f32.mrf.mxu0
  %v477 = vadd.f32 %v85, %v476
  %v478 = vpop.f32.mrf.mxu0
  %v479 = vadd.f32 %v85, %v478
  %480 = vmatmul.bf16.gmra.mxu0 %v326
  %v481 = vpop.f32.mrf.mxu0
  %v482 = vadd.f32 %v85, %v481
  %v483 = vpop.f32.mrf.mxu0
  %v484 = vadd.f32 %v85, %v483
  %485 = vmatmul.bf16.gmra.mxu0 %v329
  %v486 = vpop.f32.mrf.mxu0
  %v487 = vadd.f32 %v85, %v486
  %v488 = vpop.f32.mrf.mxu0
  %v489 = vadd.f32 %v85, %v488
  %490 = vmatmul.bf16.gmra.mxu0 %v332
  %v491 = vpop.f32.mrf.mxu0
  %v492 = vadd.f32 %v85, %v491
  %v493 = vpop.f32.mrf.mxu0
  %v494 = vadd.f32 %v85, %v493
  %495 = vmatmul.bf16.gmra.mxu0 %v335
  %v496 = vpop.f32.mrf.mxu0
  %v497 = vadd.f32 %v85, %v496
  %v498 = vpop.f32.mrf.mxu0
  %v499 = vadd.f32 %v85, %v498
  %500 = vmatmul.bf16.gmra.mxu0 %v338
  %v501 = vpop.f32.mrf.mxu0
  %v502 = vadd.f32 %v85, %v501
  %v503 = vpop.f32.mrf.mxu0
  %v504 = vadd.f32 %v85, %v503
  %505 = vmatmul.bf16.gmra.mxu0 %v341
  %v506 = vpop.f32.mrf.mxu0
  %v507 = vadd.f32 %v85, %v506
  %v508 = vpop.f32.mrf.mxu0
  %v509 = vadd.f32 %v85, %v508
  %510 = vmatmul.bf16.gmra.mxu0 %v344
  %v511 = vpop.f32.mrf.mxu0
  %v512 = vadd.f32 %v85, %v511
  %v513 = vpop.f32.mrf.mxu0
  %v514 = vadd.f32 %v85, %v513
  %515 = vmatmul.bf16.gmra.mxu0 %v347
  %v516 = vpop.f32.mrf.mxu0
  %v517 = vadd.f32 %v85, %v516
  %v518 = vpop.f32.mrf.mxu0
  %v519 = vadd.f32 %v85, %v518
  %520 = vmatmul.bf16.gmra.mxu0 %v350
  %v521 = vpop.f32.mrf.mxu0
  %v522 = vadd.f32 %v85, %v521
  %v523 = vpop.f32.mrf.mxu0
  %v524 = vadd.f32 %v85, %v523
  %525 = vmatmul.bf16.gmra.mxu0 %v353
  %v526 = vpop.f32.mrf.mxu0
  %v527 = vadd.f32 %v85, %v526
  %v528 = vpop.f32.mrf.mxu0
  %v529 = vadd.f32 %v85, %v528
  %530 = vdwg.mxu0
  %vm531 = vcmp.gt.f32.partialorder %v372, 0.0
  %vm532 = vcmp.gt.f32.partialorder %v374, 0.0
  %vm533 = vcmp.gt.f32.partialorder %v377, 0.0
  %vm534 = vcmp.gt.f32.partialorder %v379, 0.0
  %vm535 = vcmp.gt.f32.partialorder %v382, 0.0
  %vm536 = vcmp.gt.f32.partialorder %v384, 0.0
  %vm537 = vcmp.gt.f32.partialorder %v387, 0.0
  %vm538 = vcmp.gt.f32.partialorder %v389, 0.0
  %vm539 = vcmp.gt.f32.partialorder %v392, 0.0
  %vm540 = vcmp.gt.f32.partialorder %v394, 0.0
  %vm541 = vcmp.gt.f32.partialorder %v397, 0.0
  %vm542 = vcmp.gt.f32.partialorder %v399, 0.0
  %vm543 = vcmp.gt.f32.partialorder %v402, 0.0
  %vm544 = vcmp.gt.f32.partialorder %v404, 0.0
  %vm545 = vcmp.gt.f32.partialorder %v407, 0.0
  %vm546 = vcmp.gt.f32.partialorder %v409, 0.0
  %vm547 = vcmp.gt.f32.partialorder %v412, 0.0
  %vm548 = vcmp.gt.f32.partialorder %v414, 0.0
  %vm549 = vcmp.gt.f32.partialorder %v417, 0.0
  %vm550 = vcmp.gt.f32.partialorder %v419, 0.0
  %vm551 = vcmp.gt.f32.partialorder %v422, 0.0
  %vm552 = vcmp.gt.f32.partialorder %v424, 0.0
  %vm553 = vcmp.gt.f32.partialorder %v427, 0.0
  %vm554 = vcmp.gt.f32.partialorder %v429, 0.0
  %vm555 = vcmp.gt.f32.partialorder %v432, 0.0
  %vm556 = vcmp.gt.f32.partialorder %v434, 0.0
  %vm557 = vcmp.gt.f32.partialorder %v437, 0.0
  %vm558 = vcmp.gt.f32.partialorder %v439, 0.0
  %vm559 = vcmp.gt.f32.partialorder %v442, 0.0
  %vm560 = vcmp.gt.f32.partialorder %v444, 0.0
  %vm561 = vcmp.gt.f32.partialorder %v447, 0.0
  %vm562 = vcmp.gt.f32.partialorder %v449, 0.0
  %vm563 = vcmp.gt.f32.partialorder %v452, 0.0
  %vm564 = vcmp.gt.f32.partialorder %v454, 0.0
  %vm565 = vcmp.gt.f32.partialorder %v457, 0.0
  %vm566 = vcmp.gt.f32.partialorder %v459, 0.0
  %vm567 = vcmp.gt.f32.partialorder %v462, 0.0
  %vm568 = vcmp.gt.f32.partialorder %v464, 0.0
  %vm569 = vcmp.gt.f32.partialorder %v467, 0.0
  %vm570 = vcmp.gt.f32.partialorder %v469, 0.0
  %vm571 = vcmp.gt.f32.partialorder %v472, 0.0
  %vm572 = vcmp.gt.f32.partialorder %v474, 0.0
  %vm573 = vcmp.gt.f32.partialorder %v477, 0.0
  %vm574 = vcmp.gt.f32.partialorder %v479, 0.0
  %vm575 = vcmp.gt.f32.partialorder %v482, 0.0
  %vm576 = vcmp.gt.f32.partialorder %v484, 0.0
  %vm577 = vcmp.gt.f32.partialorder %v487, 0.0
  %vm578 = vcmp.gt.f32.partialorder %v489, 0.0
  %vm579 = vcmp.gt.f32.partialorder %v492, 0.0
  %vm580 = vcmp.gt.f32.partialorder %v494, 0.0
  %vm581 = vcmp.gt.f32.partialorder %v497, 0.0
  %vm582 = vcmp.gt.f32.partialorder %v499, 0.0
  %vm583 = vcmp.gt.f32.partialorder %v502, 0.0
  %vm584 = vcmp.gt.f32.partialorder %v504, 0.0
  %vm585 = vcmp.gt.f32.partialorder %v507, 0.0
  %vm586 = vcmp.gt.f32.partialorder %v509, 0.0
  %vm587 = vcmp.gt.f32.partialorder %v512, 0.0
  %vm588 = vcmp.gt.f32.partialorder %v514, 0.0
  %vm589 = vcmp.gt.f32.partialorder %v517, 0.0
  %vm590 = vcmp.gt.f32.partialorder %v519, 0.0
  %vm591 = vcmp.gt.f32.partialorder %v522, 0.0
  %vm592 = vcmp.gt.f32.partialorder %v524, 0.0
  %vm593 = vcmp.gt.f32.partialorder %v527, 0.0
  %vm594 = vcmp.gt.f32.partialorder %v529, 0.0
  %v595 = vmul.f32 %v372, 0.2
  %v596 = vmul.f32 %v374, 0.2
  %v597 = vmul.f32 %v377, 0.2
  %v598 = vmul.f32 %v379, 0.2
  %v599 = vmul.f32 %v382, 0.2
  %v600 = vmul.f32 %v384, 0.2
  %v601 = vmul.f32 %v387, 0.2
  %v602 = vmul.f32 %v389, 0.2
  %v603 = vmul.f32 %v392, 0.2
  %v604 = vmul.f32 %v394, 0.2
  %v605 = vmul.f32 %v397, 0.2
  %v606 = vmul.f32 %v399, 0.2
  %v607 = vmul.f32 %v402, 0.2
  %v608 = vmul.f32 %v404, 0.2
  %v609 = vmul.f32 %v407, 0.2
  %v610 = vmul.f32 %v409, 0.2
  %v611 = vmul.f32 %v412, 0.2
  %v612 = vmul.f32 %v414, 0.2
  %v613 = vmul.f32 %v417, 0.2
  %v614 = vmul.f32 %v419, 0.2
  %v615 = vmul.f32 %v422, 0.2
  %v616 = vmul.f32 %v424, 0.2
  %v617 = vmul.f32 %v427, 0.2
  %v618 = vmul.f32 %v429, 0.2
  %v619 = vmul.f32 %v432, 0.2
  %v620 = vmul.f32 %v434, 0.2
  %v621 = vmul.f32 %v437, 0.2
  %v622 = vmul.f32 %v439, 0.2
  %v623 = vmul.f32 %v442, 0.2
  %v624 = vmul.f32 %v444, 0.2
  %v625 = vmul.f32 %v447, 0.2
  %v626 = vmul.f32 %v449, 0.2
  %v627 = vmul.f32 %v452, 0.2
  %v628 = vmul.f32 %v454, 0.2
  %v629 = vmul.f32 %v457, 0.2
  %v630 = vmul.f32 %v459, 0.2
  %v631 = vmul.f32 %v462, 0.2
  %v632 = vmul.f32 %v464, 0.2
  %v633 = vmul.f32 %v467, 0.2
  %v634 = vmul.f32 %v469, 0.2
  %v635 = vmul.f32 %v472, 0.2
  %v636 = vmul.f32 %v474, 0.2
  %v637 = vmul.f32 %v477, 0.2
  %v638 = vmul.f32 %v479, 0.2
  %v639 = vmul.f32 %v482, 0.2
  %v640 = vmul.f32 %v484, 0.2
  %v641 = vmul.f32 %v487, 0.2
  %v642 = vmul.f32 %v489, 0.2
  %v643 = vmul.f32 %v492, 0.2
  %v644 = vmul.f32 %v494, 0.2
  %v645 = vmul.f32 %v497, 0.2
  %v646 = vmul.f32 %v499, 0.2
  %v647 = vmul.f32 %v502, 0.2
  %v648 = vmul.f32 %v504, 0.2
  %v649 = vmul.f32 %v507, 0.2
  %v650 = vmul.f32 %v509, 0.2
  %v651 = vmul.f32 %v512, 0.2
  %v652 = vmul.f32 %v514, 0.2
  %v653 = vmul.f32 %v517, 0.2
  %v654 = vmul.f32 %v519, 0.2
  %v655 = vmul.f32 %v522, 0.2
  %v656 = vmul.f32 %v524, 0.2
  %v657 = vmul.f32 %v527, 0.2
  %v658 = vmul.f32 %v529, 0.2
  %v659 = vsel %vm531, %v372, %v595
  %v660 = vsel %vm532, %v374, %v596
  %v661 = vsel %vm533, %v377, %v597
  %v662 = vsel %vm534, %v379, %v598
  %v663 = vsel %vm535, %v382, %v599
  %v664 = vsel %vm536, %v384, %v600
  %v665 = vsel %vm537, %v387, %v601
  %v666 = vsel %vm538, %v389, %v602
  %v667 = vsel %vm539, %v392, %v603
  %v668 = vsel %vm540, %v394, %v604
  %v669 = vsel %vm541, %v397, %v605
  %v670 = vsel %vm542, %v399, %v606
  %v671 = vsel %vm543, %v402, %v607
  %v672 = vsel %vm544, %v404, %v608
  %v673 = vsel %vm545, %v407, %v609
  %v674 = vsel %vm546, %v409, %v610
  %v675 = vsel %vm547, %v412, %v611
  %v676 = vsel %vm548, %v414, %v612
  %v677 = vsel %vm549, %v417, %v613
  %v678 = vsel %vm550, %v419, %v614
  %v679 = vsel %vm551, %v422, %v615
  %v680 = vsel %vm552, %v424, %v616
  %v681 = vsel %vm553, %v427, %v617
  %v682 = vsel %vm554, %v429, %v618
  %v683 = vsel %vm555, %v432, %v619
  %v684 = vsel %vm556, %v434, %v620
  %v685 = vsel %vm557, %v437, %v621
  %v686 = vsel %vm558, %v439, %v622
  %v687 = vsel %vm559, %v442, %v623
  %v688 = vsel %vm560, %v444, %v624
  %v689 = vsel %vm561, %v447, %v625
  %v690 = vsel %vm562, %v449, %v626
  %v691 = vsel %vm563, %v452, %v627
  %v692 = vsel %vm564, %v454, %v628
  %v693 = vsel %vm565, %v457, %v629
  %v694 = vsel %vm566, %v459, %v630
  %v695 = vsel %vm567, %v462, %v631
  %v696 = vsel %vm568, %v464, %v632
  %v697 = vsel %vm569, %v467, %v633
  %v698 = vsel %vm570, %v469, %v634
  %v699 = vsel %vm571, %v472, %v635
  %v700 = vsel %vm572, %v474, %v636
  %v701 = vsel %vm573, %v477, %v637
  %v702 = vsel %vm574, %v479, %v638
  %v703 = vsel %vm575, %v482, %v639
  %v704 = vsel %vm576, %v484, %v640
  %v705 = vsel %vm577, %v487, %v641
  %v706 = vsel %vm578, %v489, %v642
  %v707 = vsel %vm579, %v492, %v643
  %v708 = vsel %vm580, %v494, %v644
  %v709 = vsel %vm581, %v497, %v645
  %v710 = vsel %vm582, %v499, %v646
  %v711 = vsel %vm583, %v502, %v647
  %v712 = vsel %vm584, %v504, %v648
  %v713 = vsel %vm585, %v507, %v649
  %v714 = vsel %vm586, %v509, %v650
  %v715 = vsel %vm587, %v512, %v651
  %v716 = vsel %vm588, %v514, %v652
  %v717 = vsel %vm589, %v517, %v653
  %v718 = vsel %vm590, %v519, %v654
  %v719 = vsel %vm591, %v522, %v655
  %v720 = vsel %vm592, %v524, %v656
  %v721 = vsel %vm593, %v527, %v657
  %v722 = vsel %vm594, %v529, %v658
  %vm723 = vcmask 130048
  %724 = vst.msk [vmem:[%s3] sm:$0xff] %vm723, %v659
  %725 = vst.msk [vmem:[%s3 + $0x8] sm:$0xff] %vm723, %v660
  %726 = vst.msk [vmem:[%s3 + $0x10] sm:$0xff] %vm723, %v661
  %727 = vst.msk [vmem:[%s3 + $0x18] sm:$0xff] %vm723, %v662
  %728 = vst.msk [vmem:[%s3 + $0x20] sm:$0xff] %vm723, %v663
  %729 = vst.msk [vmem:[%s3 + $0x28] sm:$0xff] %vm723, %v664
  %730 = vst.msk [vmem:[%s3 + $0x30] sm:$0xff] %vm723, %v665
  %731 = vst.msk [vmem:[%s3 + $0x38] sm:$0xff] %vm723, %v666
  %732 = vst.msk [vmem:[%s3 + $0x40] sm:$0xff] %vm723, %v667
  %733 = vst.msk [vmem:[%s3 + $0x48] sm:$0xff] %vm723, %v668
  %734 = vst.msk [vmem:[%s3 + $0x50] sm:$0xff] %vm723, %v669
  %735 = vst.msk [vmem:[%s3 + $0x58] sm:$0xff] %vm723, %v670
  %736 = vst.msk [vmem:[%s3 + $0x60] sm:$0xff] %vm723, %v671
  %737 = vst.msk [vmem:[%s3 + $0x68] sm:$0xff] %vm723, %v672
  %738 = vst.msk [vmem:[%s3 + $0x70] sm:$0xff] %vm723, %v673
  %739 = vst.msk [vmem:[%s3 + $0x78] sm:$0xff] %vm723, %v674
  %740 = vst.msk [vmem:[%s3 + $0x80] sm:$0xff] %vm723, %v675
  %741 = vst.msk [vmem:[%s3 + $0x88] sm:$0xff] %vm723, %v676
  %742 = vst.msk [vmem:[%s3 + $0x90] sm:$0xff] %vm723, %v677
  %743 = vst.msk [vmem:[%s3 + $0x98] sm:$0xff] %vm723, %v678
  %744 = vst.msk [vmem:[%s3 + $0xa0] sm:$0xff] %vm723, %v679
  %745 = vst.msk [vmem:[%s3 + $0xa8] sm:$0xff] %vm723, %v680
  %746 = vst.msk [vmem:[%s3 + $0xb0] sm:$0xff] %vm723, %v681
  %747 = vst.msk [vmem:[%s3 + $0xb8] sm:$0xff] %vm723, %v682
  %748 = vst.msk [vmem:[%s3 + $0xc0] sm:$0xff] %vm723, %v683
  %749 = vst.msk [vmem:[%s3 + $0xc8] sm:$0xff] %vm723, %v684
  %750 = vst.msk [vmem:[%s3 + $0xd0] sm:$0xff] %vm723, %v685
  %751 = vst.msk [vmem:[%s3 + $0xd8] sm:$0xff] %vm723, %v686
  %752 = vst.msk [vmem:[%s3 + $0xe0] sm:$0xff] %vm723, %v687
  %753 = vst.msk [vmem:[%s3 + $0xe8] sm:$0xff] %vm723, %v688
  %754 = vst.msk [vmem:[%s3 + $0xf0] sm:$0xff] %vm723, %v689
  %755 = vst.msk [vmem:[%s3 + $0xf8] sm:$0xff] %vm723, %v690
  %756 = vst.msk [vmem:[%s3 + $0x100] sm:$0xff] %vm723, %v691
  %757 = vst.msk [vmem:[%s3 + $0x108] sm:$0xff] %vm723, %v692
  %758 = vst.msk [vmem:[%s3 + $0x110] sm:$0xff] %vm723, %v693
  %759 = vst.msk [vmem:[%s3 + $0x118] sm:$0xff] %vm723, %v694
  %760 = vst.msk [vmem:[%s3 + $0x120] sm:$0xff] %vm723, %v695
  %761 = vst.msk [vmem:[%s3 + $0x128] sm:$0xff] %vm723, %v696
  %762 = vst.msk [vmem:[%s3 + $0x130] sm:$0xff] %vm723, %v697
  %763 = vst.msk [vmem:[%s3 + $0x138] sm:$0xff] %vm723, %v698
  %764 = vst.msk [vmem:[%s3 + $0x140] sm:$0xff] %vm723, %v699
  %765 = vst.msk [vmem:[%s3 + $0x148] sm:$0xff] %vm723, %v700
  %766 = vst.msk [vmem:[%s3 + $0x150] sm:$0xff] %vm723, %v701
  %767 = vst.msk [vmem:[%s3 + $0x158] sm:$0xff] %vm723, %v702
  %768 = vst.msk [vmem:[%s3 + $0x160] sm:$0xff] %vm723, %v703
  %769 = vst.msk [vmem:[%s3 + $0x168] sm:$0xff] %vm723, %v704
  %770 = vst.msk [vmem:[%s3 + $0x170] sm:$0xff] %vm723, %v705
  %771 = vst.msk [vmem:[%s3 + $0x178] sm:$0xff] %vm723, %v706
  %772 = vst.msk [vmem:[%s3 + $0x180] sm:$0xff] %vm723, %v707
  %773 = vst.msk [vmem:[%s3 + $0x188] sm:$0xff] %vm723, %v708
  %774 = vst.msk [vmem:[%s3 + $0x190] sm:$0xff] %vm723, %v709
  %775 = vst.msk [vmem:[%s3 + $0x198] sm:$0xff] %vm723, %v710
  %776 = vst.msk [vmem:[%s3 + $0x1a0] sm:$0xff] %vm723, %v711
  %777 = vst.msk [vmem:[%s3 + $0x1a8] sm:$0xff] %vm723, %v712
  %778 = vst.msk [vmem:[%s3 + $0x1b0] sm:$0xff] %vm723, %v713
  %779 = vst.msk [vmem:[%s3 + $0x1b8] sm:$0xff] %vm723, %v714
  %780 = vst.msk [vmem:[%s3 + $0x1c0] sm:$0xff] %vm723, %v715
  %781 = vst.msk [vmem:[%s3 + $0x1c8] sm:$0xff] %vm723, %v716
  %782 = vst.msk [vmem:[%s3 + $0x1d0] sm:$0xff] %vm723, %v717
  %783 = vst.msk [vmem:[%s3 + $0x1d8] sm:$0xff] %vm723, %v718
  %784 = vst.msk [vmem:[%s3 + $0x1e0] sm:$0xff] %vm723, %v719
  %785 = vst.msk [vmem:[%s3 + $0x1e8] sm:$0xff] %vm723, %v720
  %786 = vst.msk [vmem:[%s3 + $0x1f0] sm:$0xff] %vm723, %v721
  %787 = vst.msk [vmem:[%s3 + $0x1f8] sm:$0xff] %vm723, %v722
  // Predicated region
  $region14: #{e4e_initialized_forward.11} parent=0 // pred_check
    _
  $region15: #{e4e_initialized_forward.11} parent=0 // pred_check_branch
    %789 = sbr.rel (0) target = $region17
  $region16: #{e4e_initialized_forward.11} parent=0 // pred_region
    _
  $region17: #{e4e_initialized_forward.11} parent=0 // pred_fallthru
    _
  // Predicated region
  $region18: #{e4e_initialized_forward.11} parent=0 // pred_check
    _
  $region19: #{e4e_initialized_forward.11} parent=0 // pred_check_branch
    %791 = sbr.rel (0) target = $region21
  $region20: #{e4e_initialized_forward.11} parent=0 // pred_region
    _
  $region21: #{e4e_initialized_forward.11} parent=0 // pred_fallthru
    _

// kernel: e4e_initialized_forward.12
$region0: #{e4e_initialized_forward.12}
  #allocation0 [shape = 'u32[]', space=smem, size = 0x4, offset = 0x4, fixed_abs, tag = 'smem constant byte address 0x4 - core index']
  #allocation1 [shape = 'u32[72,128]{1,0:T(1,128)}', space=vmem, size = 0x9000, scoped, tag = 'internal scratch']
  %s0 = inlined_call_operand.vmem [shape: bf16[128,144], index: 0, kind: input, shape index: {}]
  %s1 = inlined_call_operand.vmem [shape: bf16[144,32], index: 1, kind: input, shape index: {}]
  %s2 = inlined_call_operand.vmem [shape: f32[1,32], index: 2, kind: input, shape index: {}]
  %s3 = inlined_call_operand.vmem [shape: f32[128,32], index: 3, kind: output, shape index: {}]
  %s4 = sld [smem:[#allocation0]]
  $region22: #{e4e_initialized_forward.12} parent=0
    _
  %s6 = ssub.s32 1, %s4
  %s7 = scalar_select 0, %s6, %s4
  // Predicated region
  $region2: #{e4e_initialized_forward.12} parent=0 // pred_check
    _
  $region3: #{e4e_initialized_forward.12} parent=0 // pred_check_branch
    %9 = sbr.rel (0) target = $region5
  $region4: #{e4e_initialized_forward.12} parent=0 // pred_region
    _
  $region5: #{e4e_initialized_forward.12} parent=0 // pred_fallthru
    _
  // Predicated region
  $region6: #{e4e_initialized_forward.12} parent=0 // pred_check
    _
  $region7: #{e4e_initialized_forward.12} parent=0 // pred_check_branch
    %11 = sbr.rel (0) target = $region9
  $region8: #{e4e_initialized_forward.12} parent=0 // pred_region
    _
  $region9: #{e4e_initialized_forward.12} parent=0 // pred_fallthru
    _
  // Predicated region
  $region10: #{e4e_initialized_forward.12} parent=0 // pred_check
    _
  $region11: #{e4e_initialized_forward.12} parent=0 // pred_check_branch
    %13 = sbr.rel (0) target = $region13
  $region12: #{e4e_initialized_forward.12} parent=0 // pred_region
    _
  $region13: #{e4e_initialized_forward.12} parent=0 // pred_fallthru
    _
  %v15 = vld [vmem:[%s0] sm:$0xff]
  %v16 = vld [vmem:[%s0 + $0x8] sm:$0xff]
  %v17 = vld [vmem:[%s0 + $0x10] sm:$0xff]
  %v18 = vld [vmem:[%s0 + $0x18] sm:$0xff]
  %v19 = vld [vmem:[%s0 + $0x20] sm:$0xff]
  %v20 = vld [vmem:[%s0 + $0x28] sm:$0xff]
  %v21 = vld [vmem:[%s0 + $0x30] sm:$0xff]
  %v22 = vld [vmem:[%s0 + $0x38] sm:$0xff]
  %v23 = vld [vmem:[%s0 + $0x40] sm:$0xff]
  %v24 = vld [vmem:[%s0 + $0x48] sm:$0xff]
  %v25 = vld [vmem:[%s0 + $0x50] sm:$0xff]
  %v26 = vld [vmem:[%s0 + $0x58] sm:$0xff]
  %v27 = vld [vmem:[%s0 + $0x60] sm:$0xff]
  %v28 = vld [vmem:[%s0 + $0x68] sm:$0xff]
  %v29 = vld [vmem:[%s0 + $0x70] sm:$0xff]
  %v30 = vld [vmem:[%s0 + $0x78] sm:$0xff]
  %v31 = vld [vmem:[%s1] sm:$0xf]
  %v32 = vld [vmem:[%s1 + $0x4] sm:$0xf]
  %v33 = vld [vmem:[%s1 + $0x8] sm:$0xf]
  %v34 = vld [vmem:[%s1 + $0xc] sm:$0xf]
  %v35 = vld [vmem:[%s1 + $0x10] sm:$0xf]
  %v36 = vld [vmem:[%s1 + $0x14] sm:$0xf]
  %v37 = vld [vmem:[%s1 + $0x18] sm:$0xf]
  %v38 = vld [vmem:[%s1 + $0x1c] sm:$0xf]
  %v39 = vld [vmem:[%s1 + $0x20] sm:$0xf]
  %v40 = vld [vmem:[%s1 + $0x24] sm:$0xf]
  %v41 = vld [vmem:[%s1 + $0x28] sm:$0xf]
  %v42 = vld [vmem:[%s1 + $0x2c] sm:$0xf]
  %v43 = vld [vmem:[%s1 + $0x30] sm:$0xf]
  %v44 = vld [vmem:[%s1 + $0x34] sm:$0xf]
  %v45 = vld [vmem:[%s1 + $0x38] sm:$0xf]
  %v46 = vld [vmem:[%s1 + $0x3c] sm:$0xf]
  %v47 = vld [vmem:[%s1 + $0x40] sm:$0xf]
  %v48 = vld [vmem:[%s1 + $0x44] sm:$0xf]
  %v49 = vld [vmem:[%s2] sm:$0x1]
  %v51 = vperm.slane %v49, 0
  %v69 = vunpack.c.l.b16 %v15
  %v70 = vunpack.c.h.b16 %v15
  %v71 = vunpack.c.l.b16 %v16
  %v72 = vunpack.c.h.b16 %v16
  %v73 = vunpack.c.l.b16 %v17
  %v74 = vunpack.c.h.b16 %v17
  %v75 = vunpack.c.l.b16 %v18
  %v76 = vunpack.c.h.b16 %v18
  %v77 = vunpack.c.l.b16 %v19
  %v78 = vunpack.c.h.b16 %v19
  %v79 = vunpack.c.l.b16 %v20
  %v80 = vunpack.c.h.b16 %v20
  %v81 = vunpack.c.l.b16 %v21
  %v82 = vunpack.c.h.b16 %v21
  %v83 = vunpack.c.l.b16 %v22
  %v84 = vunpack.c.h.b16 %v22
  %v85 = vunpack.c.l.b16 %v23
  %v86 = vunpack.c.h.b16 %v23
  %v87 = vunpack.c.l.b16 %v24
  %v88 = vunpack.c.h.b16 %v24
  %v89 = vunpack.c.l.b16 %v25
  %v90 = vunpack.c.h.b16 %v25
  %v91 = vunpack.c.l.b16 %v26
  %v92 = vunpack.c.h.b16 %v26
  %v93 = vunpack.c.l.b16 %v27
  %v94 = vunpack.c.h.b16 %v27
  %v95 = vunpack.c.l.b16 %v28
  %v96 = vunpack.c.h.b16 %v28
  %v97 = vunpack.c.l.b16 %v29
  %v98 = vunpack.c.h.b16 %v29
  %v99 = vunpack.c.l.b16 %v30
  %v100 = vunpack.c.h.b16 %v30
  %v101 = vpack.c.b16 %v71, %v69
  %v102 = vpack.c.b16 %v72, %v70
  %v103 = vpack.c.b16 %v75, %v73
  %v104 = vpack.c.b16 %v76, %v74
  %v105 = vpack.c.b16 %v79, %v77
  %v106 = vpack.c.b16 %v80, %v78
  %v107 = vpack.c.b16 %v83, %v81
  %v108 = vpack.c.b16 %v84, %v82
  %v109 = vpack.c.b16 %v87, %v85
  %v110 = vpack.c.b16 %v88, %v86
  %v111 = vpack.c.b16 %v91, %v89
  %v112 = vpack.c.b16 %v92, %v90
  %v113 = vpack.c.b16 %v95, %v93
  %v114 = vpack.c.b16 %v96, %v94
  %v115 = vpack.c.b16 %v99, %v97
  %v116 = vpack.c.b16 %v100, %v98
  %v143 = vunpack.c.l.b16 %v31
  %v144 = vunpack.c.l.b16 %v32
  %v145 = vunpack.c.l.b16 %v33
  %v146 = vunpack.c.l.b16 %v34
  %v147 = vunpack.c.l.b16 %v35
  %v148 = vunpack.c.l.b16 %v36
  %v149 = vunpack.c.l.b16 %v37
  %v150 = vunpack.c.l.b16 %v38
  %v151 = vunpack.c.l.b16 %v39
  %v152 = vunpack.c.l.b16 %v40
  %v153 = vunpack.c.l.b16 %v41
  %v154 = vunpack.c.l.b16 %v42
  %v155 = vunpack.c.l.b16 %v43
  %v156 = vunpack.c.l.b16 %v44
  %v157 = vunpack.c.l.b16 %v45
  %v158 = vunpack.c.l.b16 %v46
  %v159 = vunpack.c.l.b16 %v47
  %v160 = vunpack.c.l.b16 %v48
  %v161 = vpack.c.b16 %v144, %v143
  %v162 = vpack.c.b16 %v146, %v145
  %v163 = vpack.c.b16 %v148, %v147
  %v164 = vpack.c.b16 %v150, %v149
  %v165 = vpack.c.b16 %v152, %v151
  %v166 = vpack.c.b16 %v154, %v153
  %v167 = vpack.c.b16 %v156, %v155
  %v168 = vpack.c.b16 %v158, %v157
  %v169 = vpack.c.b16 %v160, %v159
  %vm179 = vcmask 130048
  %v181 = vsel %vm179, %v102, 0
  %v184 = vsel %vm179, %v104, 0
  %v187 = vsel %vm179, %v106, 0
  %v190 = vsel %vm179, %v108, 0
  %v193 = vsel %vm179, %v110, 0
  %v196 = vsel %vm179, %v112, 0
  %v199 = vsel %vm179, %v114, 0
  %v202 = vsel %vm179, %v116, 0
  %204 = vmatpush.bf16.msra.mxu0 %v168
  %205 = vmatpush.bf16.msra.mxu0 %v167
  %206 = vmatpush.bf16.msra.mxu0 %v166
  %207 = vmatpush.bf16.msra.mxu0 %v165
  %208 = vmatpush.bf16.msra.mxu0 %v164
  %209 = vmatpush.bf16.msra.mxu0 %v163
  %210 = vmatpush.bf16.msra.mxu0 %v162
  %211 = vmatpush.bf16.msra.mxu0 %v161
  %212 = vmatmul.bf16.gmra.mxu0 %v101
  %v213 = vpop.f32.mrf.mxu0
  %v214 = vadd.f32 %v51, %v213
  %v215 = vpop.f32.mrf.mxu0
  %v216 = vadd.f32 %v51, %v215
  %217 = vmatmul.bf16.gmra.mxu0 %v103
  %v218 = vpop.f32.mrf.mxu0
  %v219 = vadd.f32 %v51, %v218
  %v220 = vpop.f32.mrf.mxu0
  %v221 = vadd.f32 %v51, %v220
  %222 = vmatmul.bf16.gmra.mxu0 %v105
  %v223 = vpop.f32.mrf.mxu0
  %v224 = vadd.f32 %v51, %v223
  %v225 = vpop.f32.mrf.mxu0
  %v226 = vadd.f32 %v51, %v225
  %227 = vmatmul.bf16.gmra.mxu0 %v107
  %v228 = vpop.f32.mrf.mxu0
  %v229 = vadd.f32 %v51, %v228
  %v230 = vpop.f32.mrf.mxu0
  %v231 = vadd.f32 %v51, %v230
  %232 = vmatmul.bf16.gmra.mxu0 %v109
  %v233 = vpop.f32.mrf.mxu0
  %v234 = vadd.f32 %v51, %v233
  %v235 = vpop.f32.mrf.mxu0
  %v236 = vadd.f32 %v51, %v235
  %237 = vmatmul.bf16.gmra.mxu0 %v111
  %v238 = vpop.f32.mrf.mxu0
  %v239 = vadd.f32 %v51, %v238
  %v240 = vpop.f32.mrf.mxu0
  %v241 = vadd.f32 %v51, %v240
  %242 = vmatmul.bf16.gmra.mxu0 %v113
  %v243 = vpop.f32.mrf.mxu0
  %v244 = vadd.f32 %v51, %v243
  %v245 = vpop.f32.mrf.mxu0
  %v246 = vadd.f32 %v51, %v245
  %247 = vmatmul.bf16.gmra.mxu0 %v115
  %v248 = vpop.f32.mrf.mxu0
  %v249 = vadd.f32 %v51, %v248
  %v250 = vpop.f32.mrf.mxu0
  %v251 = vadd.f32 %v51, %v250
  %252 = vdwg.mxu0
  %253 = vmatpush.bf16.msra.mxu0 0
  %254 = vmatpush.bf16.msra.mxu0 0
  %255 = vmatpush.bf16.msra.mxu0 0
  %256 = vmatpush.bf16.msra.mxu0 0
  %257 = vmatpush.bf16.msra.mxu0 0
  %258 = vmatpush.bf16.msra.mxu0 0
  %259 = vmatpush.bf16.msra.mxu0 0
  %260 = vmatpush.bf16.msra.mxu0 %v169
  %261 = vmatmul.bf16.gmra.mxu0 %v181
  %v262 = vpop.f32.mrf.mxu0
  %v263 = vadd.f32 %v214, %v262
  %v264 = vpop.f32.mrf.mxu0
  %v265 = vadd.f32 %v216, %v264
  %266 = vmatmul.bf16.gmra.mxu0 %v184
  %v267 = vpop.f32.mrf.mxu0
  %v268 = vadd.f32 %v219, %v267
  %v269 = vpop.f32.mrf.mxu0
  %v270 = vadd.f32 %v221, %v269
  %271 = vmatmul.bf16.gmra.mxu0 %v187
  %v272 = vpop.f32.mrf.mxu0
  %v273 = vadd.f32 %v224, %v272
  %v274 = vpop.f32.mrf.mxu0
  %v275 = vadd.f32 %v226, %v274
  %276 = vmatmul.bf16.gmra.mxu0 %v190
  %v277 = vpop.f32.mrf.mxu0
  %v278 = vadd.f32 %v229, %v277
  %v279 = vpop.f32.mrf.mxu0
  %v280 = vadd.f32 %v231, %v279
  %281 = vmatmul.bf16.gmra.mxu0 %v193
  %v282 = vpop.f32.mrf.mxu0
  %v283 = vadd.f32 %v234, %v282
  %v284 = vpop.f32.mrf.mxu0
  %v285 = vadd.f32 %v236, %v284
  %286 = vmatmul.bf16.gmra.mxu0 %v196
  %v287 = vpop.f32.mrf.mxu0
  %v288 = vadd.f32 %v239, %v287
  %v289 = vpop.f32.mrf.mxu0
  %v290 = vadd.f32 %v241, %v289
  %291 = vmatmul.bf16.gmra.mxu0 %v199
  %v292 = vpop.f32.mrf.mxu0
  %v293 = vadd.f32 %v244, %v292
  %v294 = vpop.f32.mrf.mxu0
  %v295 = vadd.f32 %v246, %v294
  %296 = vmatmul.bf16.gmra.mxu0 %v202
  %v297 = vpop.f32.mrf.mxu0
  %v298 = vadd.f32 %v249, %v297
  %v299 = vpop.f32.mrf.mxu0
  %v300 = vadd.f32 %v251, %v299
  %301 = vdwg.mxu0
  %vm302 = vcmp.gt.f32.partialorder %v263, 0.0
  %vm303 = vcmp.gt.f32.partialorder %v265, 0.0
  %vm304 = vcmp.gt.f32.partialorder %v268, 0.0
  %vm305 = vcmp.gt.f32.partialorder %v270, 0.0
  %vm306 = vcmp.gt.f32.partialorder %v273, 0.0
  %vm307 = vcmp.gt.f32.partialorder %v275, 0.0
  %vm308 = vcmp.gt.f32.partialorder %v278, 0.0
  %vm309 = vcmp.gt.f32.partialorder %v280, 0.0
  %vm310 = vcmp.gt.f32.partialorder %v283, 0.0
  %vm311 = vcmp.gt.f32.partialorder %v285, 0.0
  %vm312 = vcmp.gt.f32.partialorder %v288, 0.0
  %vm313 = vcmp.gt.f32.partialorder %v290, 0.0
  %vm314 = vcmp.gt.f32.partialorder %v293, 0.0
  %vm315 = vcmp.gt.f32.partialorder %v295, 0.0
  %vm316 = vcmp.gt.f32.partialorder %v298, 0.0
  %vm317 = vcmp.gt.f32.partialorder %v300, 0.0
  %v318 = vmul.f32 %v263, 0.2
  %v319 = vmul.f32 %v265, 0.2
  %v320 = vmul.f32 %v268, 0.2
  %v321 = vmul.f32 %v270, 0.2
  %v322 = vmul.f32 %v273, 0.2
  %v323 = vmul.f32 %v275, 0.2
  %v324 = vmul.f32 %v278, 0.2
  %v325 = vmul.f32 %v280, 0.2
  %v326 = vmul.f32 %v283, 0.2
  %v327 = vmul.f32 %v285, 0.2
  %v328 = vmul.f32 %v288, 0.2
  %v329 = vmul.f32 %v290, 0.2
  %v330 = vmul.f32 %v293, 0.2
  %v331 = vmul.f32 %v295, 0.2
  %v332 = vmul.f32 %v298, 0.2
  %v333 = vmul.f32 %v300, 0.2
  %v334 = vsel %vm302, %v263, %v318
  %v335 = vsel %vm303, %v265, %v319
  %v336 = vsel %vm304, %v268, %v320
  %v337 = vsel %vm305, %v270, %v321
  %v338 = vsel %vm306, %v273, %v322
  %v339 = vsel %vm307, %v275, %v323
  %v340 = vsel %vm308, %v278, %v324
  %v341 = vsel %vm309, %v280, %v325
  %v342 = vsel %vm310, %v283, %v326
  %v343 = vsel %vm311, %v285, %v327
  %v344 = vsel %vm312, %v288, %v328
  %v345 = vsel %vm313, %v290, %v329
  %v346 = vsel %vm314, %v293, %v330
  %v347 = vsel %vm315, %v295, %v331
  %v348 = vsel %vm316, %v298, %v332
  %v349 = vsel %vm317, %v300, %v333
  %vm350 = vcmask 261120
  %351 = vst.msk [vmem:[%s3] sm:$0xff] %vm350, %v334
  %352 = vst.msk [vmem:[%s3 + $0x8] sm:$0xff] %vm350, %v335
  %353 = vst.msk [vmem:[%s3 + $0x10] sm:$0xff] %vm350, %v336
  %354 = vst.msk [vmem:[%s3 + $0x18] sm:$0xff] %vm350, %v337
  %355 = vst.msk [vmem:[%s3 + $0x20] sm:$0xff] %vm350, %v338
  %356 = vst.msk [vmem:[%s3 + $0x28] sm:$0xff] %vm350, %v339
  %357 = vst.msk [vmem:[%s3 + $0x30] sm:$0xff] %vm350, %v340
  %358 = vst.msk [vmem:[%s3 + $0x38] sm:$0xff] %vm350, %v341
  %359 = vst.msk [vmem:[%s3 + $0x40] sm:$0xff] %vm350, %v342
  %360 = vst.msk [vmem:[%s3 + $0x48] sm:$0xff] %vm350, %v343
  %361 = vst.msk [vmem:[%s3 + $0x50] sm:$0xff] %vm350, %v344
  %362 = vst.msk [vmem:[%s3 + $0x58] sm:$0xff] %vm350, %v345
  %363 = vst.msk [vmem:[%s3 + $0x60] sm:$0xff] %vm350, %v346
  %364 = vst.msk [vmem:[%s3 + $0x68] sm:$0xff] %vm350, %v347
  %365 = vst.msk [vmem:[%s3 + $0x70] sm:$0xff] %vm350, %v348
  %366 = vst.msk [vmem:[%s3 + $0x78] sm:$0xff] %vm350, %v349
  // Predicated region
  $region14: #{e4e_initialized_forward.12} parent=0 // pred_check
    _
  $region15: #{e4e_initialized_forward.12} parent=0 // pred_check_branch
    %368 = sbr.rel (0) target = $region17
  $region16: #{e4e_initialized_forward.12} parent=0 // pred_region
    _
  $region17: #{e4e_initialized_forward.12} parent=0 // pred_fallthru
    _
  // Predicated region
  $region18: #{e4e_initialized_forward.12} parent=0 // pred_check
    _
  $region19: #{e4e_initialized_forward.12} parent=0 // pred_check_branch
    %370 = sbr.rel (0) target = $region21
  $region20: #{e4e_initialized_forward.12} parent=0 // pred_region
    _
  $region21: #{e4e_initialized_forward.12} parent=0 // pred_fallthru
    _

// kernel: e4e_initialized_forward.13
$region0: #{e4e_initialized_forward.13}
  #allocation0 [shape = 'u32[]', space=smem, size = 0x4, offset = 0x4, fixed_abs, tag = 'smem constant byte address 0x4 - core index']
  #allocation1 [shape = 'u32[72,128]{1,0:T(1,128)}', space=vmem, size = 0x9000, scoped, tag = 'internal scratch']
  %s0 = inlined_call_operand.vmem [shape: bf16[32,288], index: 0, kind: input, shape index: {}]
  %s1 = inlined_call_operand.vmem [shape: bf16[288,64], index: 1, kind: input, shape index: {}]
  %s2 = inlined_call_operand.vmem [shape: f32[1,64], index: 2, kind: input, shape index: {}]
  %s3 = inlined_call_operand.vmem [shape: f32[32,64], index: 3, kind: output, shape index: {}]
  %s4 = sld [smem:[#allocation0]]
  $region22: #{e4e_initialized_forward.13} parent=0
    _
  %s6 = ssub.s32 1, %s4
  %s7 = scalar_select 0, %s6, %s4
  // Predicated region
  $region2: #{e4e_initialized_forward.13} parent=0 // pred_check
    _
  $region3: #{e4e_initialized_forward.13} parent=0 // pred_check_branch
    %9 = sbr.rel (0) target = $region5
  $region4: #{e4e_initialized_forward.13} parent=0 // pred_region
    _
  $region5: #{e4e_initialized_forward.13} parent=0 // pred_fallthru
    _
  // Predicated region
  $region6: #{e4e_initialized_forward.13} parent=0 // pred_check
    _
  $region7: #{e4e_initialized_forward.13} parent=0 // pred_check_branch
    %11 = sbr.rel (0) target = $region9
  $region8: #{e4e_initialized_forward.13} parent=0 // pred_region
    _
  $region9: #{e4e_initialized_forward.13} parent=0 // pred_fallthru
    _
  // Predicated region
  $region10: #{e4e_initialized_forward.13} parent=0 // pred_check
    _
  $region11: #{e4e_initialized_forward.13} parent=0 // pred_check_branch
    %13 = sbr.rel (0) target = $region13
  $region12: #{e4e_initialized_forward.13} parent=0 // pred_region
    _
  $region13: #{e4e_initialized_forward.13} parent=0 // pred_fallthru
    _
  %v15 = vld [vmem:[%s0] sm:$0xff]
  %v16 = vld [vmem:[%s0 + $0x8] sm:$0xf]
  %v17 = vld [vmem:[%s0 + $0xc] sm:$0xff]
  %v18 = vld [vmem:[%s0 + $0x14] sm:$0xf]
  %v19 = vld [vmem:[%s0 + $0x18] sm:$0xff]
  %v20 = vld [vmem:[%s0 + $0x20] sm:$0xf]
  %v21 = vld [vmem:[%s0 + $0x24] sm:$0xff]
  %v22 = vld [vmem:[%s0 + $0x2c] sm:$0xf]
  %v23 = vld [vmem:[%s1] sm:$0xf]
  %v24 = vld [vmem:[%s1 + $0x4] sm:$0xf]
  %v25 = vld [vmem:[%s1 + $0x8] sm:$0xf]
  %v26 = vld [vmem:[%s1 + $0xc] sm:$0xf]
  %v27 = vld [vmem:[%s1 + $0x10] sm:$0xf]
  %v28 = vld [vmem:[%s1 + $0x14] sm:$0xf]
  %v29 = vld [vmem:[%s1 + $0x18] sm:$0xf]
  %v30 = vld [vmem:[%s1 + $0x1c] sm:$0xf]
  %v31 = vld [vmem:[%s1 + $0x20] sm:$0xf]
  %v32 = vld [vmem:[%s1 + $0x24] sm:$0xf]
  %v33 = vld [vmem:[%s1 + $0x28] sm:$0xf]
  %v34 = vld [vmem:[%s1 + $0x2c] sm:$0xf]
  %v35 = vld [vmem:[%s1 + $0x30] sm:$0xf]
  %v36 = vld [vmem:[%s1 + $0x34] sm:$0xf]
  %v37 = vld [vmem:[%s1 + $0x38] sm:$0xf]
  %v38 = vld [vmem:[%s1 + $0x3c] sm:$0xf]
  %v39 = vld [vmem:[%s1 + $0x40] sm:$0xf]
  %v40 = vld [vmem:[%s1 + $0x44] sm:$0xf]
  %v41 = vld [vmem:[%s1 + $0x48] sm:$0xf]
  %v42 = vld [vmem:[%s1 + $0x4c] sm:$0xf]
  %v43 = vld [vmem:[%s1 + $0x50] sm:$0xf]
  %v44 = vld [vmem:[%s1 + $0x54] sm:$0xf]
  %v45 = vld [vmem:[%s1 + $0x58] sm:$0xf]
  %v46 = vld [vmem:[%s1 + $0x5c] sm:$0xf]
  %v47 = vld [vmem:[%s1 + $0x60] sm:$0xf]
  %v48 = vld [vmem:[%s1 + $0x64] sm:$0xf]
  %v49 = vld [vmem:[%s1 + $0x68] sm:$0xf]
  %v50 = vld [vmem:[%s1 + $0x6c] sm:$0xf]
  %v51 = vld [vmem:[%s1 + $0x70] sm:$0xf]
  %v52 = vld [vmem:[%s1 + $0x74] sm:$0xf]
  %v53 = vld [vmem:[%s1 + $0x78] sm:$0xf]
  %v54 = vld [vmem:[%s1 + $0x7c] sm:$0xf]
  %v55 = vld [vmem:[%s1 + $0x80] sm:$0xf]
  %v56 = vld [vmem:[%s1 + $0x84] sm:$0xf]
  %v57 = vld [vmem:[%s1 + $0x88] sm:$0xf]
  %v58 = vld [vmem:[%s1 + $0x8c] sm:$0xf]
  %v59 = vld [vmem:[%s2] sm:$0x1]
  %v61 = vperm.slane %v59, 0
  %v71 = vunpack.c.l.b16 %v15
  %v72 = vunpack.c.h.b16 %v15
  %v73 = vunpack.c.l.b16 %v16
  %v74 = vunpack.c.l.b16 %v17
  %v75 = vunpack.c.h.b16 %v17
  %v76 = vunpack.c.l.b16 %v18
  %v77 = vunpack.c.l.b16 %v19
  %v78 = vunpack.c.h.b16 %v19
  %v79 = vunpack.c.l.b16 %v20
  %v80 = vunpack.c.l.b16 %v21
  %v81 = vunpack.c.h.b16 %v21
  %v82 = vunpack.c.l.b16 %v22
  %v83 = vpack.c.b16 %v74, %v71
  %v84 = vpack.c.b16 %v75, %v72
  %v85 = vpack.c.b16 %v76, %v73
  %v86 = vpack.c.b16 %v80, %v77
  %v87 = vpack.c.b16 %v81, %v78
  %v88 = vpack.c.b16 %v82, %v79
  %v129 = vunpack.c.l.b16 %v23
  %v130 = vunpack.c.l.b16 %v24
  %v131 = vunpack.c.l.b16 %v25
  %v132 = vunpack.c.l.b16 %v26
  %v133 = vunpack.c.l.b16 %v27
  %v134 = vunpack.c.l.b16 %v28
  %v135 = vunpack.c.l.b16 %v29
  %v136 = vunpack.c.l.b16 %v30
  %v137 = vunpack.c.l.b16 %v31
  %v138 = vunpack.c.l.b16 %v32
  %v139 = vunpack.c.l.b16 %v33
  %v140 = vunpack.c.l.b16 %v34
  %v141 = vunpack.c.l.b16 %v35
  %v142 = vunpack.c.l.b16 %v36
  %v143 = vunpack.c.l.b16 %v37
  %v144 = vunpack.c.l.b16 %v38
  %v145 = vunpack.c.l.b16 %v39
  %v146 = vunpack.c.l.b16 %v40
  %v147 = vunpack.c.l.b16 %v41
  %v148 = vunpack.c.l.b16 %v42
  %v149 = vunpack.c.l.b16 %v43
  %v150 = vunpack.c.l.b16 %v44
  %v151 = vunpack.c.l.b16 %v45
  %v152 = vunpack.c.l.b16 %v46
  %v153 = vunpack.c.l.b16 %v47
  %v154 = vunpack.c.l.b16 %v48
  %v155 = vunpack.c.l.b16 %v49
  %v156 = vunpack.c.l.b16 %v50
  %v157 = vunpack.c.l.b16 %v51
  %v158 = vunpack.c.l.b16 %v52
  %v159 = vunpack.c.l.b16 %v53
  %v160 = vunpack.c.l.b16 %v54
  %v161 = vunpack.c.l.b16 %v55
  %v162 = vunpack.c.l.b16 %v56
  %v163 = vunpack.c.l.b16 %v57
  %v164 = vunpack.c.l.b16 %v58
  %v165 = vpack.c.b16 %v130, %v129
  %v166 = vpack.c.b16 %v132, %v131
  %v167 = vpack.c.b16 %v134, %v133
  %v168 = vpack.c.b16 %v136, %v135
  %v169 = vpack.c.b16 %v138, %v137
  %v170 = vpack.c.b16 %v140, %v139
  %v171 = vpack.c.b16 %v142, %v141
  %v172 = vpack.c.b16 %v144, %v143
  %v173 = vpack.c.b16 %v146, %v145
  %v174 = vpack.c.b16 %v148, %v147
  %v175 = vpack.c.b16 %v150, %v149
  %v176 = vpack.c.b16 %v152, %v151
  %v177 = vpack.c.b16 %v154, %v153
  %v178 = vpack.c.b16 %v156, %v155
  %v179 = vpack.c.b16 %v158, %v157
  %v180 = vpack.c.b16 %v160, %v159
  %v181 = vpack.c.b16 %v162, %v161
  %v182 = vpack.c.b16 %v164, %v163
  %vm201 = vcmask 261120
  %v203 = vsel %vm201, %v85, 0
  %v206 = vsel %vm201, %v88, 0
  %208 = vmatpush.bf16.msra.mxu0 %v172
  %209 = vmatpush.bf16.msra.mxu0 %v171
  %210 = vmatpush.bf16.msra.mxu0 %v170
  %211 = vmatpush.bf16.msra.mxu0 %v169
  %212 = vmatpush.bf16.msra.mxu0 %v168
  %213 = vmatpush.bf16.msra.mxu0 %v167
  %214 = vmatpush.bf16.msra.mxu0 %v166
  %215 = vmatpush.bf16.msra.mxu0 %v165
  %216 = vmatmul.bf16.gmra.mxu0 %v83
  %v217 = vpop.f32.mrf.mxu0
  %v218 = vadd.f32 %v61, %v217
  %v219 = vpop.f32.mrf.mxu0
  %v220 = vadd.f32 %v61, %v219
  %221 = vmatmul.bf16.gmra.mxu0 %v86
  %v222 = vpop.f32.mrf.mxu0
  %v223 = vadd.f32 %v61, %v222
  %v224 = vpop.f32.mrf.mxu0
  %v225 = vadd.f32 %v61, %v224
  %226 = vdwg.mxu0
  %227 = vmatpush.bf16.msra.mxu0 %v180
  %228 = vmatpush.bf16.msra.mxu0 %v179
  %229 = vmatpush.bf16.msra.mxu0 %v178
  %230 = vmatpush.bf16.msra.mxu0 %v177
  %231 = vmatpush.bf16.msra.mxu0 %v176
  %232 = vmatpush.bf16.msra.mxu0 %v175
  %233 = vmatpush.bf16.msra.mxu0 %v174
  %234 = vmatpush.bf16.msra.mxu0 %v173
  %235 = vmatmul.bf16.gmra.mxu0 %v84
  %v236 = vpop.f32.mrf.mxu0
  %v237 = vadd.f32 %v218, %v236
  %v238 = vpop.f32.mrf.mxu0
  %v239 = vadd.f32 %v220, %v238
  %240 = vmatmul.bf16.gmra.mxu0 %v87
  %v241 = vpop.f32.mrf.mxu0
  %v242 = vadd.f32 %v223, %v241
  %v243 = vpop.f32.mrf.mxu0
  %v244 = vadd.f32 %v225, %v243
  %245 = vdwg.mxu0
  %246 = vmatpush.bf16.msra.mxu0 0
  %247 = vmatpush.bf16.msra.mxu0 0
  %248 = vmatpush.bf16.msra.mxu0 0
  %249 = vmatpush.bf16.msra.mxu0 0
  %250 = vmatpush.bf16.msra.mxu0 0
  %251 = vmatpush.bf16.msra.mxu0 0
  %252 = vmatpush.bf16.msra.mxu0 %v182
  %253 = vmatpush.bf16.msra.mxu0 %v181
  %254 = vmatmul.bf16.gmra.mxu0 %v203
  %v255 = vpop.f32.mrf.mxu0
  %v256 = vadd.f32 %v237, %v255
  %v257 = vpop.f32.mrf.mxu0
  %v258 = vadd.f32 %v239, %v257
  %259 = vmatmul.bf16.gmra.mxu0 %v206
  %v260 = vpop.f32.mrf.mxu0
  %v261 = vadd.f32 %v242, %v260
  %v262 = vpop.f32.mrf.mxu0
  %v263 = vadd.f32 %v244, %v262
  %264 = vdwg.mxu0
  %vm265 = vcmp.gt.f32.partialorder %v256, 0.0
  %vm266 = vcmp.gt.f32.partialorder %v258, 0.0
  %vm267 = vcmp.gt.f32.partialorder %v261, 0.0
  %vm268 = vcmp.gt.f32.partialorder %v263, 0.0
  %v269 = vmul.f32 %v256, 0.2
  %v270 = vmul.f32 %v258, 0.2
  %v271 = vmul.f32 %v261, 0.2
  %v272 = vmul.f32 %v263, 0.2
  %v273 = vsel %vm265, %v256, %v269
  %v274 = vsel %vm266, %v258, %v270
  %v275 = vsel %vm267, %v261, %v271
  %v276 = vsel %vm268, %v263, %v272
  %vm277 = vcmask 523264
  %278 = vst.msk [vmem:[%s3] sm:$0xff] %vm277, %v273
  %279 = vst.msk [vmem:[%s3 + $0x8] sm:$0xff] %vm277, %v274
  %280 = vst.msk [vmem:[%s3 + $0x10] sm:$0xff] %vm277, %v275
  %281 = vst.msk [vmem:[%s3 + $0x18] sm:$0xff] %vm277, %v276
  // Predicated region
  $region14: #{e4e_initialized_forward.13} parent=0 // pred_check
    _
  $region15: #{e4e_initialized_forward.13} parent=0 // pred_check_branch
    %283 = sbr.rel (0) target = $region17
  $region16: #{e4e_initialized_forward.13} parent=0 // pred_region
    _
  $region17: #{e4e_initialized_forward.13} parent=0 // pred_fallthru
    _
  // Predicated region
  $region18: #{e4e_initialized_forward.13} parent=0 // pred_check
    _
  $region19: #{e4e_initialized_forward.13} parent=0 // pred_check_branch
    %285 = sbr.rel (0) target = $region21
  $region20: #{e4e_initialized_forward.13} parent=0 // pred_region
    _
  $region21: #{e4e_initialized_forward.13} parent=0 // pred_fallthru
    _

// kernel: e4e_initialized_forward.14
$region0: #{e4e_initialized_forward.14}
  #allocation0 [shape = 'u32[]', space=smem, size = 0x4, offset = 0x4, fixed_abs, tag = 'smem constant byte address 0x4 - core index']
  #allocation1 [shape = 'u32[72,128]{1,0:T(1,128)}', space=vmem, size = 0x9000, scoped, tag = 'internal scratch']
  %s0 = inlined_call_operand.vmem [shape: bf16[2,64], index: 0, kind: input, shape index: {}]
  %s1 = inlined_call_operand.vmem [shape: bf16[64,224], index: 1, kind: input, shape index: {}]
  %s2 = inlined_call_operand.vmem [shape: f32[1,224], index: 2, kind: input, shape index: {}]
  %s3 = inlined_call_operand.vmem [shape: f32[2,224], index: 3, kind: output, shape index: {}]
  %s4 = sld [smem:[#allocation0]]
  $region22: #{e4e_initialized_forward.14} parent=0
    _
  %s6 = ssub.s32 1, %s4
  %s7 = scalar_select 0, %s6, %s4
  // Predicated region
  $region2: #{e4e_initialized_forward.14} parent=0 // pred_check
    _
  $region3: #{e4e_initialized_forward.14} parent=0 // pred_check_branch
    %9 = sbr.rel (0) target = $region5
  $region4: #{e4e_initialized_forward.14} parent=0 // pred_region
    _
  $region5: #{e4e_initialized_forward.14} parent=0 // pred_fallthru
    _
  // Predicated region
  $region6: #{e4e_initialized_forward.14} parent=0 // pred_check
    _
  $region7: #{e4e_initialized_forward.14} parent=0 // pred_check_branch
    %11 = sbr.rel (0) target = $region9
  $region8: #{e4e_initialized_forward.14} parent=0 // pred_region
    _
  $region9: #{e4e_initialized_forward.14} parent=0 // pred_fallthru
    _
  // Predicated region
  $region10: #{e4e_initialized_forward.14} parent=0 // pred_check
    _
  $region11: #{e4e_initialized_forward.14} parent=0 // pred_check_branch
    %13 = sbr.rel (0) target = $region13
  $region12: #{e4e_initialized_forward.14} parent=0 // pred_region
    _
  $region13: #{e4e_initialized_forward.14} parent=0 // pred_fallthru
    _
  %v15 = vld [vmem:[%s0] sm:$0x1]
  %v16 = vld [vmem:[%s1] sm:$0xff]
  %v17 = vld [vmem:[%s1 + $0x8] sm:$0xff]
  %v18 = vld [vmem:[%s1 + $0x10] sm:$0xff]
  %v19 = vld [vmem:[%s1 + $0x18] sm:$0xff]
  %v20 = vld [vmem:[%s1 + $0x20] sm:$0xff]
  %v21 = vld [vmem:[%s1 + $0x28] sm:$0xff]
  %v22 = vld [vmem:[%s1 + $0x30] sm:$0xff]
  %v23 = vld [vmem:[%s1 + $0x38] sm:$0xff]
  %v24 = vld [vmem:[%s2] sm:$0x3]
  %v26 = vperm.slane %v24, 0
  %v27 = vperm.slane %v24, 1
  %v38 = vunpack.c.l.b16 %v16
  %v39 = vunpack.c.h.b16 %v16
  %v40 = vunpack.c.l.b16 %v17
  %v41 = vunpack.c.h.b16 %v17
  %v42 = vunpack.c.l.b16 %v18
  %v43 = vunpack.c.h.b16 %v18
  %v44 = vunpack.c.l.b16 %v19
  %v45 = vunpack.c.h.b16 %v19
  %v46 = vunpack.c.l.b16 %v20
  %v47 = vunpack.c.h.b16 %v20
  %v48 = vunpack.c.l.b16 %v21
  %v49 = vunpack.c.h.b16 %v21
  %v50 = vunpack.c.l.b16 %v22
  %v51 = vunpack.c.h.b16 %v22
  %v52 = vunpack.c.l.b16 %v23
  %v53 = vunpack.c.h.b16 %v23
  %v54 = vpack.c.b16 %v40, %v38
  %v55 = vpack.c.b16 %v41, %v39
  %v56 = vpack.c.b16 %v44, %v42
  %v57 = vpack.c.b16 %v45, %v43
  %v58 = vpack.c.b16 %v48, %v46
  %v59 = vpack.c.b16 %v49, %v47
  %v60 = vpack.c.b16 %v52, %v50
  %v61 = vpack.c.b16 %v53, %v51
  %vm70 = vcmask 523264
  %v72 = vsel %vm70, %v15, 0
  %74 = vmatpush.bf16.msra.mxu0 0
  %75 = vmatpush.bf16.msra.mxu0 0
  %76 = vmatpush.bf16.msra.mxu0 0
  %77 = vmatpush.bf16.msra.mxu0 0
  %78 = vmatpush.bf16.msra.mxu0 %v60
  %79 = vmatpush.bf16.msra.mxu0 %v58
  %80 = vmatpush.bf16.msra.mxu0 %v56
  %81 = vmatpush.bf16.msra.mxu0 %v54
  %82 = vmatmul.bf16.gmra.mxu0 %v72
  %v83 = vpop.f32.mrf.mxu0
  %v84 = vadd.f32 %v26, %v83
  %v85 = vpop.f32.mrf.mxu0
  %86 = vdwg.mxu0
  %87 = vmatpush.bf16.msra.mxu0 0
  %88 = vmatpush.bf16.msra.mxu0 0
  %89 = vmatpush.bf16.msra.mxu0 0
  %90 = vmatpush.bf16.msra.mxu0 0
  %91 = vmatpush.bf16.msra.mxu0 %v61
  %92 = vmatpush.bf16.msra.mxu0 %v59
  %93 = vmatpush.bf16.msra.mxu0 %v57
  %94 = vmatpush.bf16.msra.mxu0 %v55
  %95 = vmatmul.bf16.gmra.mxu0 %v72
  %v96 = vpop.f32.mrf.mxu0
  %v97 = vadd.f32 %v27, %v96
  %v98 = vpop.f32.mrf.mxu0
  %99 = vdwg.mxu0
  %v102 = vrot.slane %v97, 6
  %vm103 = vcmask 1041408
  %v104 = vsel %vm103, %v84, %v102
  %vm106 = vcmask 781314
  %vm107 = vmor %vm106, %vm103
  %108 = vst.msk [vmem:[%s3] sm:$0xf] %vm107, %v104
  // Predicated region
  $region14: #{e4e_initialized_forward.14} parent=0 // pred_check
    _
  $region15: #{e4e_initialized_forward.14} parent=0 // pred_check_branch
    %110 = sbr.rel (0) target = $region17
  $region16: #{e4e_initialized_forward.14} parent=0 // pred_region
    _
  $region17: #{e4e_initialized_forward.14} parent=0 // pred_fallthru
    _
  // Predicated region
  $region18: #{e4e_initialized_forward.14} parent=0 // pred_check
    _
  $region19: #{e4e_initialized_forward.14} parent=0 // pred_check_branch
    %112 = sbr.rel (0) target = $region21
  $region20: #{e4e_initialized_forward.14} parent=0 // pred_region
    _
  $region21: #{e4e_initialized_forward.14} parent=0 // pred_fallthru
    _

// kernel: e4e_initialized_forward.15
$region0: #{e4e_initialized_forward.15}
  #allocation0 [shape = 'u32[]', space=smem, size = 0x4, offset = 0x4, fixed_abs, tag = 'smem constant byte address 0x4 - core index']
  #allocation1 [shape = 'u32[72,128]{1,0:T(1,128)}', space=vmem, size = 0x9000, scoped, tag = 'internal scratch']
  %s0 = inlined_call_operand.vmem [shape: bf16[6,2,32], index: 0, kind: input, shape index: {}]
  %s1 = inlined_call_operand.vmem [shape: bf16[6,32,32], index: 1, kind: input, shape index: {}]
  %s2 = inlined_call_operand.vmem [shape: f32[6,1,32], index: 2, kind: input, shape index: {}]
  %s3 = inlined_call_operand.vmem [shape: f32[6,2,32], index: 3, kind: output, shape index: {}]
  %s4 = sld [smem:[#allocation0]]
  $region22: #{e4e_initialized_forward.15} parent=0
    _
  %s6 = ssub.s32 1, %s4
  %s7 = scalar_select 0, %s6, %s4
  // Predicated region
  $region2: #{e4e_initialized_forward.15} parent=0 // pred_check
    _
  $region3: #{e4e_initialized_forward.15} parent=0 // pred_check_branch
    %9 = sbr.rel (0) target = $region5
  $region4: #{e4e_initialized_forward.15} parent=0 // pred_region
    _
  $region5: #{e4e_initialized_forward.15} parent=0 // pred_fallthru
    _
  // Predicated region
  $region6: #{e4e_initialized_forward.15} parent=0 // pred_check
    _
  $region7: #{e4e_initialized_forward.15} parent=0 // pred_check_branch
    %11 = sbr.rel (0) target = $region9
  $region8: #{e4e_initialized_forward.15} parent=0 // pred_region
    _
  $region9: #{e4e_initialized_forward.15} parent=0 // pred_fallthru
    _
  // Predicated region
  $region10: #{e4e_initialized_forward.15} parent=0 // pred_check
    _
  $region11: #{e4e_initialized_forward.15} parent=0 // pred_check_branch
    %13 = sbr.rel (0) target = $region13
  $region12: #{e4e_initialized_forward.15} parent=0 // pred_region
    _
  $region13: #{e4e_initialized_forward.15} parent=0 // pred_fallthru
    _
  %v15 = vld [vmem:[%s0] sm:$0x1]
  %v16 = vld [vmem:[%s0 + $0x1] sm:$0x1]
  %v17 = vld [vmem:[%s0 + $0x2] sm:$0x1]
  %v18 = vld [vmem:[%s0 + $0x3] sm:$0x1]
  %v19 = vld [vmem:[%s0 + $0x4] sm:$0x1]
  %v20 = vld [vmem:[%s0 + $0x5] sm:$0x1]
  %v21 = vld [vmem:[%s1] sm:$0xf]
  %v22 = vld [vmem:[%s1 + $0x4] sm:$0xf]
  %v23 = vld [vmem:[%s1 + $0x8] sm:$0xf]
  %v24 = vld [vmem:[%s1 + $0xc] sm:$0xf]
  %v25 = vld [vmem:[%s1 + $0x10] sm:$0xf]
  %v26 = vld [vmem:[%s1 + $0x14] sm:$0xf]
  %v27 = vld [vmem:[%s1 + $0x18] sm:$0xf]
  %v28 = vld [vmem:[%s1 + $0x1c] sm:$0xf]
  %v29 = vld [vmem:[%s1 + $0x20] sm:$0xf]
  %v30 = vld [vmem:[%s1 + $0x24] sm:$0xf]
  %v31 = vld [vmem:[%s1 + $0x28] sm:$0xf]
  %v32 = vld [vmem:[%s1 + $0x2c] sm:$0xf]
  %v33 = vld [vmem:[%s1 + $0x30] sm:$0xf]
  %v34 = vld [vmem:[%s1 + $0x34] sm:$0xf]
  %v35 = vld [vmem:[%s1 + $0x38] sm:$0xf]
  %v36 = vld [vmem:[%s1 + $0x3c] sm:$0xf]
  %v37 = vld [vmem:[%s1 + $0x40] sm:$0xf]
  %v38 = vld [vmem:[%s1 + $0x44] sm:$0xf]
  %v39 = vld [vmem:[%s1 + $0x48] sm:$0xf]
  %v40 = vld [vmem:[%s1 + $0x4c] sm:$0xf]
  %v41 = vld [vmem:[%s1 + $0x50] sm:$0xf]
  %v42 = vld [vmem:[%s1 + $0x54] sm:$0xf]
  %v43 = vld [vmem:[%s1 + $0x58] sm:$0xf]
  %v44 = vld [vmem:[%s1 + $0x5c] sm:$0xf]
  %v45 = vld [vmem:[%s2] sm:$0x1]
  %v46 = vld [vmem:[%s2 + $0x1] sm:$0x1]
  %v47 = vld [vmem:[%s2 + $0x2] sm:$0x1]
  %v48 = vld [vmem:[%s2 + $0x3] sm:$0x1]
  %v49 = vld [vmem:[%s2 + $0x4] sm:$0x1]
  %v50 = vld [vmem:[%s2 + $0x5] sm:$0x1]
  %v57 = vperm.slane %v45, 0
  %v58 = vperm.slane %v46, 0
  %v59 = vperm.slane %v47, 0
  %v60 = vperm.slane %v48, 0
  %v61 = vperm.slane %v49, 0
  %v62 = vperm.slane %v50, 0
  %v73 = vunpack.c.l.b16 %v21
  %v74 = vunpack.c.l.b16 %v22
  %v75 = vunpack.c.l.b16 %v23
  %v76 = vunpack.c.l.b16 %v24
  %v77 = vpack.c.b16 %v74, %v73
  %v78 = vpack.c.b16 %v76, %v75
  %vm81 = vcmask 261120
  %v83 = vsel %vm81, %v15, 0
  %85 = vmatpush.bf16.msra.mxu0 0
  %86 = vmatpush.bf16.msra.mxu0 0
  %87 = vmatpush.bf16.msra.mxu0 0
  %88 = vmatpush.bf16.msra.mxu0 0
  %89 = vmatpush.bf16.msra.mxu0 0
  %90 = vmatpush.bf16.msra.mxu0 0
  %91 = vmatpush.bf16.msra.mxu0 %v78
  %92 = vmatpush.bf16.msra.mxu0 %v77
  %93 = vmatmul.bf16.gmra.mxu0 %v83
  %v94 = vpop.f32.mrf.mxu0
  %v95 = vadd.f32 %v57, %v94
  %v96 = vpop.f32.mrf.mxu0
  %97 = vdwg.mxu0
  %v102 = vunpack.c.l.b16 %v25
  %v103 = vunpack.c.l.b16 %v26
  %v104 = vunpack.c.l.b16 %v27
  %v105 = vunpack.c.l.b16 %v28
  %v106 = vpack.c.b16 %v103, %v102
  %v107 = vpack.c.b16 %v105, %v104
  %v111 = vsel %vm81, %v16, 0
  %113 = vmatpush.bf16.msra.mxu0 0
  %114 = vmatpush.bf16.msra.mxu0 0
  %115 = vmatpush.bf16.msra.mxu0 0
  %116 = vmatpush.bf16.msra.mxu0 0
  %117 = vmatpush.bf16.msra.mxu0 0
  %118 = vmatpush.bf16.msra.mxu0 0
  %119 = vmatpush.bf16.msra.mxu0 %v107
  %120 = vmatpush.bf16.msra.mxu0 %v106
  %121 = vmatmul.bf16.gmra.mxu0 %v111
  %v122 = vpop.f32.mrf.mxu0
  %v123 = vadd.f32 %v58, %v122
  %v124 = vpop.f32.mrf.mxu0
  %125 = vdwg.mxu0
  %v130 = vunpack.c.l.b16 %v29
  %v131 = vunpack.c.l.b16 %v30
  %v132 = vunpack.c.l.b16 %v31
  %v133 = vunpack.c.l.b16 %v32
  %v134 = vpack.c.b16 %v131, %v130
  %v135 = vpack.c.b16 %v133, %v132
  %v139 = vsel %vm81, %v17, 0
  %141 = vmatpush.bf16.msra.mxu0 0
  %142 = vmatpush.bf16.msra.mxu0 0
  %143 = vmatpush.bf16.msra.mxu0 0
  %144 = vmatpush.bf16.msra.mxu0 0
  %145 = vmatpush.bf16.msra.mxu0 0
  %146 = vmatpush.bf16.msra.mxu0 0
  %147 = vmatpush.bf16.msra.mxu0 %v135
  %148 = vmatpush.bf16.msra.mxu0 %v134
  %149 = vmatmul.bf16.gmra.mxu0 %v139
  %v150 = vpop.f32.mrf.mxu0
  %v151 = vadd.f32 %v59, %v150
  %v152 = vpop.f32.mrf.mxu0
  %153 = vdwg.mxu0
  %v158 = vunpack.c.l.b16 %v33
  %v159 = vunpack.c.l.b16 %v34
  %v160 = vunpack.c.l.b16 %v35
  %v161 = vunpack.c.l.b16 %v36
  %v162 = vpack.c.b16 %v159, %v158
  %v163 = vpack.c.b16 %v161, %v160
  %v167 = vsel %vm81, %v18, 0
  %169 = vmatpush.bf16.msra.mxu0 0
  %170 = vmatpush.bf16.msra.mxu0 0
  %171 = vmatpush.bf16.msra.mxu0 0
  %172 = vmatpush.bf16.msra.mxu0 0
  %173 = vmatpush.bf16.msra.mxu0 0
  %174 = vmatpush.bf16.msra.mxu0 0
  %175 = vmatpush.bf16.msra.mxu0 %v163
  %176 = vmatpush.bf16.msra.mxu0 %v162
  %177 = vmatmul.bf16.gmra.mxu0 %v167
  %v178 = vpop.f32.mrf.mxu0
  %v179 = vadd.f32 %v60, %v178
  %v180 = vpop.f32.mrf.mxu0
  %181 = vdwg.mxu0
  %v186 = vunpack.c.l.b16 %v37
  %v187 = vunpack.c.l.b16 %v38
  %v188 = vunpack.c.l.b16 %v39
  %v189 = vunpack.c.l.b16 %v40
  %v190 = vpack.c.b16 %v187, %v186
  %v191 = vpack.c.b16 %v189, %v188
  %v195 = vsel %vm81, %v19, 0
  %197 = vmatpush.bf16.msra.mxu0 0
  %198 = vmatpush.bf16.msra.mxu0 0
  %199 = vmatpush.bf16.msra.mxu0 0
  %200 = vmatpush.bf16.msra.mxu0 0
  %201 = vmatpush.bf16.msra.mxu0 0
  %202 = vmatpush.bf16.msra.mxu0 0
  %203 = vmatpush.bf16.msra.mxu0 %v191
  %204 = vmatpush.bf16.msra.mxu0 %v190
  %205 = vmatmul.bf16.gmra.mxu0 %v195
  %v206 = vpop.f32.mrf.mxu0
  %v207 = vadd.f32 %v61, %v206
  %v208 = vpop.f32.mrf.mxu0
  %209 = vdwg.mxu0
  %v214 = vunpack.c.l.b16 %v41
  %v215 = vunpack.c.l.b16 %v42
  %v216 = vunpack.c.l.b16 %v43
  %v217 = vunpack.c.l.b16 %v44
  %v218 = vpack.c.b16 %v215, %v214
  %v219 = vpack.c.b16 %v217, %v216
  %v223 = vsel %vm81, %v20, 0
  %225 = vmatpush.bf16.msra.mxu0 0
  %226 = vmatpush.bf16.msra.mxu0 0
  %227 = vmatpush.bf16.msra.mxu0 0
  %228 = vmatpush.bf16.msra.mxu0 0
  %229 = vmatpush.bf16.msra.mxu0 0
  %230 = vmatpush.bf16.msra.mxu0 0
  %231 = vmatpush.bf16.msra.mxu0 %v219
  %232 = vmatpush.bf16.msra.mxu0 %v218
  %233 = vmatmul.bf16.gmra.mxu0 %v223
  %v234 = vpop.f32.mrf.mxu0
  %v235 = vadd.f32 %v62, %v234
  %v236 = vpop.f32.mrf.mxu0
  %237 = vdwg.mxu0
  %vm238 = vcmask 254976
  %239 = vst.msk [vmem:[%s3] sm:$0x3] %vm238, %v95
  %240 = vst.msk [vmem:[%s3 + $0x2] sm:$0x3] %vm238, %v123
  %241 = vst.msk [vmem:[%s3 + $0x4] sm:$0x3] %vm238, %v151
  %242 = vst.msk [vmem:[%s3 + $0x6] sm:$0x3] %vm238, %v179
  %243 = vst.msk [vmem:[%s3 + $0x8] sm:$0x3] %vm238, %v207
  %244 = vst.msk [vmem:[%s3 + $0xa] sm:$0x3] %vm238, %v235
  // Predicated region
  $region14: #{e4e_initialized_forward.15} parent=0 // pred_check
    _
  $region15: #{e4e_initialized_forward.15} parent=0 // pred_check_branch
    %246 = sbr.rel (0) target = $region17
  $region16: #{e4e_initialized_forward.15} parent=0 // pred_region
    _
  $region17: #{e4e_initialized_forward.15} parent=0 // pred_fallthru
    _
  // Predicated region
  $region18: #{e4e_initialized_forward.15} parent=0 // pred_check
    _
  $region19: #{e4e_initialized_forward.15} parent=0 // pred_check_branch
    %248 = sbr.rel (0) target = $region21
  $region20: #{e4e_initialized_forward.15} parent=0 // pred_region
    _
  $region21: #{e4e_initialized_forward.15} parent=0 // pred_fallthru
    _

// kernel: e4e_initialized_forward.16
$region0: #{e4e_initialized_forward.16}
  #allocation0 [shape = 'u32[]', space=smem, size = 0x4, offset = 0x4, fixed_abs, tag = 'smem constant byte address 0x4 - core index']
  #allocation1 [shape = 'u32[72,128]{1,0:T(1,128)}', space=vmem, size = 0x9000, scoped, tag = 'internal scratch']
  %s0 = inlined_call_operand.vmem [shape: bf16[32,288], index: 0, kind: input, shape index: {}]
  %s1 = inlined_call_operand.vmem [shape: bf16[288,32], index: 1, kind: input, shape index: {}]
  %s2 = inlined_call_operand.vmem [shape: f32[32,32], index: 2, kind: input, shape index: {}]
  %s3 = inlined_call_operand.vmem [shape: f32[1,32], index: 3, kind: input, shape index: {}]
  %s4 = inlined_call_operand.vmem [shape: f32[32,32], index: 4, kind: output, shape index: {}]
  %s5 = sld [smem:[#allocation0]]
  $region26: #{e4e_initialized_forward.16} parent=0
    _
  %s7 = ssub.s32 1, %s5
  %s8 = scalar_select 0, %s7, %s5
  // Predicated region
  $region2: #{e4e_initialized_forward.16} parent=0 // pred_check
    _
  $region3: #{e4e_initialized_forward.16} parent=0 // pred_check_branch
    %10 = sbr.rel (0) target = $region5
  $region4: #{e4e_initialized_forward.16} parent=0 // pred_region
    _
  $region5: #{e4e_initialized_forward.16} parent=0 // pred_fallthru
    _
  // Predicated region
  $region6: #{e4e_initialized_forward.16} parent=0 // pred_check
    _
  $region7: #{e4e_initialized_forward.16} parent=0 // pred_check_branch
    %12 = sbr.rel (0) target = $region9
  $region8: #{e4e_initialized_forward.16} parent=0 // pred_region
    _
  $region9: #{e4e_initialized_forward.16} parent=0 // pred_fallthru
    _
  // Predicated region
  $region10: #{e4e_initialized_forward.16} parent=0 // pred_check
    _
  $region11: #{e4e_initialized_forward.16} parent=0 // pred_check_branch
    %14 = sbr.rel (0) target = $region13
  $region12: #{e4e_initialized_forward.16} parent=0 // pred_region
    _
  $region13: #{e4e_initialized_forward.16} parent=0 // pred_fallthru
    _
  // Predicated region
  $region14: #{e4e_initialized_forward.16} parent=0 // pred_check
    _
  $region15: #{e4e_initialized_forward.16} parent=0 // pred_check_branch
    %16 = sbr.rel (0) target = $region17
  $region16: #{e4e_initialized_forward.16} parent=0 // pred_region
    _
  $region17: #{e4e_initialized_forward.16} parent=0 // pred_fallthru
    _
  %v18 = vld [vmem:[%s0] sm:$0xff]
  %v19 = vld [vmem:[%s0 + $0x8] sm:$0xf]
  %v20 = vld [vmem:[%s0 + $0xc] sm:$0xff]
  %v21 = vld [vmem:[%s0 + $0x14] sm:$0xf]
  %v22 = vld [vmem:[%s0 + $0x18] sm:$0xff]
  %v23 = vld [vmem:[%s0 + $0x20] sm:$0xf]
  %v24 = vld [vmem:[%s0 + $0x24] sm:$0xff]
  %v25 = vld [vmem:[%s0 + $0x2c] sm:$0xf]
  %v26 = vld [vmem:[%s1] sm:$0xf]
  %v27 = vld [vmem:[%s1 + $0x4] sm:$0xf]
  %v28 = vld [vmem:[%s1 + $0x8] sm:$0xf]
  %v29 = vld [vmem:[%s1 + $0xc] sm:$0xf]
  %v30 = vld [vmem:[%s1 + $0x10] sm:$0xf]
  %v31 = vld [vmem:[%s1 + $0x14] sm:$0xf]
  %v32 = vld [vmem:[%s1 + $0x18] sm:$0xf]
  %v33 = vld [vmem:[%s1 + $0x1c] sm:$0xf]
  %v34 = vld [vmem:[%s1 + $0x20] sm:$0xf]
  %v35 = vld [vmem:[%s1 + $0x24] sm:$0xf]
  %v36 = vld [vmem:[%s1 + $0x28] sm:$0xf]
  %v37 = vld [vmem:[%s1 + $0x2c] sm:$0xf]
  %v38 = vld [vmem:[%s1 + $0x30] sm:$0xf]
  %v39 = vld [vmem:[%s1 + $0x34] sm:$0xf]
  %v40 = vld [vmem:[%s1 + $0x38] sm:$0xf]
  %v41 = vld [vmem:[%s1 + $0x3c] sm:$0xf]
  %v42 = vld [vmem:[%s1 + $0x40] sm:$0xf]
  %v43 = vld [vmem:[%s1 + $0x44] sm:$0xf]
  %v44 = vld [vmem:[%s1 + $0x48] sm:$0xf]
  %v45 = vld [vmem:[%s1 + $0x4c] sm:$0xf]
  %v46 = vld [vmem:[%s1 + $0x50] sm:$0xf]
  %v47 = vld [vmem:[%s1 + $0x54] sm:$0xf]
  %v48 = vld [vmem:[%s1 + $0x58] sm:$0xf]
  %v49 = vld [vmem:[%s1 + $0x5c] sm:$0xf]
  %v50 = vld [vmem:[%s1 + $0x60] sm:$0xf]
  %v51 = vld [vmem:[%s1 + $0x64] sm:$0xf]
  %v52 = vld [vmem:[%s1 + $0x68] sm:$0xf]
  %v53 = vld [vmem:[%s1 + $0x6c] sm:$0xf]
  %v54 = vld [vmem:[%s1 + $0x70] sm:$0xf]
  %v55 = vld [vmem:[%s1 + $0x74] sm:$0xf]
  %v56 = vld [vmem:[%s1 + $0x78] sm:$0xf]
  %v57 = vld [vmem:[%s1 + $0x7c] sm:$0xf]
  %v58 = vld [vmem:[%s1 + $0x80] sm:$0xf]
  %v59 = vld [vmem:[%s1 + $0x84] sm:$0xf]
  %v60 = vld [vmem:[%s1 + $0x88] sm:$0xf]
  %v61 = vld [vmem:[%s1 + $0x8c] sm:$0xf]
  %v70 = vunpack.c.l.b16 %v18
  %v71 = vunpack.c.h.b16 %v18
  %v72 = vunpack.c.l.b16 %v19
  %v73 = vunpack.c.l.b16 %v20
  %v74 = vunpack.c.h.b16 %v20
  %v75 = vunpack.c.l.b16 %v21
  %v76 = vunpack.c.l.b16 %v22
  %v77 = vunpack.c.h.b16 %v22
  %v78 = vunpack.c.l.b16 %v23
  %v79 = vunpack.c.l.b16 %v24
  %v80 = vunpack.c.h.b16 %v24
  %v81 = vunpack.c.l.b16 %v25
  %v82 = vpack.c.b16 %v73, %v70
  %v83 = vpack.c.b16 %v74, %v71
  %v84 = vpack.c.b16 %v75, %v72
  %v85 = vpack.c.b16 %v79, %v76
  %v86 = vpack.c.b16 %v80, %v77
  %v87 = vpack.c.b16 %v81, %v78
  %v128 = vunpack.c.l.b16 %v26
  %v129 = vunpack.c.l.b16 %v27
  %v130 = vunpack.c.l.b16 %v28
  %v131 = vunpack.c.l.b16 %v29
  %v132 = vunpack.c.l.b16 %v30
  %v133 = vunpack.c.l.b16 %v31
  %v134 = vunpack.c.l.b16 %v32
  %v135 = vunpack.c.l.b16 %v33
  %v136 = vunpack.c.l.b16 %v34
  %v137 = vunpack.c.l.b16 %v35
  %v138 = vunpack.c.l.b16 %v36
  %v139 = vunpack.c.l.b16 %v37
  %v140 = vunpack.c.l.b16 %v38
  %v141 = vunpack.c.l.b16 %v39
  %v142 = vunpack.c.l.b16 %v40
  %v143 = vunpack.c.l.b16 %v41
  %v144 = vunpack.c.l.b16 %v42
  %v145 = vunpack.c.l.b16 %v43
  %v146 = vunpack.c.l.b16 %v44
  %v147 = vunpack.c.l.b16 %v45
  %v148 = vunpack.c.l.b16 %v46
  %v149 = vunpack.c.l.b16 %v47
  %v150 = vunpack.c.l.b16 %v48
  %v151 = vunpack.c.l.b16 %v49
  %v152 = vunpack.c.l.b16 %v50
  %v153 = vunpack.c.l.b16 %v51
  %v154 = vunpack.c.l.b16 %v52
  %v155 = vunpack.c.l.b16 %v53
  %v156 = vunpack.c.l.b16 %v54
  %v157 = vunpack.c.l.b16 %v55
  %v158 = vunpack.c.l.b16 %v56
  %v159 = vunpack.c.l.b16 %v57
  %v160 = vunpack.c.l.b16 %v58
  %v161 = vunpack.c.l.b16 %v59
  %v162 = vunpack.c.l.b16 %v60
  %v163 = vunpack.c.l.b16 %v61
  %v164 = vpack.c.b16 %v129, %v128
  %v165 = vpack.c.b16 %v131, %v130
  %v166 = vpack.c.b16 %v133, %v132
  %v167 = vpack.c.b16 %v135, %v134
  %v168 = vpack.c.b16 %v137, %v136
  %v169 = vpack.c.b16 %v139, %v138
  %v170 = vpack.c.b16 %v141, %v140
  %v171 = vpack.c.b16 %v143, %v142
  %v172 = vpack.c.b16 %v145, %v144
  %v173 = vpack.c.b16 %v147, %v146
  %v174 = vpack.c.b16 %v149, %v148
  %v175 = vpack.c.b16 %v151, %v150
  %v176 = vpack.c.b16 %v153, %v152
  %v177 = vpack.c.b16 %v155, %v154
  %v178 = vpack.c.b16 %v157, %v156
  %v179 = vpack.c.b16 %v159, %v158
  %v180 = vpack.c.b16 %v161, %v160
  %v181 = vpack.c.b16 %v163, %v162
  %vm200 = vcmask 261120
  %v202 = vsel %vm200, %v84, 0
  %v205 = vsel %vm200, %v87, 0
  %207 = vmatpush.bf16.msra.mxu0 %v171
  %208 = vmatpush.bf16.msra.mxu0 %v170
  %209 = vmatpush.bf16.msra.mxu0 %v169
  %210 = vmatpush.bf16.msra.mxu0 %v168
  %211 = vmatpush.bf16.msra.mxu0 %v167
  %212 = vmatpush.bf16.msra.mxu0 %v166
  %213 = vmatpush.bf16.msra.mxu0 %v165
  %214 = vmatpush.bf16.msra.mxu0 %v164
  %215 = vmatmul.bf16.gmra.mxu0 %v82
  %v216 = vpop.f32.mrf.mxu0
  %v217 = vadd.f32 0.0, %v216
  %v218 = vpop.f32.mrf.mxu0
  %v219 = vadd.f32 0.0, %v218
  %220 = vmatmul.bf16.gmra.mxu0 %v85
  %v221 = vpop.f32.mrf.mxu0
  %v222 = vadd.f32 0.0, %v221
  %v223 = vpop.f32.mrf.mxu0
  %v224 = vadd.f32 0.0, %v223
  %225 = vdwg.mxu0
  %226 = vmatpush.bf16.msra.mxu0 %v179
  %227 = vmatpush.bf16.msra.mxu0 %v178
  %228 = vmatpush.bf16.msra.mxu0 %v177
  %229 = vmatpush.bf16.msra.mxu0 %v176
  %230 = vmatpush.bf16.msra.mxu0 %v175
  %231 = vmatpush.bf16.msra.mxu0 %v174
  %232 = vmatpush.bf16.msra.mxu0 %v173
  %233 = vmatpush.bf16.msra.mxu0 %v172
  %234 = vmatmul.bf16.gmra.mxu0 %v83
  %v235 = vpop.f32.mrf.mxu0
  %v236 = vadd.f32 %v217, %v235
  %v237 = vpop.f32.mrf.mxu0
  %v238 = vadd.f32 %v219, %v237
  %239 = vmatmul.bf16.gmra.mxu0 %v86
  %v240 = vpop.f32.mrf.mxu0
  %v241 = vadd.f32 %v222, %v240
  %v242 = vpop.f32.mrf.mxu0
  %v243 = vadd.f32 %v224, %v242
  %244 = vdwg.mxu0
  %245 = vmatpush.bf16.msra.mxu0 0
  %246 = vmatpush.bf16.msra.mxu0 0
  %247 = vmatpush.bf16.msra.mxu0 0
  %248 = vmatpush.bf16.msra.mxu0 0
  %249 = vmatpush.bf16.msra.mxu0 0
  %250 = vmatpush.bf16.msra.mxu0 0
  %251 = vmatpush.bf16.msra.mxu0 %v181
  %252 = vmatpush.bf16.msra.mxu0 %v180
  %253 = vmatmul.bf16.gmra.mxu0 %v202
  %v254 = vpop.f32.mrf.mxu0
  %v255 = vadd.f32 %v236, %v254
  %v256 = vpop.f32.mrf.mxu0
  %v257 = vadd.f32 %v238, %v256
  %258 = vmatmul.bf16.gmra.mxu0 %v205
  %v259 = vpop.f32.mrf.mxu0
  %v260 = vadd.f32 %v241, %v259
  %v261 = vpop.f32.mrf.mxu0
  %v262 = vadd.f32 %v243, %v261
  %263 = vdwg.mxu0
  %v264 = vld [vmem:[%s2] sm:$0xff]
  %v265 = vld [vmem:[%s2 + $0x8] sm:$0xff]
  %v266 = vld [vmem:[%s2 + $0x10] sm:$0xff]
  %v267 = vld [vmem:[%s2 + $0x18] sm:$0xff]
  %v268 = vmul.f32 %v255, %v264
  %v269 = vmul.f32 %v257, %v265
  %v270 = vmul.f32 %v260, %v266
  %v271 = vmul.f32 %v262, %v267
  %v272 = vld [vmem:[%s3] sm:$0x1]
  %v274 = vperm.slane %v272, 0
  %v276 = vadd.f32 %v268, %v274
  %v277 = vadd.f32 %v269, %v274
  %v278 = vadd.f32 %v270, %v274
  %v279 = vadd.f32 %v271, %v274
  %vm280 = vcmp.gt.f32.partialorder %v276, 0.0
  %vm281 = vcmp.gt.f32.partialorder %v277, 0.0
  %vm282 = vcmp.gt.f32.partialorder %v278, 0.0
  %vm283 = vcmp.gt.f32.partialorder %v279, 0.0
  %v284 = vmul.f32 %v276, 0.2
  %v285 = vmul.f32 %v277, 0.2
  %v286 = vmul.f32 %v278, 0.2
  %v287 = vmul.f32 %v279, 0.2
  %v288 = vsel %vm280, %v276, %v284
  %v289 = vsel %vm281, %v277, %v285
  %v290 = vsel %vm282, %v278, %v286
  %v291 = vsel %vm283, %v279, %v287
  %292 = vst.msk [vmem:[%s4] sm:$0xff] %vm200, %v288
  %293 = vst.msk [vmem:[%s4 + $0x8] sm:$0xff] %vm200, %v289
  %294 = vst.msk [vmem:[%s4 + $0x10] sm:$0xff] %vm200, %v290
  %295 = vst.msk [vmem:[%s4 + $0x18] sm:$0xff] %vm200, %v291
  // Predicated region
  $region18: #{e4e_initialized_forward.16} parent=0 // pred_check
    _
  $region19: #{e4e_initialized_forward.16} parent=0 // pred_check_branch
    %297 = sbr.rel (0) target = $region21
  $region20: #{e4e_initialized_forward.16} parent=0 // pred_region
    _
  $region21: #{e4e_initialized_forward.16} parent=0 // pred_fallthru
    _
  // Predicated region
  $region22: #{e4e_initialized_forward.16} parent=0 // pred_check
    _
  $region23: #{e4e_initialized_forward.16} parent=0 // pred_check_branch
    %299 = sbr.rel (0) target = $region25
  $region24: #{e4e_initialized_forward.16} parent=0 // pred_region
    _
  $region25: #{e4e_initialized_forward.16} parent=0 // pred_fallthru
    _

// kernel: e4e_initialized_forward.17
$region0: #{e4e_initialized_forward.17}
  #allocation0 [shape = 'u32[]', space=smem, size = 0x4, offset = 0x4, fixed_abs, tag = 'smem constant byte address 0x4 - core index']
  #allocation1 [shape = 'u32[72,128]{1,0:T(1,128)}', space=vmem, size = 0x9000, scoped, tag = 'internal scratch']
  %s0 = inlined_call_operand.vmem [shape: bf16[128,288], index: 0, kind: input, shape index: {}]
  %s1 = inlined_call_operand.vmem [shape: bf16[288,32], index: 1, kind: input, shape index: {}]
  %s2 = inlined_call_operand.vmem [shape: f32[128,32], index: 2, kind: input, shape index: {}]
  %s3 = inlined_call_operand.vmem [shape: f32[1,32], index: 3, kind: input, shape index: {}]
  %s4 = inlined_call_operand.vmem [shape: f32[128,32], index: 4, kind: output, shape index: {}]
  %s5 = sld [smem:[#allocation0]]
  $region26: #{e4e_initialized_forward.17} parent=0
    _
  %s7 = ssub.s32 1, %s5
  %s8 = scalar_select 0, %s7, %s5
  // Predicated region
  $region2: #{e4e_initialized_forward.17} parent=0 // pred_check
    _
  $region3: #{e4e_initialized_forward.17} parent=0 // pred_check_branch
    %10 = sbr.rel (0) target = $region5
  $region4: #{e4e_initialized_forward.17} parent=0 // pred_region
    _
  $region5: #{e4e_initialized_forward.17} parent=0 // pred_fallthru
    _
  // Predicated region
  $region6: #{e4e_initialized_forward.17} parent=0 // pred_check
    _
  $region7: #{e4e_initialized_forward.17} parent=0 // pred_check_branch
    %12 = sbr.rel (0) target = $region9
  $region8: #{e4e_initialized_forward.17} parent=0 // pred_region
    _
  $region9: #{e4e_initialized_forward.17} parent=0 // pred_fallthru
    _
  // Predicated region
  $region10: #{e4e_initialized_forward.17} parent=0 // pred_check
    _
  $region11: #{e4e_initialized_forward.17} parent=0 // pred_check_branch
    %14 = sbr.rel (0) target = $region13
  $region12: #{e4e_initialized_forward.17} parent=0 // pred_region
    _
  $region13: #{e4e_initialized_forward.17} parent=0 // pred_fallthru
    _
  // Predicated region
  $region14: #{e4e_initialized_forward.17} parent=0 // pred_check
    _
  $region15: #{e4e_initialized_forward.17} parent=0 // pred_check_branch
    %16 = sbr.rel (0) target = $region17
  $region16: #{e4e_initialized_forward.17} parent=0 // pred_region
    _
  $region17: #{e4e_initialized_forward.17} parent=0 // pred_fallthru
    _
  %v18 = vld [vmem:[%s0] sm:$0xff]
  %v19 = vld [vmem:[%s0 + $0x8] sm:$0xf]
  %v20 = vld [vmem:[%s0 + $0xc] sm:$0xff]
  %v21 = vld [vmem:[%s0 + $0x14] sm:$0xf]
  %v22 = vld [vmem:[%s0 + $0x18] sm:$0xff]
  %v23 = vld [vmem:[%s0 + $0x20] sm:$0xf]
  %v24 = vld [vmem:[%s0 + $0x24] sm:$0xff]
  %v25 = vld [vmem:[%s0 + $0x2c] sm:$0xf]
  %v26 = vld [vmem:[%s0 + $0x30] sm:$0xff]
  %v27 = vld [vmem:[%s0 + $0x38] sm:$0xf]
  %v28 = vld [vmem:[%s0 + $0x3c] sm:$0xff]
  %v29 = vld [vmem:[%s0 + $0x44] sm:$0xf]
  %v30 = vld [vmem:[%s0 + $0x48] sm:$0xff]
  %v31 = vld [vmem:[%s0 + $0x50] sm:$0xf]
  %v32 = vld [vmem:[%s0 + $0x54] sm:$0xff]
  %v33 = vld [vmem:[%s0 + $0x5c] sm:$0xf]
  %v34 = vld [vmem:[%s0 + $0x60] sm:$0xff]
  %v35 = vld [vmem:[%s0 + $0x68] sm:$0xf]
  %v36 = vld [vmem:[%s0 + $0x6c] sm:$0xff]
  %v37 = vld [vmem:[%s0 + $0x74] sm:$0xf]
  %v38 = vld [vmem:[%s0 + $0x78] sm:$0xff]
  %v39 = vld [vmem:[%s0 + $0x80] sm:$0xf]
  %v40 = vld [vmem:[%s0 + $0x84] sm:$0xff]
  %v41 = vld [vmem:[%s0 + $0x8c] sm:$0xf]
  %v42 = vld [vmem:[%s0 + $0x90] sm:$0xff]
  %v43 = vld [vmem:[%s0 + $0x98] sm:$0xf]
  %v44 = vld [vmem:[%s0 + $0x9c] sm:$0xff]
  %v45 = vld [vmem:[%s0 + $0xa4] sm:$0xf]
  %v46 = vld [vmem:[%s0 + $0xa8] sm:$0xff]
  %v47 = vld [vmem:[%s0 + $0xb0] sm:$0xf]
  %v48 = vld [vmem:[%s0 + $0xb4] sm:$0xff]
  %v49 = vld [vmem:[%s0 + $0xbc] sm:$0xf]
  %v50 = vld [vmem:[%s1] sm:$0xf]
  %v51 = vld [vmem:[%s1 + $0x4] sm:$0xf]
  %v52 = vld [vmem:[%s1 + $0x8] sm:$0xf]
  %v53 = vld [vmem:[%s1 + $0xc] sm:$0xf]
  %v54 = vld [vmem:[%s1 + $0x10] sm:$0xf]
  %v55 = vld [vmem:[%s1 + $0x14] sm:$0xf]
  %v56 = vld [vmem:[%s1 + $0x18] sm:$0xf]
  %v57 = vld [vmem:[%s1 + $0x1c] sm:$0xf]
  %v58 = vld [vmem:[%s1 + $0x20] sm:$0xf]
  %v59 = vld [vmem:[%s1 + $0x24] sm:$0xf]
  %v60 = vld [vmem:[%s1 + $0x28] sm:$0xf]
  %v61 = vld [vmem:[%s1 + $0x2c] sm:$0xf]
  %v62 = vld [vmem:[%s1 + $0x30] sm:$0xf]
  %v63 = vld [vmem:[%s1 + $0x34] sm:$0xf]
  %v64 = vld [vmem:[%s1 + $0x38] sm:$0xf]
  %v65 = vld [vmem:[%s1 + $0x3c] sm:$0xf]
  %v66 = vld [vmem:[%s1 + $0x40] sm:$0xf]
  %v67 = vld [vmem:[%s1 + $0x44] sm:$0xf]
  %v68 = vld [vmem:[%s1 + $0x48] sm:$0xf]
  %v69 = vld [vmem:[%s1 + $0x4c] sm:$0xf]
  %v70 = vld [vmem:[%s1 + $0x50] sm:$0xf]
  %v71 = vld [vmem:[%s1 + $0x54] sm:$0xf]
  %v72 = vld [vmem:[%s1 + $0x58] sm:$0xf]
  %v73 = vld [vmem:[%s1 + $0x5c] sm:$0xf]
  %v74 = vld [vmem:[%s1 + $0x60] sm:$0xf]
  %v75 = vld [vmem:[%s1 + $0x64] sm:$0xf]
  %v76 = vld [vmem:[%s1 + $0x68] sm:$0xf]
  %v77 = vld [vmem:[%s1 + $0x6c] sm:$0xf]
  %v78 = vld [vmem:[%s1 + $0x70] sm:$0xf]
  %v79 = vld [vmem:[%s1 + $0x74] sm:$0xf]
  %v80 = vld [vmem:[%s1 + $0x78] sm:$0xf]
  %v81 = vld [vmem:[%s1 + $0x7c] sm:$0xf]
  %v82 = vld [vmem:[%s1 + $0x80] sm:$0xf]
  %v83 = vld [vmem:[%s1 + $0x84] sm:$0xf]
  %v84 = vld [vmem:[%s1 + $0x88] sm:$0xf]
  %v85 = vld [vmem:[%s1 + $0x8c] sm:$0xf]
  %v118 = vunpack.c.l.b16 %v18
  %v119 = vunpack.c.h.b16 %v18
  %v120 = vunpack.c.l.b16 %v19
  %v121 = vunpack.c.l.b16 %v20
  %v122 = vunpack.c.h.b16 %v20
  %v123 = vunpack.c.l.b16 %v21
  %v124 = vunpack.c.l.b16 %v22
  %v125 = vunpack.c.h.b16 %v22
  %v126 = vunpack.c.l.b16 %v23
  %v127 = vunpack.c.l.b16 %v24
  %v128 = vunpack.c.h.b16 %v24
  %v129 = vunpack.c.l.b16 %v25
  %v130 = vunpack.c.l.b16 %v26
  %v131 = vunpack.c.h.b16 %v26
  %v132 = vunpack.c.l.b16 %v27
  %v133 = vunpack.c.l.b16 %v28
  %v134 = vunpack.c.h.b16 %v28
  %v135 = vunpack.c.l.b16 %v29
  %v136 = vunpack.c.l.b16 %v30
  %v137 = vunpack.c.h.b16 %v30
  %v138 = vunpack.c.l.b16 %v31
  %v139 = vunpack.c.l.b16 %v32
  %v140 = vunpack.c.h.b16 %v32
  %v141 = vunpack.c.l.b16 %v33
  %v142 = vunpack.c.l.b16 %v34
  %v143 = vunpack.c.h.b16 %v34
  %v144 = vunpack.c.l.b16 %v35
  %v145 = vunpack.c.l.b16 %v36
  %v146 = vunpack.c.h.b16 %v36
  %v147 = vunpack.c.l.b16 %v37
  %v148 = vunpack.c.l.b16 %v38
  %v149 = vunpack.c.h.b16 %v38
  %v150 = vunpack.c.l.b16 %v39
  %v151 = vunpack.c.l.b16 %v40
  %v152 = vunpack.c.h.b16 %v40
  %v153 = vunpack.c.l.b16 %v41
  %v154 = vunpack.c.l.b16 %v42
  %v155 = vunpack.c.h.b16 %v42
  %v156 = vunpack.c.l.b16 %v43
  %v157 = vunpack.c.l.b16 %v44
  %v158 = vunpack.c.h.b16 %v44
  %v159 = vunpack.c.l.b16 %v45
  %v160 = vunpack.c.l.b16 %v46
  %v161 = vunpack.c.h.b16 %v46
  %v162 = vunpack.c.l.b16 %v47
  %v163 = vunpack.c.l.b16 %v48
  %v164 = vunpack.c.h.b16 %v48
  %v165 = vunpack.c.l.b16 %v49
  %v166 = vpack.c.b16 %v121, %v118
  %v167 = vpack.c.b16 %v122, %v119
  %v168 = vpack.c.b16 %v123, %v120
  %v169 = vpack.c.b16 %v127, %v124
  %v170 = vpack.c.b16 %v128, %v125
  %v171 = vpack.c.b16 %v129, %v126
  %v172 = vpack.c.b16 %v133, %v130
  %v173 = vpack.c.b16 %v134, %v131
  %v174 = vpack.c.b16 %v135, %v132
  %v175 = vpack.c.b16 %v139, %v136
  %v176 = vpack.c.b16 %v140, %v137
  %v177 = vpack.c.b16 %v141, %v138
  %v178 = vpack.c.b16 %v145, %v142
  %v179 = vpack.c.b16 %v146, %v143
  %v180 = vpack.c.b16 %v147, %v144
  %v181 = vpack.c.b16 %v151, %v148
  %v182 = vpack.c.b16 %v152, %v149
  %v183 = vpack.c.b16 %v153, %v150
  %v184 = vpack.c.b16 %v157, %v154
  %v185 = vpack.c.b16 %v158, %v155
  %v186 = vpack.c.b16 %v159, %v156
  %v187 = vpack.c.b16 %v163, %v160
  %v188 = vpack.c.b16 %v164, %v161
  %v189 = vpack.c.b16 %v165, %v162
  %v242 = vunpack.c.l.b16 %v50
  %v243 = vunpack.c.l.b16 %v51
  %v244 = vunpack.c.l.b16 %v52
  %v245 = vunpack.c.l.b16 %v53
  %v246 = vunpack.c.l.b16 %v54
  %v247 = vunpack.c.l.b16 %v55
  %v248 = vunpack.c.l.b16 %v56
  %v249 = vunpack.c.l.b16 %v57
  %v250 = vunpack.c.l.b16 %v58
  %v251 = vunpack.c.l.b16 %v59
  %v252 = vunpack.c.l.b16 %v60
  %v253 = vunpack.c.l.b16 %v61
  %v254 = vunpack.c.l.b16 %v62
  %v255 = vunpack.c.l.b16 %v63
  %v256 = vunpack.c.l.b16 %v64
  %v257 = vunpack.c.l.b16 %v65
  %v258 = vunpack.c.l.b16 %v66
  %v259 = vunpack.c.l.b16 %v67
  %v260 = vunpack.c.l.b16 %v68
  %v261 = vunpack.c.l.b16 %v69
  %v262 = vunpack.c.l.b16 %v70
  %v263 = vunpack.c.l.b16 %v71
  %v264 = vunpack.c.l.b16 %v72
  %v265 = vunpack.c.l.b16 %v73
  %v266 = vunpack.c.l.b16 %v74
  %v267 = vunpack.c.l.b16 %v75
  %v268 = vunpack.c.l.b16 %v76
  %v269 = vunpack.c.l.b16 %v77
  %v270 = vunpack.c.l.b16 %v78
  %v271 = vunpack.c.l.b16 %v79
  %v272 = vunpack.c.l.b16 %v80
  %v273 = vunpack.c.l.b16 %v81
  %v274 = vunpack.c.l.b16 %v82
  %v275 = vunpack.c.l.b16 %v83
  %v276 = vunpack.c.l.b16 %v84
  %v277 = vunpack.c.l.b16 %v85
  %v278 = vpack.c.b16 %v243, %v242
  %v279 = vpack.c.b16 %v245, %v244
  %v280 = vpack.c.b16 %v247, %v246
  %v281 = vpack.c.b16 %v249, %v248
  %v282 = vpack.c.b16 %v251, %v250
  %v283 = vpack.c.b16 %v253, %v252
  %v284 = vpack.c.b16 %v255, %v254
  %v285 = vpack.c.b16 %v257, %v256
  %v286 = vpack.c.b16 %v259, %v258
  %v287 = vpack.c.b16 %v261, %v260
  %v288 = vpack.c.b16 %v263, %v262
  %v289 = vpack.c.b16 %v265, %v264
  %v290 = vpack.c.b16 %v267, %v266
  %v291 = vpack.c.b16 %v269, %v268
  %v292 = vpack.c.b16 %v271, %v270
  %v293 = vpack.c.b16 %v273, %v272
  %v294 = vpack.c.b16 %v275, %v274
  %v295 = vpack.c.b16 %v277, %v276
  %vm314 = vcmask 261120
  %v316 = vsel %vm314, %v168, 0
  %v319 = vsel %vm314, %v171, 0
  %v322 = vsel %vm314, %v174, 0
  %v325 = vsel %vm314, %v177, 0
  %v328 = vsel %vm314, %v180, 0
  %v331 = vsel %vm314, %v183, 0
  %v334 = vsel %vm314, %v186, 0
  %v337 = vsel %vm314, %v189, 0
  %339 = vmatpush.bf16.msra.mxu0 %v285
  %340 = vmatpush.bf16.msra.mxu0 %v284
  %341 = vmatpush.bf16.msra.mxu0 %v283
  %342 = vmatpush.bf16.msra.mxu0 %v282
  %343 = vmatpush.bf16.msra.mxu0 %v281
  %344 = vmatpush.bf16.msra.mxu0 %v280
  %345 = vmatpush.bf16.msra.mxu0 %v279
  %346 = vmatpush.bf16.msra.mxu0 %v278
  %347 = vmatmul.bf16.gmra.mxu0 %v166
  %v348 = vpop.f32.mrf.mxu0
  %v349 = vadd.f32 0.0, %v348
  %v350 = vpop.f32.mrf.mxu0
  %v351 = vadd.f32 0.0, %v350
  %352 = vmatmul.bf16.gmra.mxu0 %v169
  %v353 = vpop.f32.mrf.mxu0
  %v354 = vadd.f32 0.0, %v353
  %v355 = vpop.f32.mrf.mxu0
  %v356 = vadd.f32 0.0, %v355
  %357 = vmatmul.bf16.gmra.mxu0 %v172
  %v358 = vpop.f32.mrf.mxu0
  %v359 = vadd.f32 0.0, %v358
  %v360 = vpop.f32.mrf.mxu0
  %v361 = vadd.f32 0.0, %v360
  %362 = vmatmul.bf16.gmra.mxu0 %v175
  %v363 = vpop.f32.mrf.mxu0
  %v364 = vadd.f32 0.0, %v363
  %v365 = vpop.f32.mrf.mxu0
  %v366 = vadd.f32 0.0, %v365
  %367 = vmatmul.bf16.gmra.mxu0 %v178
  %v368 = vpop.f32.mrf.mxu0
  %v369 = vadd.f32 0.0, %v368
  %v370 = vpop.f32.mrf.mxu0
  %v371 = vadd.f32 0.0, %v370
  %372 = vmatmul.bf16.gmra.mxu0 %v181
  %v373 = vpop.f32.mrf.mxu0
  %v374 = vadd.f32 0.0, %v373
  %v375 = vpop.f32.mrf.mxu0
  %v376 = vadd.f32 0.0, %v375
  %377 = vmatmul.bf16.gmra.mxu0 %v184
  %v378 = vpop.f32.mrf.mxu0
  %v379 = vadd.f32 0.0, %v378
  %v380 = vpop.f32.mrf.mxu0
  %v381 = vadd.f32 0.0, %v380
  %382 = vmatmul.bf16.gmra.mxu0 %v187
  %v383 = vpop.f32.mrf.mxu0
  %v384 = vadd.f32 0.0, %v383
  %v385 = vpop.f32.mrf.mxu0
  %v386 = vadd.f32 0.0, %v385
  %387 = vdwg.mxu0
  %388 = vmatpush.bf16.msra.mxu0 %v293
  %389 = vmatpush.bf16.msra.mxu0 %v292
  %390 = vmatpush.bf16.msra.mxu0 %v291
  %391 = vmatpush.bf16.msra.mxu0 %v290
  %392 = vmatpush.bf16.msra.mxu0 %v289
  %393 = vmatpush.bf16.msra.mxu0 %v288
  %394 = vmatpush.bf16.msra.mxu0 %v287
  %395 = vmatpush.bf16.msra.mxu0 %v286
  %396 = vmatmul.bf16.gmra.mxu0 %v167
  %v397 = vpop.f32.mrf.mxu0
  %v398 = vadd.f32 %v349, %v397
  %v399 = vpop.f32.mrf.mxu0
  %v400 = vadd.f32 %v351, %v399
  %401 = vmatmul.bf16.gmra.mxu0 %v170
  %v402 = vpop.f32.mrf.mxu0
  %v403 = vadd.f32 %v354, %v402
  %v404 = vpop.f32.mrf.mxu0
  %v405 = vadd.f32 %v356, %v404
  %406 = vmatmul.bf16.gmra.mxu0 %v173
  %v407 = vpop.f32.mrf.mxu0
  %v408 = vadd.f32 %v359, %v407
  %v409 = vpop.f32.mrf.mxu0
  %v410 = vadd.f32 %v361, %v409
  %411 = vmatmul.bf16.gmra.mxu0 %v176
  %v412 = vpop.f32.mrf.mxu0
  %v413 = vadd.f32 %v364, %v412
  %v414 = vpop.f32.mrf.mxu0
  %v415 = vadd.f32 %v366, %v414
  %416 = vmatmul.bf16.gmra.mxu0 %v179
  %v417 = vpop.f32.mrf.mxu0
  %v418 = vadd.f32 %v369, %v417
  %v419 = vpop.f32.mrf.mxu0
  %v420 = vadd.f32 %v371, %v419
  %421 = vmatmul.bf16.gmra.mxu0 %v182
  %v422 = vpop.f32.mrf.mxu0
  %v423 = vadd.f32 %v374, %v422
  %v424 = vpop.f32.mrf.mxu0
  %v425 = vadd.f32 %v376, %v424
  %426 = vmatmul.bf16.gmra.mxu0 %v185
  %v427 = vpop.f32.mrf.mxu0
  %v428 = vadd.f32 %v379, %v427
  %v429 = vpop.f32.mrf.mxu0
  %v430 = vadd.f32 %v381, %v429
  %431 = vmatmul.bf16.gmra.mxu0 %v188
  %v432 = vpop.f32.mrf.mxu0
  %v433 = vadd.f32 %v384, %v432
  %v434 = vpop.f32.mrf.mxu0
  %v435 = vadd.f32 %v386, %v434
  %436 = vdwg.mxu0
  %437 = vmatpush.bf16.msra.mxu0 0
  %438 = vmatpush.bf16.msra.mxu0 0
  %439 = vmatpush.bf16.msra.mxu0 0
  %440 = vmatpush.bf16.msra.mxu0 0
  %441 = vmatpush.bf16.msra.mxu0 0
  %442 = vmatpush.bf16.msra.mxu0 0
  %443 = vmatpush.bf16.msra.mxu0 %v295
  %444 = vmatpush.bf16.msra.mxu0 %v294
  %445 = vmatmul.bf16.gmra.mxu0 %v316
  %v446 = vpop.f32.mrf.mxu0
  %v447 = vadd.f32 %v398, %v446
  %v448 = vpop.f32.mrf.mxu0
  %v449 = vadd.f32 %v400, %v448
  %450 = vmatmul.bf16.gmra.mxu0 %v319
  %v451 = vpop.f32.mrf.mxu0
  %v452 = vadd.f32 %v403, %v451
  %v453 = vpop.f32.mrf.mxu0
  %v454 = vadd.f32 %v405, %v453
  %455 = vmatmul.bf16.gmra.mxu0 %v322
  %v456 = vpop.f32.mrf.mxu0
  %v457 = vadd.f32 %v408, %v456
  %v458 = vpop.f32.mrf.mxu0
  %v459 = vadd.f32 %v410, %v458
  %460 = vmatmul.bf16.gmra.mxu0 %v325
  %v461 = vpop.f32.mrf.mxu0
  %v462 = vadd.f32 %v413, %v461
  %v463 = vpop.f32.mrf.mxu0
  %v464 = vadd.f32 %v415, %v463
  %465 = vmatmul.bf16.gmra.mxu0 %v328
  %v466 = vpop.f32.mrf.mxu0
  %v467 = vadd.f32 %v418, %v466
  %v468 = vpop.f32.mrf.mxu0
  %v469 = vadd.f32 %v420, %v468
  %470 = vmatmul.bf16.gmra.mxu0 %v331
  %v471 = vpop.f32.mrf.mxu0
  %v472 = vadd.f32 %v423, %v471
  %v473 = vpop.f32.mrf.mxu0
  %v474 = vadd.f32 %v425, %v473
  %475 = vmatmul.bf16.gmra.mxu0 %v334
  %v476 = vpop.f32.mrf.mxu0
  %v477 = vadd.f32 %v428, %v476
  %v478 = vpop.f32.mrf.mxu0
  %v479 = vadd.f32 %v430, %v478
  %480 = vmatmul.bf16.gmra.mxu0 %v337
  %v481 = vpop.f32.mrf.mxu0
  %v482 = vadd.f32 %v433, %v481
  %v483 = vpop.f32.mrf.mxu0
  %v484 = vadd.f32 %v435, %v483
  %485 = vdwg.mxu0
  %v486 = vld [vmem:[%s2] sm:$0xff]
  %v487 = vld [vmem:[%s2 + $0x8] sm:$0xff]
  %v488 = vld [vmem:[%s2 + $0x10] sm:$0xff]
  %v489 = vld [vmem:[%s2 + $0x18] sm:$0xff]
  %v490 = vld [vmem:[%s2 + $0x20] sm:$0xff]
  %v491 = vld [vmem:[%s2 + $0x28] sm:$0xff]
  %v492 = vld [vmem:[%s2 + $0x30] sm:$0xff]
  %v493 = vld [vmem:[%s2 + $0x38] sm:$0xff]
  %v494 = vld [vmem:[%s2 + $0x40] sm:$0xff]
  %v495 = vld [vmem:[%s2 + $0x48] sm:$0xff]
  %v496 = vld [vmem:[%s2 + $0x50] sm:$0xff]
  %v497 = vld [vmem:[%s2 + $0x58] sm:$0xff]
  %v498 = vld [vmem:[%s2 + $0x60] sm:$0xff]
  %v499 = vld [vmem:[%s2 + $0x68] sm:$0xff]
  %v500 = vld [vmem:[%s2 + $0x70] sm:$0xff]
  %v501 = vld [vmem:[%s2 + $0x78] sm:$0xff]
  %v502 = vmul.f32 %v447, %v486
  %v503 = vmul.f32 %v449, %v487
  %v504 = vmul.f32 %v452, %v488
  %v505 = vmul.f32 %v454, %v489
  %v506 = vmul.f32 %v457, %v490
  %v507 = vmul.f32 %v459, %v491
  %v508 = vmul.f32 %v462, %v492
  %v509 = vmul.f32 %v464, %v493
  %v510 = vmul.f32 %v467, %v494
  %v511 = vmul.f32 %v469, %v495
  %v512 = vmul.f32 %v472, %v496
  %v513 = vmul.f32 %v474, %v497
  %v514 = vmul.f32 %v477, %v498
  %v515 = vmul.f32 %v479, %v499
  %v516 = vmul.f32 %v482, %v500
  %v517 = vmul.f32 %v484, %v501
  %v518 = vld [vmem:[%s3] sm:$0x1]
  %v520 = vperm.slane %v518, 0
  %v522 = vadd.f32 %v502, %v520
  %v523 = vadd.f32 %v503, %v520
  %v524 = vadd.f32 %v504, %v520
  %v525 = vadd.f32 %v505, %v520
  %v526 = vadd.f32 %v506, %v520
  %v527 = vadd.f32 %v507, %v520
  %v528 = vadd.f32 %v508, %v520
  %v529 = vadd.f32 %v509, %v520
  %v530 = vadd.f32 %v510, %v520
  %v531 = vadd.f32 %v511, %v520
  %v532 = vadd.f32 %v512, %v520
  %v533 = vadd.f32 %v513, %v520
  %v534 = vadd.f32 %v514, %v520
  %v535 = vadd.f32 %v515, %v520
  %v536 = vadd.f32 %v516, %v520
  %v537 = vadd.f32 %v517, %v520
  %vm538 = vcmp.gt.f32.partialorder %v522, 0.0
  %vm539 = vcmp.gt.f32.partialorder %v523, 0.0
  %vm540 = vcmp.gt.f32.partialorder %v524, 0.0
  %vm541 = vcmp.gt.f32.partialorder %v525, 0.0
  %vm542 = vcmp.gt.f32.partialorder %v526, 0.0
  %vm543 = vcmp.gt.f32.partialorder %v527, 0.0
  %vm544 = vcmp.gt.f32.partialorder %v528, 0.0
  %vm545 = vcmp.gt.f32.partialorder %v529, 0.0
  %vm546 = vcmp.gt.f32.partialorder %v530, 0.0
  %vm547 = vcmp.gt.f32.partialorder %v531, 0.0
  %vm548 = vcmp.gt.f32.partialorder %v532, 0.0
  %vm549 = vcmp.gt.f32.partialorder %v533, 0.0
  %vm550 = vcmp.gt.f32.partialorder %v534, 0.0
  %vm551 = vcmp.gt.f32.partialorder %v535, 0.0
  %vm552 = vcmp.gt.f32.partialorder %v536, 0.0
  %vm553 = vcmp.gt.f32.partialorder %v537, 0.0
  %v554 = vmul.f32 %v522, 0.2
  %v555 = vmul.f32 %v523, 0.2
  %v556 = vmul.f32 %v524, 0.2
  %v557 = vmul.f32 %v525, 0.2
  %v558 = vmul.f32 %v526, 0.2
  %v559 = vmul.f32 %v527, 0.2
  %v560 = vmul.f32 %v528, 0.2
  %v561 = vmul.f32 %v529, 0.2
  %v562 = vmul.f32 %v530, 0.2
  %v563 = vmul.f32 %v531, 0.2
  %v564 = vmul.f32 %v532, 0.2
  %v565 = vmul.f32 %v533, 0.2
  %v566 = vmul.f32 %v534, 0.2
  %v567 = vmul.f32 %v535, 0.2
  %v568 = vmul.f32 %v536, 0.2
  %v569 = vmul.f32 %v537, 0.2
  %v570 = vsel %vm538, %v522, %v554
  %v571 = vsel %vm539, %v523, %v555
  %v572 = vsel %vm540, %v524, %v556
  %v573 = vsel %vm541, %v525, %v557
  %v574 = vsel %vm542, %v526, %v558
  %v575 = vsel %vm543, %v527, %v559
  %v576 = vsel %vm544, %v528, %v560
  %v577 = vsel %vm545, %v529, %v561
  %v578 = vsel %vm546, %v530, %v562
  %v579 = vsel %vm547, %v531, %v563
  %v580 = vsel %vm548, %v532, %v564
  %v581 = vsel %vm549, %v533, %v565
  %v582 = vsel %vm550, %v534, %v566
  %v583 = vsel %vm551, %v535, %v567
  %v584 = vsel %vm552, %v536, %v568
  %v585 = vsel %vm553, %v537, %v569
  %586 = vst.msk [vmem:[%s4] sm:$0xff] %vm314, %v570
  %587 = vst.msk [vmem:[%s4 + $0x8] sm:$0xff] %vm314, %v571
  %588 = vst.msk [vmem:[%s4 + $0x10] sm:$0xff] %vm314, %v572
  %589 = vst.msk [vmem:[%s4 + $0x18] sm:$0xff] %vm314, %v573
  %590 = vst.msk [vmem:[%s4 + $0x20] sm:$0xff] %vm314, %v574
  %591 = vst.msk [vmem:[%s4 + $0x28] sm:$0xff] %vm314, %v575
  %592 = vst.msk [vmem:[%s4 + $0x30] sm:$0xff] %vm314, %v576
  %593 = vst.msk [vmem:[%s4 + $0x38] sm:$0xff] %vm314, %v577
  %594 = vst.msk [vmem:[%s4 + $0x40] sm:$0xff] %vm314, %v578
  %595 = vst.msk [vmem:[%s4 + $0x48] sm:$0xff] %vm314, %v579
  %596 = vst.msk [vmem:[%s4 + $0x50] sm:$0xff] %vm314, %v580
  %597 = vst.msk [vmem:[%s4 + $0x58] sm:$0xff] %vm314, %v581
  %598 = vst.msk [vmem:[%s4 + $0x60] sm:$0xff] %vm314, %v582
  %599 = vst.msk [vmem:[%s4 + $0x68] sm:$0xff] %vm314, %v583
  %600 = vst.msk [vmem:[%s4 + $0x70] sm:$0xff] %vm314, %v584
  %601 = vst.msk [vmem:[%s4 + $0x78] sm:$0xff] %vm314, %v585
  // Predicated region
  $region18: #{e4e_initialized_forward.17} parent=0 // pred_check
    _
  $region19: #{e4e_initialized_forward.17} parent=0 // pred_check_branch
    %603 = sbr.rel (0) target = $region21
  $region20: #{e4e_initialized_forward.17} parent=0 // pred_region
    _
  $region21: #{e4e_initialized_forward.17} parent=0 // pred_fallthru
    _
  // Predicated region
  $region22: #{e4e_initialized_forward.17} parent=0 // pred_check
    _
  $region23: #{e4e_initialized_forward.17} parent=0 // pred_check_branch
    %605 = sbr.rel (0) target = $region25
  $region24: #{e4e_initialized_forward.17} parent=0 // pred_region
    _
  $region25: #{e4e_initialized_forward.17} parent=0 // pred_fallthru
    _

// kernel: e4e_initialized_forward.21
$region0: #{e4e_initialized_forward.21}
  #allocation0 [shape = 'u32[]', space=smem, size = 0x4, offset = 0x4, fixed_abs, tag = 'smem constant byte address 0x4 - core index']
  #allocation1 [shape = 'u32[72,128]{1,0:T(1,128)}', space=vmem, size = 0x9000, scoped, tag = 'internal scratch']
  %s0 = inlined_call_operand.vmem [shape: bf16[512,32], index: 0, kind: input, shape index: {}]
  %s1 = inlined_call_operand.vmem [shape: bf16[32,3], index: 1, kind: input, shape index: {}]
  %s2 = inlined_call_operand.vmem [shape: f32[1,3], index: 2, kind: input, shape index: {}]
  %s3 = inlined_call_operand.vmem [shape: f32[512,3], index: 3, kind: output, shape index: {}]
  %s4 = sld [smem:[#allocation0]]
  $region22: #{e4e_initialized_forward.21} parent=0
    _
  %s6 = ssub.s32 1, %s4
  %s7 = scalar_select 0, %s6, %s4
  // Predicated region
  $region2: #{e4e_initialized_forward.21} parent=0 // pred_check
    _
  $region3: #{e4e_initialized_forward.21} parent=0 // pred_check_branch
    %9 = sbr.rel (0) target = $region5
  $region4: #{e4e_initialized_forward.21} parent=0 // pred_region
    _
  $region5: #{e4e_initialized_forward.21} parent=0 // pred_fallthru
    _
  // Predicated region
  $region6: #{e4e_initialized_forward.21} parent=0 // pred_check
    _
  $region7: #{e4e_initialized_forward.21} parent=0 // pred_check_branch
    %11 = sbr.rel (0) target = $region9
  $region8: #{e4e_initialized_forward.21} parent=0 // pred_region
    _
  $region9: #{e4e_initialized_forward.21} parent=0 // pred_fallthru
    _
  // Predicated region
  $region10: #{e4e_initialized_forward.21} parent=0 // pred_check
    _
  $region11: #{e4e_initialized_forward.21} parent=0 // pred_check_branch
    %13 = sbr.rel (0) target = $region13
  $region12: #{e4e_initialized_forward.21} parent=0 // pred_region
    _
  $region13: #{e4e_initialized_forward.21} parent=0 // pred_fallthru
    _
  %v15 = vld [vmem:[%s0] sm:$0xf]
  %v16 = vld [vmem:[%s0 + $0x4] sm:$0xf]
  %v17 = vld [vmem:[%s0 + $0x8] sm:$0xf]
  %v18 = vld [vmem:[%s0 + $0xc] sm:$0xf]
  %v19 = vld [vmem:[%s0 + $0x10] sm:$0xf]
  %v20 = vld [vmem:[%s0 + $0x14] sm:$0xf]
  %v21 = vld [vmem:[%s0 + $0x18] sm:$0xf]
  %v22 = vld [vmem:[%s0 + $0x1c] sm:$0xf]
  %v23 = vld [vmem:[%s0 + $0x20] sm:$0xf]
  %v24 = vld [vmem:[%s0 + $0x24] sm:$0xf]
  %v25 = vld [vmem:[%s0 + $0x28] sm:$0xf]
  %v26 = vld [vmem:[%s0 + $0x2c] sm:$0xf]
  %v27 = vld [vmem:[%s0 + $0x30] sm:$0xf]
  %v28 = vld [vmem:[%s0 + $0x34] sm:$0xf]
  %v29 = vld [vmem:[%s0 + $0x38] sm:$0xf]
  %v30 = vld [vmem:[%s0 + $0x3c] sm:$0xf]
  %v31 = vld [vmem:[%s0 + $0x40] sm:$0xf]
  %v32 = vld [vmem:[%s0 + $0x44] sm:$0xf]
  %v33 = vld [vmem:[%s0 + $0x48] sm:$0xf]
  %v34 = vld [vmem:[%s0 + $0x4c] sm:$0xf]
  %v35 = vld [vmem:[%s0 + $0x50] sm:$0xf]
  %v36 = vld [vmem:[%s0 + $0x54] sm:$0xf]
  %v37 = vld [vmem:[%s0 + $0x58] sm:$0xf]
  %v38 = vld [vmem:[%s0 + $0x5c] sm:$0xf]
  %v39 = vld [vmem:[%s0 + $0x60] sm:$0xf]
  %v40 = vld [vmem:[%s0 + $0x64] sm:$0xf]
  %v41 = vld [vmem:[%s0 + $0x68] sm:$0xf]
  %v42 = vld [vmem:[%s0 + $0x6c] sm:$0xf]
  %v43 = vld [vmem:[%s0 + $0x70] sm:$0xf]
  %v44 = vld [vmem:[%s0 + $0x74] sm:$0xf]
  %v45 = vld [vmem:[%s0 + $0x78] sm:$0xf]
  %v46 = vld [vmem:[%s0 + $0x7c] sm:$0xf]
  %v47 = vld [vmem:[%s0 + $0x80] sm:$0xf]
  %v48 = vld [vmem:[%s0 + $0x84] sm:$0xf]
  %v49 = vld [vmem:[%s0 + $0x88] sm:$0xf]
  %v50 = vld [vmem:[%s0 + $0x8c] sm:$0xf]
  %v51 = vld [vmem:[%s0 + $0x90] sm:$0xf]
  %v52 = vld [vmem:[%s0 + $0x94] sm:$0xf]
  %v53 = vld [vmem:[%s0 + $0x98] sm:$0xf]
  %v54 = vld [vmem:[%s0 + $0x9c] sm:$0xf]
  %v55 = vld [vmem:[%s0 + $0xa0] sm:$0xf]
  %v56 = vld [vmem:[%s0 + $0xa4] sm:$0xf]
  %v57 = vld [vmem:[%s0 + $0xa8] sm:$0xf]
  %v58 = vld [vmem:[%s0 + $0xac] sm:$0xf]
  %v59 = vld [vmem:[%s0 + $0xb0] sm:$0xf]
  %v60 = vld [vmem:[%s0 + $0xb4] sm:$0xf]
  %v61 = vld [vmem:[%s0 + $0xb8] sm:$0xf]
  %v62 = vld [vmem:[%s0 + $0xbc] sm:$0xf]
  %v63 = vld [vmem:[%s0 + $0xc0] sm:$0xf]
  %v64 = vld [vmem:[%s0 + $0xc4] sm:$0xf]
  %v65 = vld [vmem:[%s0 + $0xc8] sm:$0xf]
  %v66 = vld [vmem:[%s0 + $0xcc] sm:$0xf]
  %v67 = vld [vmem:[%s0 + $0xd0] sm:$0xf]
  %v68 = vld [vmem:[%s0 + $0xd4] sm:$0xf]
  %v69 = vld [vmem:[%s0 + $0xd8] sm:$0xf]
  %v70 = vld [vmem:[%s0 + $0xdc] sm:$0xf]
  %v71 = vld [vmem:[%s0 + $0xe0] sm:$0xf]
  %v72 = vld [vmem:[%s0 + $0xe4] sm:$0xf]
  %v73 = vld [vmem:[%s0 + $0xe8] sm:$0xf]
  %v74 = vld [vmem:[%s0 + $0xec] sm:$0xf]
  %v75 = vld [vmem:[%s0 + $0xf0] sm:$0xf]
  %v76 = vld [vmem:[%s0 + $0xf4] sm:$0xf]
  %v77 = vld [vmem:[%s0 + $0xf8] sm:$0xf]
  %v78 = vld [vmem:[%s0 + $0xfc] sm:$0xf]
  %v79 = vld [vmem:[%s1] sm:$0xf]
  %v80 = vld [vmem:[%s1 + $0x4] sm:$0xf]
  %v81 = vld [vmem:[%s1 + $0x8] sm:$0xf]
  %v82 = vld [vmem:[%s1 + $0xc] sm:$0xf]
  %v83 = vld [vmem:[%s2] sm:$0x1]
  %v85 = vperm.slane %v83, 0
  %v151 = vunpack.c.l.b16 %v15
  %v152 = vunpack.c.l.b16 %v16
  %v153 = vunpack.c.l.b16 %v17
  %v154 = vunpack.c.l.b16 %v18
  %v155 = vunpack.c.l.b16 %v19
  %v156 = vunpack.c.l.b16 %v20
  %v157 = vunpack.c.l.b16 %v21
  %v158 = vunpack.c.l.b16 %v22
  %v159 = vunpack.c.l.b16 %v23
  %v160 = vunpack.c.l.b16 %v24
  %v161 = vunpack.c.l.b16 %v25
  %v162 = vunpack.c.l.b16 %v26
  %v163 = vunpack.c.l.b16 %v27
  %v164 = vunpack.c.l.b16 %v28
  %v165 = vunpack.c.l.b16 %v29
  %v166 = vunpack.c.l.b16 %v30
  %v167 = vunpack.c.l.b16 %v31
  %v168 = vunpack.c.l.b16 %v32
  %v169 = vunpack.c.l.b16 %v33
  %v170 = vunpack.c.l.b16 %v34
  %v171 = vunpack.c.l.b16 %v35
  %v172 = vunpack.c.l.b16 %v36
  %v173 = vunpack.c.l.b16 %v37
  %v174 = vunpack.c.l.b16 %v38
  %v175 = vunpack.c.l.b16 %v39
  %v176 = vunpack.c.l.b16 %v40
  %v177 = vunpack.c.l.b16 %v41
  %v178 = vunpack.c.l.b16 %v42
  %v179 = vunpack.c.l.b16 %v43
  %v180 = vunpack.c.l.b16 %v44
  %v181 = vunpack.c.l.b16 %v45
  %v182 = vunpack.c.l.b16 %v46
  %v183 = vunpack.c.l.b16 %v47
  %v184 = vunpack.c.l.b16 %v48
  %v185 = vunpack.c.l.b16 %v49
  %v186 = vunpack.c.l.b16 %v50
  %v187 = vunpack.c.l.b16 %v51
  %v188 = vunpack.c.l.b16 %v52
  %v189 = vunpack.c.l.b16 %v53
  %v190 = vunpack.c.l.b16 %v54
  %v191 = vunpack.c.l.b16 %v55
  %v192 = vunpack.c.l.b16 %v56
  %v193 = vunpack.c.l.b16 %v57
  %v194 = vunpack.c.l.b16 %v58
  %v195 = vunpack.c.l.b16 %v59
  %v196 = vunpack.c.l.b16 %v60
  %v197 = vunpack.c.l.b16 %v61
  %v198 = vunpack.c.l.b16 %v62
  %v199 = vunpack.c.l.b16 %v63
  %v200 = vunpack.c.l.b16 %v64
  %v201 = vunpack.c.l.b16 %v65
  %v202 = vunpack.c.l.b16 %v66
  %v203 = vunpack.c.l.b16 %v67
  %v204 = vunpack.c.l.b16 %v68
  %v205 = vunpack.c.l.b16 %v69
  %v206 = vunpack.c.l.b16 %v70
  %v207 = vunpack.c.l.b16 %v71
  %v208 = vunpack.c.l.b16 %v72
  %v209 = vunpack.c.l.b16 %v73
  %v210 = vunpack.c.l.b16 %v74
  %v211 = vunpack.c.l.b16 %v75
  %v212 = vunpack.c.l.b16 %v76
  %v213 = vunpack.c.l.b16 %v77
  %v214 = vunpack.c.l.b16 %v78
  %v215 = vpack.c.b16 %v152, %v151
  %v216 = vpack.c.b16 %v154, %v153
  %v217 = vpack.c.b16 %v156, %v155
  %v218 = vpack.c.b16 %v158, %v157
  %v219 = vpack.c.b16 %v160, %v159
  %v220 = vpack.c.b16 %v162, %v161
  %v221 = vpack.c.b16 %v164, %v163
  %v222 = vpack.c.b16 %v166, %v165
  %v223 = vpack.c.b16 %v168, %v167
  %v224 = vpack.c.b16 %v170, %v169
  %v225 = vpack.c.b16 %v172, %v171
  %v226 = vpack.c.b16 %v174, %v173
  %v227 = vpack.c.b16 %v176, %v175
  %v228 = vpack.c.b16 %v178, %v177
  %v229 = vpack.c.b16 %v180, %v179
  %v230 = vpack.c.b16 %v182, %v181
  %v231 = vpack.c.b16 %v184, %v183
  %v232 = vpack.c.b16 %v186, %v185
  %v233 = vpack.c.b16 %v188, %v187
  %v234 = vpack.c.b16 %v190, %v189
  %v235 = vpack.c.b16 %v192, %v191
  %v236 = vpack.c.b16 %v194, %v193
  %v237 = vpack.c.b16 %v196, %v195
  %v238 = vpack.c.b16 %v198, %v197
  %v239 = vpack.c.b16 %v200, %v199
  %v240 = vpack.c.b16 %v202, %v201
  %v241 = vpack.c.b16 %v204, %v203
  %v242 = vpack.c.b16 %v206, %v205
  %v243 = vpack.c.b16 %v208, %v207
  %v244 = vpack.c.b16 %v210, %v209
  %v245 = vpack.c.b16 %v212, %v211
  %v246 = vpack.c.b16 %v214, %v213
  %v251 = vunpack.c.l.b16 %v79
  %v252 = vunpack.c.l.b16 %v80
  %v253 = vunpack.c.l.b16 %v81
  %v254 = vunpack.c.l.b16 %v82
  %v255 = vpack.c.b16 %v252, %v251
  %v256 = vpack.c.b16 %v254, %v253
  %vm259 = vcmask 261120
  %v261 = vsel %vm259, %v215, 0
  %v264 = vsel %vm259, %v216, 0
  %v267 = vsel %vm259, %v217, 0
  %v270 = vsel %vm259, %v218, 0
  %v273 = vsel %vm259, %v219, 0
  %v276 = vsel %vm259, %v220, 0
  %v279 = vsel %vm259, %v221, 0
  %v282 = vsel %vm259, %v222, 0
  %v285 = vsel %vm259, %v223, 0
  %v288 = vsel %vm259, %v224, 0
  %v291 = vsel %vm259, %v225, 0
  %v294 = vsel %vm259, %v226, 0
  %v297 = vsel %vm259, %v227, 0
  %v300 = vsel %vm259, %v228, 0
  %v303 = vsel %vm259, %v229, 0
  %v306 = vsel %vm259, %v230, 0
  %v309 = vsel %vm259, %v231, 0
  %v312 = vsel %vm259, %v232, 0
  %v315 = vsel %vm259, %v233, 0
  %v318 = vsel %vm259, %v234, 0
  %v321 = vsel %vm259, %v235, 0
  %v324 = vsel %vm259, %v236, 0
  %v327 = vsel %vm259, %v237, 0
  %v330 = vsel %vm259, %v238, 0
  %v333 = vsel %vm259, %v239, 0
  %v336 = vsel %vm259, %v240, 0
  %v339 = vsel %vm259, %v241, 0
  %v342 = vsel %vm259, %v242, 0
  %v345 = vsel %vm259, %v243, 0
  %v348 = vsel %vm259, %v244, 0
  %v351 = vsel %vm259, %v245, 0
  %v354 = vsel %vm259, %v246, 0
  %356 = vmatpush.bf16.msra.mxu0 0
  %357 = vmatpush.bf16.msra.mxu0 0
  %358 = vmatpush.bf16.msra.mxu0 0
  %359 = vmatpush.bf16.msra.mxu0 0
  %360 = vmatpush.bf16.msra.mxu0 0
  %361 = vmatpush.bf16.msra.mxu0 0
  %362 = vmatpush.bf16.msra.mxu0 %v256
  %363 = vmatpush.bf16.msra.mxu0 %v255
  %364 = vmatmul.bf16.gmra.mxu0 %v261
  %v365 = vpop.f32.mrf.mxu0
  %v366 = vadd.f32 %v85, %v365
  %v367 = vpop.f32.mrf.mxu0
  %v368 = vadd.f32 %v85, %v367
  %369 = vmatmul.bf16.gmra.mxu0 %v264
  %v370 = vpop.f32.mrf.mxu0
  %v371 = vadd.f32 %v85, %v370
  %v372 = vpop.f32.mrf.mxu0
  %v373 = vadd.f32 %v85, %v372
  %374 = vmatmul.bf16.gmra.mxu0 %v267
  %v375 = vpop.f32.mrf.mxu0
  %v376 = vadd.f32 %v85, %v375
  %v377 = vpop.f32.mrf.mxu0
  %v378 = vadd.f32 %v85, %v377
  %379 = vmatmul.bf16.gmra.mxu0 %v270
  %v380 = vpop.f32.mrf.mxu0
  %v381 = vadd.f32 %v85, %v380
  %v382 = vpop.f32.mrf.mxu0
  %v383 = vadd.f32 %v85, %v382
  %384 = vmatmul.bf16.gmra.mxu0 %v273
  %v385 = vpop.f32.mrf.mxu0
  %v386 = vadd.f32 %v85, %v385
  %v387 = vpop.f32.mrf.mxu0
  %v388 = vadd.f32 %v85, %v387
  %389 = vmatmul.bf16.gmra.mxu0 %v276
  %v390 = vpop.f32.mrf.mxu0
  %v391 = vadd.f32 %v85, %v390
  %v392 = vpop.f32.mrf.mxu0
  %v393 = vadd.f32 %v85, %v392
  %394 = vmatmul.bf16.gmra.mxu0 %v279
  %v395 = vpop.f32.mrf.mxu0
  %v396 = vadd.f32 %v85, %v395
  %v397 = vpop.f32.mrf.mxu0
  %v398 = vadd.f32 %v85, %v397
  %399 = vmatmul.bf16.gmra.mxu0 %v282
  %v400 = vpop.f32.mrf.mxu0
  %v401 = vadd.f32 %v85, %v400
  %v402 = vpop.f32.mrf.mxu0
  %v403 = vadd.f32 %v85, %v402
  %404 = vmatmul.bf16.gmra.mxu0 %v285
  %v405 = vpop.f32.mrf.mxu0
  %v406 = vadd.f32 %v85, %v405
  %v407 = vpop.f32.mrf.mxu0
  %v408 = vadd.f32 %v85, %v407
  %409 = vmatmul.bf16.gmra.mxu0 %v288
  %v410 = vpop.f32.mrf.mxu0
  %v411 = vadd.f32 %v85, %v410
  %v412 = vpop.f32.mrf.mxu0
  %v413 = vadd.f32 %v85, %v412
  %414 = vmatmul.bf16.gmra.mxu0 %v291
  %v415 = vpop.f32.mrf.mxu0
  %v416 = vadd.f32 %v85, %v415
  %v417 = vpop.f32.mrf.mxu0
  %v418 = vadd.f32 %v85, %v417
  %419 = vmatmul.bf16.gmra.mxu0 %v294
  %v420 = vpop.f32.mrf.mxu0
  %v421 = vadd.f32 %v85, %v420
  %v422 = vpop.f32.mrf.mxu0
  %v423 = vadd.f32 %v85, %v422
  %424 = vmatmul.bf16.gmra.mxu0 %v297
  %v425 = vpop.f32.mrf.mxu0
  %v426 = vadd.f32 %v85, %v425
  %v427 = vpop.f32.mrf.mxu0
  %v428 = vadd.f32 %v85, %v427
  %429 = vmatmul.bf16.gmra.mxu0 %v300
  %v430 = vpop.f32.mrf.mxu0
  %v431 = vadd.f32 %v85, %v430
  %v432 = vpop.f32.mrf.mxu0
  %v433 = vadd.f32 %v85, %v432
  %434 = vmatmul.bf16.gmra.mxu0 %v303
  %v435 = vpop.f32.mrf.mxu0
  %v436 = vadd.f32 %v85, %v435
  %v437 = vpop.f32.mrf.mxu0
  %v438 = vadd.f32 %v85, %v437
  %439 = vmatmul.bf16.gmra.mxu0 %v306
  %v440 = vpop.f32.mrf.mxu0
  %v441 = vadd.f32 %v85, %v440
  %v442 = vpop.f32.mrf.mxu0
  %v443 = vadd.f32 %v85, %v442
  %444 = vmatmul.bf16.gmra.mxu0 %v309
  %v445 = vpop.f32.mrf.mxu0
  %v446 = vadd.f32 %v85, %v445
  %v447 = vpop.f32.mrf.mxu0
  %v448 = vadd.f32 %v85, %v447
  %449 = vmatmul.bf16.gmra.mxu0 %v312
  %v450 = vpop.f32.mrf.mxu0
  %v451 = vadd.f32 %v85, %v450
  %v452 = vpop.f32.mrf.mxu0
  %v453 = vadd.f32 %v85, %v452
  %454 = vmatmul.bf16.gmra.mxu0 %v315
  %v455 = vpop.f32.mrf.mxu0
  %v456 = vadd.f32 %v85, %v455
  %v457 = vpop.f32.mrf.mxu0
  %v458 = vadd.f32 %v85, %v457
  %459 = vmatmul.bf16.gmra.mxu0 %v318
  %v460 = vpop.f32.mrf.mxu0
  %v461 = vadd.f32 %v85, %v460
  %v462 = vpop.f32.mrf.mxu0
  %v463 = vadd.f32 %v85, %v462
  %464 = vmatmul.bf16.gmra.mxu0 %v321
  %v465 = vpop.f32.mrf.mxu0
  %v466 = vadd.f32 %v85, %v465
  %v467 = vpop.f32.mrf.mxu0
  %v468 = vadd.f32 %v85, %v467
  %469 = vmatmul.bf16.gmra.mxu0 %v324
  %v470 = vpop.f32.mrf.mxu0
  %v471 = vadd.f32 %v85, %v470
  %v472 = vpop.f32.mrf.mxu0
  %v473 = vadd.f32 %v85, %v472
  %474 = vmatmul.bf16.gmra.mxu0 %v327
  %v475 = vpop.f32.mrf.mxu0
  %v476 = vadd.f32 %v85, %v475
  %v477 = vpop.f32.mrf.mxu0
  %v478 = vadd.f32 %v85, %v477
  %479 = vmatmul.bf16.gmra.mxu0 %v330
  %v480 = vpop.f32.mrf.mxu0
  %v481 = vadd.f32 %v85, %v480
  %v482 = vpop.f32.mrf.mxu0
  %v483 = vadd.f32 %v85, %v482
  %484 = vmatmul.bf16.gmra.mxu0 %v333
  %v485 = vpop.f32.mrf.mxu0
  %v486 = vadd.f32 %v85, %v485
  %v487 = vpop.f32.mrf.mxu0
  %v488 = vadd.f32 %v85, %v487
  %489 = vmatmul.bf16.gmra.mxu0 %v336
  %v490 = vpop.f32.mrf.mxu0
  %v491 = vadd.f32 %v85, %v490
  %v492 = vpop.f32.mrf.mxu0
  %v493 = vadd.f32 %v85, %v492
  %494 = vmatmul.bf16.gmra.mxu0 %v339
  %v495 = vpop.f32.mrf.mxu0
  %v496 = vadd.f32 %v85, %v495
  %v497 = vpop.f32.mrf.mxu0
  %v498 = vadd.f32 %v85, %v497
  %499 = vmatmul.bf16.gmra.mxu0 %v342
  %v500 = vpop.f32.mrf.mxu0
  %v501 = vadd.f32 %v85, %v500
  %v502 = vpop.f32.mrf.mxu0
  %v503 = vadd.f32 %v85, %v502
  %504 = vmatmul.bf16.gmra.mxu0 %v345
  %v505 = vpop.f32.mrf.mxu0
  %v506 = vadd.f32 %v85, %v505
  %v507 = vpop.f32.mrf.mxu0
  %v508 = vadd.f32 %v85, %v507
  %509 = vmatmul.bf16.gmra.mxu0 %v348
  %v510 = vpop.f32.mrf.mxu0
  %v511 = vadd.f32 %v85, %v510
  %v512 = vpop.f32.mrf.mxu0
  %v513 = vadd.f32 %v85, %v512
  %514 = vmatmul.bf16.gmra.mxu0 %v351
  %v515 = vpop.f32.mrf.mxu0
  %v516 = vadd.f32 %v85, %v515
  %v517 = vpop.f32.mrf.mxu0
  %v518 = vadd.f32 %v85, %v517
  %519 = vmatmul.bf16.gmra.mxu0 %v354
  %v520 = vpop.f32.mrf.mxu0
  %v521 = vadd.f32 %v85, %v520
  %v522 = vpop.f32.mrf.mxu0
  %v523 = vadd.f32 %v85, %v522
  %524 = vdwg.mxu0
  %vm525 = vcmask 23552
  %526 = vst.msk [vmem:[%s3] sm:$0xff] %vm525, %v366
  %527 = vst.msk [vmem:[%s3 + $0x8] sm:$0xff] %vm525, %v368
  %528 = vst.msk [vmem:[%s3 + $0x10] sm:$0xff] %vm525, %v371
  %529 = vst.msk [vmem:[%s3 + $0x18] sm:$0xff] %vm525, %v373
  %530 = vst.msk [vmem:[%s3 + $0x20] sm:$0xff] %vm525, %v376
  %531 = vst.msk [vmem:[%s3 + $0x28] sm:$0xff] %vm525, %v378
  %532 = vst.msk [vmem:[%s3 + $0x30] sm:$0xff] %vm525, %v381
  %533 = vst.msk [vmem:[%s3 + $0x38] sm:$0xff] %vm525, %v383
  %534 = vst.msk [vmem:[%s3 + $0x40] sm:$0xff] %vm525, %v386
  %535 = vst.msk [vmem:[%s3 + $0x48] sm:$0xff] %vm525, %v388
  %536 = vst.msk [vmem:[%s3 + $0x50] sm:$0xff] %vm525, %v391
  %537 = vst.msk [vmem:[%s3 + $0x58] sm:$0xff] %vm525, %v393
  %538 = vst.msk [vmem:[%s3 + $0x60] sm:$0xff] %vm525, %v396
  %539 = vst.msk [vmem:[%s3 + $0x68] sm:$0xff] %vm525, %v398
  %540 = vst.msk [vmem:[%s3 + $0x70] sm:$0xff] %vm525, %v401
  %541 = vst.msk [vmem:[%s3 + $0x78] sm:$0xff] %vm525, %v403
  %542 = vst.msk [vmem:[%s3 + $0x80] sm:$0xff] %vm525, %v406
  %543 = vst.msk [vmem:[%s3 + $0x88] sm:$0xff] %vm525, %v408
  %544 = vst.msk [vmem:[%s3 + $0x90] sm:$0xff] %vm525, %v411
  %545 = vst.msk [vmem:[%s3 + $0x98] sm:$0xff] %vm525, %v413
  %546 = vst.msk [vmem:[%s3 + $0xa0] sm:$0xff] %vm525, %v416
  %547 = vst.msk [vmem:[%s3 + $0xa8] sm:$0xff] %vm525, %v418
  %548 = vst.msk [vmem:[%s3 + $0xb0] sm:$0xff] %vm525, %v421
  %549 = vst.msk [vmem:[%s3 + $0xb8] sm:$0xff] %vm525, %v423
  %550 = vst.msk [vmem:[%s3 + $0xc0] sm:$0xff] %vm525, %v426
  %551 = vst.msk [vmem:[%s3 + $0xc8] sm:$0xff] %vm525, %v428
  %552 = vst.msk [vmem:[%s3 + $0xd0] sm:$0xff] %vm525, %v431
  %553 = vst.msk [vmem:[%s3 + $0xd8] sm:$0xff] %vm525, %v433
  %554 = vst.msk [vmem:[%s3 + $0xe0] sm:$0xff] %vm525, %v436
  %555 = vst.msk [vmem:[%s3 + $0xe8] sm:$0xff] %vm525, %v438
  %556 = vst.msk [vmem:[%s3 + $0xf0] sm:$0xff] %vm525, %v441
  %557 = vst.msk [vmem:[%s3 + $0xf8] sm:$0xff] %vm525, %v443
  %558 = vst.msk [vmem:[%s3 + $0x100] sm:$0xff] %vm525, %v446
  %559 = vst.msk [vmem:[%s3 + $0x108] sm:$0xff] %vm525, %v448
  %560 = vst.msk [vmem:[%s3 + $0x110] sm:$0xff] %vm525, %v451
  %561 = vst.msk [vmem:[%s3 + $0x118] sm:$0xff] %vm525, %v453
  %562 = vst.msk [vmem:[%s3 + $0x120] sm:$0xff] %vm525, %v456
  %563 = vst.msk [vmem:[%s3 + $0x128] sm:$0xff] %vm525, %v458
  %564 = vst.msk [vmem:[%s3 + $0x130] sm:$0xff] %vm525, %v461
  %565 = vst.msk [vmem:[%s3 + $0x138] sm:$0xff] %vm525, %v463
  %566 = vst.msk [vmem:[%s3 + $0x140] sm:$0xff] %vm525, %v466
  %567 = vst.msk [vmem:[%s3 + $0x148] sm:$0xff] %vm525, %v468
  %568 = vst.msk [vmem:[%s3 + $0x150] sm:$0xff] %vm525, %v471
  %569 = vst.msk [vmem:[%s3 + $0x158] sm:$0xff] %vm525, %v473
  %570 = vst.msk [vmem:[%s3 + $0x160] sm:$0xff] %vm525, %v476
  %571 = vst.msk [vmem:[%s3 + $0x168] sm:$0xff] %vm525, %v478
  %572 = vst.msk [vmem:[%s3 + $0x170] sm:$0xff] %vm525, %v481
  %573 = vst.msk [vmem:[%s3 + $0x178] sm:$0xff] %vm525, %v483
  %574 = vst.msk [vmem:[%s3 + $0x180] sm:$0xff] %vm525, %v486
  %575 = vst.msk [vmem:[%s3 + $0x188] sm:$0xff] %vm525, %v488
  %576 = vst.msk [vmem:[%s3 + $0x190] sm:$0xff] %vm525, %v491
  %577 = vst.msk [vmem:[%s3 + $0x198] sm:$0xff] %vm525, %v493
  %578 = vst.msk [vmem:[%s3 + $0x1a0] sm:$0xff] %vm525, %v496
  %579 = vst.msk [vmem:[%s3 + $0x1a8] sm:$0xff] %vm525, %v498
  %580 = vst.msk [vmem:[%s3 + $0x1b0] sm:$0xff] %vm525, %v501
  %581 = vst.msk [vmem:[%s3 + $0x1b8] sm:$0xff] %vm525, %v503
  %582 = vst.msk [vmem:[%s3 + $0x1c0] sm:$0xff] %vm525, %v506
  %583 = vst.msk [vmem:[%s3 + $0x1c8] sm:$0xff] %vm525, %v508
  %584 = vst.msk [vmem:[%s3 + $0x1d0] sm:$0xff] %vm525, %v511
  %585 = vst.msk [vmem:[%s3 + $0x1d8] sm:$0xff] %vm525, %v513
  %586 = vst.msk [vmem:[%s3 + $0x1e0] sm:$0xff] %vm525, %v516
  %587 = vst.msk [vmem:[%s3 + $0x1e8] sm:$0xff] %vm525, %v518
  %588 = vst.msk [vmem:[%s3 + $0x1f0] sm:$0xff] %vm525, %v521
  %589 = vst.msk [vmem:[%s3 + $0x1f8] sm:$0xff] %vm525, %v523
  // Predicated region
  $region14: #{e4e_initialized_forward.21} parent=0 // pred_check
    _
  $region15: #{e4e_initialized_forward.21} parent=0 // pred_check_branch
    %591 = sbr.rel (0) target = $region17
  $region16: #{e4e_initialized_forward.21} parent=0 // pred_region
    _
  $region17: #{e4e_initialized_forward.21} parent=0 // pred_fallthru
    _
  // Predicated region
  $region18: #{e4e_initialized_forward.21} parent=0 // pred_check
    _
  $region19: #{e4e_initialized_forward.21} parent=0 // pred_check_branch
    %593 = sbr.rel (0) target = $region21
  $region20: #{e4e_initialized_forward.21} parent=0 // pred_region
    _
  $region21: #{e4e_initialized_forward.21} parent=0 // pred_fallthru
    _

// kernel: e4e_initialized_forward.19
$region0: #{e4e_initialized_forward.19}
  #allocation0 [shape = 'u32[]', space=smem, size = 0x4, offset = 0x4, fixed_abs, tag = 'smem constant byte address 0x4 - core index']
  #allocation1 [shape = 'u32[72,128]{1,0:T(1,128)}', space=vmem, size = 0x9000, scoped, tag = 'internal scratch']
  %s0 = inlined_call_operand.vmem [shape: bf16[512,288], index: 0, kind: input, shape index: {}]
  %s1 = inlined_call_operand.vmem [shape: bf16[288,32], index: 1, kind: input, shape index: {}]
  %s2 = inlined_call_operand.vmem [shape: f32[512,32], index: 2, kind: input, shape index: {}]
  %s3 = inlined_call_operand.vmem [shape: f32[1,32], index: 3, kind: input, shape index: {}]
  %s4 = inlined_call_operand.vmem [shape: f32[512,32], index: 4, kind: output, shape index: {}]
  %s5 = sld [smem:[#allocation0]]
  $region26: #{e4e_initialized_forward.19} parent=0
    _
  %s7 = ssub.s32 1, %s5
  %s8 = scalar_select 0, %s7, %s5
  // Predicated region
  $region2: #{e4e_initialized_forward.19} parent=0 // pred_check
    _
  $region3: #{e4e_initialized_forward.19} parent=0 // pred_check_branch
    %10 = sbr.rel (0) target = $region5
  $region4: #{e4e_initialized_forward.19} parent=0 // pred_region
    _
  $region5: #{e4e_initialized_forward.19} parent=0 // pred_fallthru
    _
  // Predicated region
  $region6: #{e4e_initialized_forward.19} parent=0 // pred_check
    _
  $region7: #{e4e_initialized_forward.19} parent=0 // pred_check_branch
    %12 = sbr.rel (0) target = $region9
  $region8: #{e4e_initialized_forward.19} parent=0 // pred_region
    _
  $region9: #{e4e_initialized_forward.19} parent=0 // pred_fallthru
    _
  // Predicated region
  $region10: #{e4e_initialized_forward.19} parent=0 // pred_check
    _
  $region11: #{e4e_initialized_forward.19} parent=0 // pred_check_branch
    %14 = sbr.rel (0) target = $region13
  $region12: #{e4e_initialized_forward.19} parent=0 // pred_region
    _
  $region13: #{e4e_initialized_forward.19} parent=0 // pred_fallthru
    _
  // Predicated region
  $region14: #{e4e_initialized_forward.19} parent=0 // pred_check
    _
  $region15: #{e4e_initialized_forward.19} parent=0 // pred_check_branch
    %16 = sbr.rel (0) target = $region17
  $region16: #{e4e_initialized_forward.19} parent=0 // pred_region
    _
  $region17: #{e4e_initialized_forward.19} parent=0 // pred_fallthru
    _
  %v18 = vld [vmem:[%s0] sm:$0xff]
  %v19 = vld [vmem:[%s0 + $0x8] sm:$0xf]
  %v20 = vld [vmem:[%s0 + $0xc] sm:$0xff]
  %v21 = vld [vmem:[%s0 + $0x14] sm:$0xf]
  %v22 = vld [vmem:[%s0 + $0x18] sm:$0xff]
  %v23 = vld [vmem:[%s0 + $0x20] sm:$0xf]
  %v24 = vld [vmem:[%s0 + $0x24] sm:$0xff]
  %v25 = vld [vmem:[%s0 + $0x2c] sm:$0xf]
  %v26 = vld [vmem:[%s0 + $0x30] sm:$0xff]
  %v27 = vld [vmem:[%s0 + $0x38] sm:$0xf]
  %v28 = vld [vmem:[%s0 + $0x3c] sm:$0xff]
  %v29 = vld [vmem:[%s0 + $0x44] sm:$0xf]
  %v30 = vld [vmem:[%s0 + $0x48] sm:$0xff]
  %v31 = vld [vmem:[%s0 + $0x50] sm:$0xf]
  %v32 = vld [vmem:[%s0 + $0x54] sm:$0xff]
  %v33 = vld [vmem:[%s0 + $0x5c] sm:$0xf]
  %v34 = vld [vmem:[%s0 + $0x60] sm:$0xff]
  %v35 = vld [vmem:[%s0 + $0x68] sm:$0xf]
  %v36 = vld [vmem:[%s0 + $0x6c] sm:$0xff]
  %v37 = vld [vmem:[%s0 + $0x74] sm:$0xf]
  %v38 = vld [vmem:[%s0 + $0x78] sm:$0xff]
  %v39 = vld [vmem:[%s0 + $0x80] sm:$0xf]
  %v40 = vld [vmem:[%s0 + $0x84] sm:$0xff]
  %v41 = vld [vmem:[%s0 + $0x8c] sm:$0xf]
  %v42 = vld [vmem:[%s0 + $0x90] sm:$0xff]
  %v43 = vld [vmem:[%s0 + $0x98] sm:$0xf]
  %v44 = vld [vmem:[%s0 + $0x9c] sm:$0xff]
  %v45 = vld [vmem:[%s0 + $0xa4] sm:$0xf]
  %v46 = vld [vmem:[%s0 + $0xa8] sm:$0xff]
  %v47 = vld [vmem:[%s0 + $0xb0] sm:$0xf]
  %v48 = vld [vmem:[%s0 + $0xb4] sm:$0xff]
  %v49 = vld [vmem:[%s0 + $0xbc] sm:$0xf]
  %v50 = vld [vmem:[%s0 + $0xc0] sm:$0xff]
  %v51 = vld [vmem:[%s0 + $0xc8] sm:$0xf]
  %v52 = vld [vmem:[%s0 + $0xcc] sm:$0xff]
  %v53 = vld [vmem:[%s0 + $0xd4] sm:$0xf]
  %v54 = vld [vmem:[%s0 + $0xd8] sm:$0xff]
  %v55 = vld [vmem:[%s0 + $0xe0] sm:$0xf]
  %v56 = vld [vmem:[%s0 + $0xe4] sm:$0xff]
  %v57 = vld [vmem:[%s0 + $0xec] sm:$0xf]
  %v58 = vld [vmem:[%s0 + $0xf0] sm:$0xff]
  %v59 = vld [vmem:[%s0 + $0xf8] sm:$0xf]
  %v60 = vld [vmem:[%s0 + $0xfc] sm:$0xff]
  %v61 = vld [vmem:[%s0 + $0x104] sm:$0xf]
  %v62 = vld [vmem:[%s0 + $0x108] sm:$0xff]
  %v63 = vld [vmem:[%s0 + $0x110] sm:$0xf]
  %v64 = vld [vmem:[%s0 + $0x114] sm:$0xff]
  %v65 = vld [vmem:[%s0 + $0x11c] sm:$0xf]
  %v66 = vld [vmem:[%s0 + $0x120] sm:$0xff]
  %v67 = vld [vmem:[%s0 + $0x128] sm:$0xf]
  %v68 = vld [vmem:[%s0 + $0x12c] sm:$0xff]
  %v69 = vld [vmem:[%s0 + $0x134] sm:$0xf]
  %v70 = vld [vmem:[%s0 + $0x138] sm:$0xff]
  %v71 = vld [vmem:[%s0 + $0x140] sm:$0xf]
  %v72 = vld [vmem:[%s0 + $0x144] sm:$0xff]
  %v73 = vld [vmem:[%s0 + $0x14c] sm:$0xf]
  %v74 = vld [vmem:[%s0 + $0x150] sm:$0xff]
  %v75 = vld [vmem:[%s0 + $0x158] sm:$0xf]
  %v76 = vld [vmem:[%s0 + $0x15c] sm:$0xff]
  %v77 = vld [vmem:[%s0 + $0x164] sm:$0xf]
  %v78 = vld [vmem:[%s0 + $0x168] sm:$0xff]
  %v79 = vld [vmem:[%s0 + $0x170] sm:$0xf]
  %v80 = vld [vmem:[%s0 + $0x174] sm:$0xff]
  %v81 = vld [vmem:[%s0 + $0x17c] sm:$0xf]
  %v82 = vld [vmem:[%s0 + $0x180] sm:$0xff]
  %v83 = vld [vmem:[%s0 + $0x188] sm:$0xf]
  %v84 = vld [vmem:[%s0 + $0x18c] sm:$0xff]
  %v85 = vld [vmem:[%s0 + $0x194] sm:$0xf]
  %v86 = vld [vmem:[%s0 + $0x198] sm:$0xff]
  %v87 = vld [vmem:[%s0 + $0x1a0] sm:$0xf]
  %v88 = vld [vmem:[%s0 + $0x1a4] sm:$0xff]
  %v89 = vld [vmem:[%s0 + $0x1ac] sm:$0xf]
  %v90 = vld [vmem:[%s0 + $0x1b0] sm:$0xff]
  %v91 = vld [vmem:[%s0 + $0x1b8] sm:$0xf]
  %v92 = vld [vmem:[%s0 + $0x1bc] sm:$0xff]
  %v93 = vld [vmem:[%s0 + $0x1c4] sm:$0xf]
  %v94 = vld [vmem:[%s0 + $0x1c8] sm:$0xff]
  %v95 = vld [vmem:[%s0 + $0x1d0] sm:$0xf]
  %v96 = vld [vmem:[%s0 + $0x1d4] sm:$0xff]
  %v97 = vld [vmem:[%s0 + $0x1dc] sm:$0xf]
  %v98 = vld [vmem:[%s0 + $0x1e0] sm:$0xff]
  %v99 = vld [vmem:[%s0 + $0x1e8] sm:$0xf]
  %v100 = vld [vmem:[%s0 + $0x1ec] sm:$0xff]
  %v101 = vld [vmem:[%s0 + $0x1f4] sm:$0xf]
  %v102 = vld [vmem:[%s0 + $0x1f8] sm:$0xff]
  %v103 = vld [vmem:[%s0 + $0x200] sm:$0xf]
  %v104 = vld [vmem:[%s0 + $0x204] sm:$0xff]
  %v105 = vld [vmem:[%s0 + $0x20c] sm:$0xf]
  %v106 = vld [vmem:[%s0 + $0x210] sm:$0xff]
  %v107 = vld [vmem:[%s0 + $0x218] sm:$0xf]
  %v108 = vld [vmem:[%s0 + $0x21c] sm:$0xff]
  %v109 = vld [vmem:[%s0 + $0x224] sm:$0xf]
  %v110 = vld [vmem:[%s0 + $0x228] sm:$0xff]
  %v111 = vld [vmem:[%s0 + $0x230] sm:$0xf]
  %v112 = vld [vmem:[%s0 + $0x234] sm:$0xff]
  %v113 = vld [vmem:[%s0 + $0x23c] sm:$0xf]
  %v114 = vld [vmem:[%s0 + $0x240] sm:$0xff]
  %v115 = vld [vmem:[%s0 + $0x248] sm:$0xf]
  %v116 = vld [vmem:[%s0 + $0x24c] sm:$0xff]
  %v117 = vld [vmem:[%s0 + $0x254] sm:$0xf]
  %v118 = vld [vmem:[%s0 + $0x258] sm:$0xff]
  %v119 = vld [vmem:[%s0 + $0x260] sm:$0xf]
  %v120 = vld [vmem:[%s0 + $0x264] sm:$0xff]
  %v121 = vld [vmem:[%s0 + $0x26c] sm:$0xf]
  %v122 = vld [vmem:[%s0 + $0x270] sm:$0xff]
  %v123 = vld [vmem:[%s0 + $0x278] sm:$0xf]
  %v124 = vld [vmem:[%s0 + $0x27c] sm:$0xff]
  %v125 = vld [vmem:[%s0 + $0x284] sm:$0xf]
  %v126 = vld [vmem:[%s0 + $0x288] sm:$0xff]
  %v127 = vld [vmem:[%s0 + $0x290] sm:$0xf]
  %v128 = vld [vmem:[%s0 + $0x294] sm:$0xff]
  %v129 = vld [vmem:[%s0 + $0x29c] sm:$0xf]
  %v130 = vld [vmem:[%s0 + $0x2a0] sm:$0xff]
  %v131 = vld [vmem:[%s0 + $0x2a8] sm:$0xf]
  %v132 = vld [vmem:[%s0 + $0x2ac] sm:$0xff]
  %v133 = vld [vmem:[%s0 + $0x2b4] sm:$0xf]
  %v134 = vld [vmem:[%s0 + $0x2b8] sm:$0xff]
  %v135 = vld [vmem:[%s0 + $0x2c0] sm:$0xf]
  %v136 = vld [vmem:[%s0 + $0x2c4] sm:$0xff]
  %v137 = vld [vmem:[%s0 + $0x2cc] sm:$0xf]
  %v138 = vld [vmem:[%s0 + $0x2d0] sm:$0xff]
  %v139 = vld [vmem:[%s0 + $0x2d8] sm:$0xf]
  %v140 = vld [vmem:[%s0 + $0x2dc] sm:$0xff]
  %v141 = vld [vmem:[%s0 + $0x2e4] sm:$0xf]
  %v142 = vld [vmem:[%s0 + $0x2e8] sm:$0xff]
  %v143 = vld [vmem:[%s0 + $0x2f0] sm:$0xf]
  %v144 = vld [vmem:[%s0 + $0x2f4] sm:$0xff]
  %v145 = vld [vmem:[%s0 + $0x2fc] sm:$0xf]
  %v146 = vld [vmem:[%s1] sm:$0xf]
  %v147 = vld [vmem:[%s1 + $0x4] sm:$0xf]
  %v148 = vld [vmem:[%s1 + $0x8] sm:$0xf]
  %v149 = vld [vmem:[%s1 + $0xc] sm:$0xf]
  %v150 = vld [vmem:[%s1 + $0x10] sm:$0xf]
  %v151 = vld [vmem:[%s1 + $0x14] sm:$0xf]
  %v152 = vld [vmem:[%s1 + $0x18] sm:$0xf]
  %v153 = vld [vmem:[%s1 + $0x1c] sm:$0xf]
  %v154 = vld [vmem:[%s1 + $0x20] sm:$0xf]
  %v155 = vld [vmem:[%s1 + $0x24] sm:$0xf]
  %v156 = vld [vmem:[%s1 + $0x28] sm:$0xf]
  %v157 = vld [vmem:[%s1 + $0x2c] sm:$0xf]
  %v158 = vld [vmem:[%s1 + $0x30] sm:$0xf]
  %v159 = vld [vmem:[%s1 + $0x34] sm:$0xf]
  %v160 = vld [vmem:[%s1 + $0x38] sm:$0xf]
  %v161 = vld [vmem:[%s1 + $0x3c] sm:$0xf]
  %v162 = vld [vmem:[%s1 + $0x40] sm:$0xf]
  %v163 = vld [vmem:[%s1 + $0x44] sm:$0xf]
  %v164 = vld [vmem:[%s1 + $0x48] sm:$0xf]
  %v165 = vld [vmem:[%s1 + $0x4c] sm:$0xf]
  %v166 = vld [vmem:[%s1 + $0x50] sm:$0xf]
  %v167 = vld [vmem:[%s1 + $0x54] sm:$0xf]
  %v168 = vld [vmem:[%s1 + $0x58] sm:$0xf]
  %v169 = vld [vmem:[%s1 + $0x5c] sm:$0xf]
  %v170 = vld [vmem:[%s1 + $0x60] sm:$0xf]
  %v171 = vld [vmem:[%s1 + $0x64] sm:$0xf]
  %v172 = vld [vmem:[%s1 + $0x68] sm:$0xf]
  %v173 = vld [vmem:[%s1 + $0x6c] sm:$0xf]
  %v174 = vld [vmem:[%s1 + $0x70] sm:$0xf]
  %v175 = vld [vmem:[%s1 + $0x74] sm:$0xf]
  %v176 = vld [vmem:[%s1 + $0x78] sm:$0xf]
  %v177 = vld [vmem:[%s1 + $0x7c] sm:$0xf]
  %v178 = vld [vmem:[%s1 + $0x80] sm:$0xf]
  %v179 = vld [vmem:[%s1 + $0x84] sm:$0xf]
  %v180 = vld [vmem:[%s1 + $0x88] sm:$0xf]
  %v181 = vld [vmem:[%s1 + $0x8c] sm:$0xf]
  %v310 = vunpack.c.l.b16 %v18
  %v311 = vunpack.c.h.b16 %v18
  %v312 = vunpack.c.l.b16 %v19
  %v313 = vunpack.c.l.b16 %v20
  %v314 = vunpack.c.h.b16 %v20
  %v315 = vunpack.c.l.b16 %v21
  %v316 = vunpack.c.l.b16 %v22
  %v317 = vunpack.c.h.b16 %v22
  %v318 = vunpack.c.l.b16 %v23
  %v319 = vunpack.c.l.b16 %v24
  %v320 = vunpack.c.h.b16 %v24
  %v321 = vunpack.c.l.b16 %v25
  %v322 = vunpack.c.l.b16 %v26
  %v323 = vunpack.c.h.b16 %v26
  %v324 = vunpack.c.l.b16 %v27
  %v325 = vunpack.c.l.b16 %v28
  %v326 = vunpack.c.h.b16 %v28
  %v327 = vunpack.c.l.b16 %v29
  %v328 = vunpack.c.l.b16 %v30
  %v329 = vunpack.c.h.b16 %v30
  %v330 = vunpack.c.l.b16 %v31
  %v331 = vunpack.c.l.b16 %v32
  %v332 = vunpack.c.h.b16 %v32
  %v333 = vunpack.c.l.b16 %v33
  %v334 = vunpack.c.l.b16 %v34
  %v335 = vunpack.c.h.b16 %v34
  %v336 = vunpack.c.l.b16 %v35
  %v337 = vunpack.c.l.b16 %v36
  %v338 = vunpack.c.h.b16 %v36
  %v339 = vunpack.c.l.b16 %v37
  %v340 = vunpack.c.l.b16 %v38
  %v341 = vunpack.c.h.b16 %v38
  %v342 = vunpack.c.l.b16 %v39
  %v343 = vunpack.c.l.b16 %v40
  %v344 = vunpack.c.h.b16 %v40
  %v345 = vunpack.c.l.b16 %v41
  %v346 = vunpack.c.l.b16 %v42
  %v347 = vunpack.c.h.b16 %v42
  %v348 = vunpack.c.l.b16 %v43
  %v349 = vunpack.c.l.b16 %v44
  %v350 = vunpack.c.h.b16 %v44
  %v351 = vunpack.c.l.b16 %v45
  %v352 = vunpack.c.l.b16 %v46
  %v353 = vunpack.c.h.b16 %v46
  %v354 = vunpack.c.l.b16 %v47
  %v355 = vunpack.c.l.b16 %v48
  %v356 = vunpack.c.h.b16 %v48
  %v357 = vunpack.c.l.b16 %v49
  %v358 = vunpack.c.l.b16 %v50
  %v359 = vunpack.c.h.b16 %v50
  %v360 = vunpack.c.l.b16 %v51
  %v361 = vunpack.c.l.b16 %v52
  %v362 = vunpack.c.h.b16 %v52
  %v363 = vunpack.c.l.b16 %v53
  %v364 = vunpack.c.l.b16 %v54
  %v365 = vunpack.c.h.b16 %v54
  %v366 = vunpack.c.l.b16 %v55
  %v367 = vunpack.c.l.b16 %v56
  %v368 = vunpack.c.h.b16 %v56
  %v369 = vunpack.c.l.b16 %v57
  %v370 = vunpack.c.l.b16 %v58
  %v371 = vunpack.c.h.b16 %v58
  %v372 = vunpack.c.l.b16 %v59
  %v373 = vunpack.c.l.b16 %v60
  %v374 = vunpack.c.h.b16 %v60
  %v375 = vunpack.c.l.b16 %v61
  %v376 = vunpack.c.l.b16 %v62
  %v377 = vunpack.c.h.b16 %v62
  %v378 = vunpack.c.l.b16 %v63
  %v379 = vunpack.c.l.b16 %v64
  %v380 = vunpack.c.h.b16 %v64
  %v381 = vunpack.c.l.b16 %v65
  %v382 = vunpack.c.l.b16 %v66
  %v383 = vunpack.c.h.b16 %v66
  %v384 = vunpack.c.l.b16 %v67
  %v385 = vunpack.c.l.b16 %v68
  %v386 = vunpack.c.h.b16 %v68
  %v387 = vunpack.c.l.b16 %v69
  %v388 = vunpack.c.l.b16 %v70
  %v389 = vunpack.c.h.b16 %v70
  %v390 = vunpack.c.l.b16 %v71
  %v391 = vunpack.c.l.b16 %v72
  %v392 = vunpack.c.h.b16 %v72
  %v393 = vunpack.c.l.b16 %v73
  %v394 = vunpack.c.l.b16 %v74
  %v395 = vunpack.c.h.b16 %v74
  %v396 = vunpack.c.l.b16 %v75
  %v397 = vunpack.c.l.b16 %v76
  %v398 = vunpack.c.h.b16 %v76
  %v399 = vunpack.c.l.b16 %v77
  %v400 = vunpack.c.l.b16 %v78
  %v401 = vunpack.c.h.b16 %v78
  %v402 = vunpack.c.l.b16 %v79
  %v403 = vunpack.c.l.b16 %v80
  %v404 = vunpack.c.h.b16 %v80
  %v405 = vunpack.c.l.b16 %v81
  %v406 = vunpack.c.l.b16 %v82
  %v407 = vunpack.c.h.b16 %v82
  %v408 = vunpack.c.l.b16 %v83
  %v409 = vunpack.c.l.b16 %v84
  %v410 = vunpack.c.h.b16 %v84
  %v411 = vunpack.c.l.b16 %v85
  %v412 = vunpack.c.l.b16 %v86
  %v413 = vunpack.c.h.b16 %v86
  %v414 = vunpack.c.l.b16 %v87
  %v415 = vunpack.c.l.b16 %v88
  %v416 = vunpack.c.h.b16 %v88
  %v417 = vunpack.c.l.b16 %v89
  %v418 = vunpack.c.l.b16 %v90
  %v419 = vunpack.c.h.b16 %v90
  %v420 = vunpack.c.l.b16 %v91
  %v421 = vunpack.c.l.b16 %v92
  %v422 = vunpack.c.h.b16 %v92
  %v423 = vunpack.c.l.b16 %v93
  %v424 = vunpack.c.l.b16 %v94
  %v425 = vunpack.c.h.b16 %v94
  %v426 = vunpack.c.l.b16 %v95
  %v427 = vunpack.c.l.b16 %v96
  %v428 = vunpack.c.h.b16 %v96
  %v429 = vunpack.c.l.b16 %v97
  %v430 = vunpack.c.l.b16 %v98
  %v431 = vunpack.c.h.b16 %v98
  %v432 = vunpack.c.l.b16 %v99
  %v433 = vunpack.c.l.b16 %v100
  %v434 = vunpack.c.h.b16 %v100
  %v435 = vunpack.c.l.b16 %v101
  %v436 = vunpack.c.l.b16 %v102
  %v437 = vunpack.c.h.b16 %v102
  %v438 = vunpack.c.l.b16 %v103
  %v439 = vunpack.c.l.b16 %v104
  %v440 = vunpack.c.h.b16 %v104
  %v441 = vunpack.c.l.b16 %v105
  %v442 = vunpack.c.l.b16 %v106
  %v443 = vunpack.c.h.b16 %v106
  %v444 = vunpack.c.l.b16 %v107
  %v445 = vunpack.c.l.b16 %v108
  %v446 = vunpack.c.h.b16 %v108
  %v447 = vunpack.c.l.b16 %v109
  %v448 = vunpack.c.l.b16 %v110
  %v449 = vunpack.c.h.b16 %v110
  %v450 = vunpack.c.l.b16 %v111
  %v451 = vunpack.c.l.b16 %v112
  %v452 = vunpack.c.h.b16 %v112
  %v453 = vunpack.c.l.b16 %v113
  %v454 = vunpack.c.l.b16 %v114
  %v455 = vunpack.c.h.b16 %v114
  %v456 = vunpack.c.l.b16 %v115
  %v457 = vunpack.c.l.b16 %v116
  %v458 = vunpack.c.h.b16 %v116
  %v459 = vunpack.c.l.b16 %v117
  %v460 = vunpack.c.l.b16 %v118
  %v461 = vunpack.c.h.b16 %v118
  %v462 = vunpack.c.l.b16 %v119
  %v463 = vunpack.c.l.b16 %v120
  %v464 = vunpack.c.h.b16 %v120
  %v465 = vunpack.c.l.b16 %v121
  %v466 = vunpack.c.l.b16 %v122
  %v467 = vunpack.c.h.b16 %v122
  %v468 = vunpack.c.l.b16 %v123
  %v469 = vunpack.c.l.b16 %v124
  %v470 = vunpack.c.h.b16 %v124
  %v471 = vunpack.c.l.b16 %v125
  %v472 = vunpack.c.l.b16 %v126
  %v473 = vunpack.c.h.b16 %v126
  %v474 = vunpack.c.l.b16 %v127
  %v475 = vunpack.c.l.b16 %v128
  %v476 = vunpack.c.h.b16 %v128
  %v477 = vunpack.c.l.b16 %v129
  %v478 = vunpack.c.l.b16 %v130
  %v479 = vunpack.c.h.b16 %v130
  %v480 = vunpack.c.l.b16 %v131
  %v481 = vunpack.c.l.b16 %v132
  %v482 = vunpack.c.h.b16 %v132
  %v483 = vunpack.c.l.b16 %v133
  %v484 = vunpack.c.l.b16 %v134
  %v485 = vunpack.c.h.b16 %v134
  %v486 = vunpack.c.l.b16 %v135
  %v487 = vunpack.c.l.b16 %v136
  %v488 = vunpack.c.h.b16 %v136
  %v489 = vunpack.c.l.b16 %v137
  %v490 = vunpack.c.l.b16 %v138
  %v491 = vunpack.c.h.b16 %v138
  %v492 = vunpack.c.l.b16 %v139
  %v493 = vunpack.c.l.b16 %v140
  %v494 = vunpack.c.h.b16 %v140
  %v495 = vunpack.c.l.b16 %v141
  %v496 = vunpack.c.l.b16 %v142
  %v497 = vunpack.c.h.b16 %v142
  %v498 = vunpack.c.l.b16 %v143
  %v499 = vunpack.c.l.b16 %v144
  %v500 = vunpack.c.h.b16 %v144
  %v501 = vunpack.c.l.b16 %v145
  %v502 = vpack.c.b16 %v313, %v310
  %v503 = vpack.c.b16 %v314, %v311
  %v504 = vpack.c.b16 %v315, %v312
  %v505 = vpack.c.b16 %v319, %v316
  %v506 = vpack.c.b16 %v320, %v317
  %v507 = vpack.c.b16 %v321, %v318
  %v508 = vpack.c.b16 %v325, %v322
  %v509 = vpack.c.b16 %v326, %v323
  %v510 = vpack.c.b16 %v327, %v324
  %v511 = vpack.c.b16 %v331, %v328
  %v512 = vpack.c.b16 %v332, %v329
  %v513 = vpack.c.b16 %v333, %v330
  %v514 = vpack.c.b16 %v337, %v334
  %v515 = vpack.c.b16 %v338, %v335
  %v516 = vpack.c.b16 %v339, %v336
  %v517 = vpack.c.b16 %v343, %v340
  %v518 = vpack.c.b16 %v344, %v341
  %v519 = vpack.c.b16 %v345, %v342
  %v520 = vpack.c.b16 %v349, %v346
  %v521 = vpack.c.b16 %v350, %v347
  %v522 = vpack.c.b16 %v351, %v348
  %v523 = vpack.c.b16 %v355, %v352
  %v524 = vpack.c.b16 %v356, %v353
  %v525 = vpack.c.b16 %v357, %v354
  %v526 = vpack.c.b16 %v361, %v358
  %v527 = vpack.c.b16 %v362, %v359
  %v528 = vpack.c.b16 %v363, %v360
  %v529 = vpack.c.b16 %v367, %v364
  %v530 = vpack.c.b16 %v368, %v365
  %v531 = vpack.c.b16 %v369, %v366
  %v532 = vpack.c.b16 %v373, %v370
  %v533 = vpack.c.b16 %v374, %v371
  %v534 = vpack.c.b16 %v375, %v372
  %v535 = vpack.c.b16 %v379, %v376
  %v536 = vpack.c.b16 %v380, %v377
  %v537 = vpack.c.b16 %v381, %v378
  %v538 = vpack.c.b16 %v385, %v382
  %v539 = vpack.c.b16 %v386, %v383
  %v540 = vpack.c.b16 %v387, %v384
  %v541 = vpack.c.b16 %v391, %v388
  %v542 = vpack.c.b16 %v392, %v389
  %v543 = vpack.c.b16 %v393, %v390
  %v544 = vpack.c.b16 %v397, %v394
  %v545 = vpack.c.b16 %v398, %v395
  %v546 = vpack.c.b16 %v399, %v396
  %v547 = vpack.c.b16 %v403, %v400
  %v548 = vpack.c.b16 %v404, %v401
  %v549 = vpack.c.b16 %v405, %v402
  %v550 = vpack.c.b16 %v409, %v406
  %v551 = vpack.c.b16 %v410, %v407
  %v552 = vpack.c.b16 %v411, %v408
  %v553 = vpack.c.b16 %v415, %v412
  %v554 = vpack.c.b16 %v416, %v413
  %v555 = vpack.c.b16 %v417, %v414
  %v556 = vpack.c.b16 %v421, %v418
  %v557 = vpack.c.b16 %v422, %v419
  %v558 = vpack.c.b16 %v423, %v420
  %v559 = vpack.c.b16 %v427, %v424
  %v560 = vpack.c.b16 %v428, %v425
  %v561 = vpack.c.b16 %v429, %v426
  %v562 = vpack.c.b16 %v433, %v430
  %v563 = vpack.c.b16 %v434, %v431
  %v564 = vpack.c.b16 %v435, %v432
  %v565 = vpack.c.b16 %v439, %v436
  %v566 = vpack.c.b16 %v440, %v437
  %v567 = vpack.c.b16 %v441, %v438
  %v568 = vpack.c.b16 %v445, %v442
  %v569 = vpack.c.b16 %v446, %v443
  %v570 = vpack.c.b16 %v447, %v444
  %v571 = vpack.c.b16 %v451, %v448
  %v572 = vpack.c.b16 %v452, %v449
  %v573 = vpack.c.b16 %v453, %v450
  %v574 = vpack.c.b16 %v457, %v454
  %v575 = vpack.c.b16 %v458, %v455
  %v576 = vpack.c.b16 %v459, %v456
  %v577 = vpack.c.b16 %v463, %v460
  %v578 = vpack.c.b16 %v464, %v461
  %v579 = vpack.c.b16 %v465, %v462
  %v580 = vpack.c.b16 %v469, %v466
  %v581 = vpack.c.b16 %v470, %v467
  %v582 = vpack.c.b16 %v471, %v468
  %v583 = vpack.c.b16 %v475, %v472
  %v584 = vpack.c.b16 %v476, %v473
  %v585 = vpack.c.b16 %v477, %v474
  %v586 = vpack.c.b16 %v481, %v478
  %v587 = vpack.c.b16 %v482, %v479
  %v588 = vpack.c.b16 %v483, %v480
  %v589 = vpack.c.b16 %v487, %v484
  %v590 = vpack.c.b16 %v488, %v485
  %v591 = vpack.c.b16 %v489, %v486
  %v592 = vpack.c.b16 %v493, %v490
  %v593 = vpack.c.b16 %v494, %v491
  %v594 = vpack.c.b16 %v495, %v492
  %v595 = vpack.c.b16 %v499, %v496
  %v596 = vpack.c.b16 %v500, %v497
  %v597 = vpack.c.b16 %v501, %v498
  %v698 = vunpack.c.l.b16 %v146
  %v699 = vunpack.c.l.b16 %v147
  %v700 = vunpack.c.l.b16 %v148
  %v701 = vunpack.c.l.b16 %v149
  %v702 = vunpack.c.l.b16 %v150
  %v703 = vunpack.c.l.b16 %v151
  %v704 = vunpack.c.l.b16 %v152
  %v705 = vunpack.c.l.b16 %v153
  %v706 = vunpack.c.l.b16 %v154
  %v707 = vunpack.c.l.b16 %v155
  %v708 = vunpack.c.l.b16 %v156
  %v709 = vunpack.c.l.b16 %v157
  %v710 = vunpack.c.l.b16 %v158
  %v711 = vunpack.c.l.b16 %v159
  %v712 = vunpack.c.l.b16 %v160
  %v713 = vunpack.c.l.b16 %v161
  %v714 = vunpack.c.l.b16 %v162
  %v715 = vunpack.c.l.b16 %v163
  %v716 = vunpack.c.l.b16 %v164
  %v717 = vunpack.c.l.b16 %v165
  %v718 = vunpack.c.l.b16 %v166
  %v719 = vunpack.c.l.b16 %v167
  %v720 = vunpack.c.l.b16 %v168
  %v721 = vunpack.c.l.b16 %v169
  %v722 = vunpack.c.l.b16 %v170
  %v723 = vunpack.c.l.b16 %v171
  %v724 = vunpack.c.l.b16 %v172
  %v725 = vunpack.c.l.b16 %v173
  %v726 = vunpack.c.l.b16 %v174
  %v727 = vunpack.c.l.b16 %v175
  %v728 = vunpack.c.l.b16 %v176
  %v729 = vunpack.c.l.b16 %v177
  %v730 = vunpack.c.l.b16 %v178
  %v731 = vunpack.c.l.b16 %v179
  %v732 = vunpack.c.l.b16 %v180
  %v733 = vunpack.c.l.b16 %v181
  %v734 = vpack.c.b16 %v699, %v698
  %v735 = vpack.c.b16 %v701, %v700
  %v736 = vpack.c.b16 %v703, %v702
  %v737 = vpack.c.b16 %v705, %v704
  %v738 = vpack.c.b16 %v707, %v706
  %v739 = vpack.c.b16 %v709, %v708
  %v740 = vpack.c.b16 %v711, %v710
  %v741 = vpack.c.b16 %v713, %v712
  %v742 = vpack.c.b16 %v715, %v714
  %v743 = vpack.c.b16 %v717, %v716
  %v744 = vpack.c.b16 %v719, %v718
  %v745 = vpack.c.b16 %v721, %v720
  %v746 = vpack.c.b16 %v723, %v722
  %v747 = vpack.c.b16 %v725, %v724
  %v748 = vpack.c.b16 %v727, %v726
  %v749 = vpack.c.b16 %v729, %v728
  %v750 = vpack.c.b16 %v731, %v730
  %v751 = vpack.c.b16 %v733, %v732
  %vm770 = vcmask 261120
  %v772 = vsel %vm770, %v504, 0
  %v775 = vsel %vm770, %v507, 0
  %v778 = vsel %vm770, %v510, 0
  %v781 = vsel %vm770, %v513, 0
  %v784 = vsel %vm770, %v516, 0
  %v787 = vsel %vm770, %v519, 0
  %v790 = vsel %vm770, %v522, 0
  %v793 = vsel %vm770, %v525, 0
  %v796 = vsel %vm770, %v528, 0
  %v799 = vsel %vm770, %v531, 0
  %v802 = vsel %vm770, %v534, 0
  %v805 = vsel %vm770, %v537, 0
  %v808 = vsel %vm770, %v540, 0
  %v811 = vsel %vm770, %v543, 0
  %v814 = vsel %vm770, %v546, 0
  %v817 = vsel %vm770, %v549, 0
  %v820 = vsel %vm770, %v552, 0
  %v823 = vsel %vm770, %v555, 0
  %v826 = vsel %vm770, %v558, 0
  %v829 = vsel %vm770, %v561, 0
  %v832 = vsel %vm770, %v564, 0
  %v835 = vsel %vm770, %v567, 0
  %v838 = vsel %vm770, %v570, 0
  %v841 = vsel %vm770, %v573, 0
  %v844 = vsel %vm770, %v576, 0
  %v847 = vsel %vm770, %v579, 0
  %v850 = vsel %vm770, %v582, 0
  %v853 = vsel %vm770, %v585, 0
  %v856 = vsel %vm770, %v588, 0
  %v859 = vsel %vm770, %v591, 0
  %v862 = vsel %vm770, %v594, 0
  %v865 = vsel %vm770, %v597, 0
  %867 = vmatpush.bf16.msra.mxu0 %v741
  %868 = vmatpush.bf16.msra.mxu0 %v740
  %869 = vmatpush.bf16.msra.mxu0 %v739
  %870 = vmatpush.bf16.msra.mxu0 %v738
  %871 = vmatpush.bf16.msra.mxu0 %v737
  %872 = vmatpush.bf16.msra.mxu0 %v736
  %873 = vmatpush.bf16.msra.mxu0 %v735
  %874 = vmatpush.bf16.msra.mxu0 %v734
  %875 = vmatmul.bf16.gmra.mxu0 %v502
  %v876 = vpop.f32.mrf.mxu0
  %v877 = vadd.f32 0.0, %v876
  %v878 = vpop.f32.mrf.mxu0
  %v879 = vadd.f32 0.0, %v878
  %880 = vmatmul.bf16.gmra.mxu0 %v505
  %v881 = vpop.f32.mrf.mxu0
  %v882 = vadd.f32 0.0, %v881
  %v883 = vpop.f32.mrf.mxu0
  %v884 = vadd.f32 0.0, %v883
  %885 = vmatmul.bf16.gmra.mxu0 %v508
  %v886 = vpop.f32.mrf.mxu0
  %v887 = vadd.f32 0.0, %v886
  %v888 = vpop.f32.mrf.mxu0
  %v889 = vadd.f32 0.0, %v888
  %890 = vmatmul.bf16.gmra.mxu0 %v511
  %v891 = vpop.f32.mrf.mxu0
  %v892 = vadd.f32 0.0, %v891
  %v893 = vpop.f32.mrf.mxu0
  %v894 = vadd.f32 0.0, %v893
  %895 = vmatmul.bf16.gmra.mxu0 %v514
  %v896 = vpop.f32.mrf.mxu0
  %v897 = vadd.f32 0.0, %v896
  %v898 = vpop.f32.mrf.mxu0
  %v899 = vadd.f32 0.0, %v898
  %900 = vmatmul.bf16.gmra.mxu0 %v517
  %v901 = vpop.f32.mrf.mxu0
  %v902 = vadd.f32 0.0, %v901
  %v903 = vpop.f32.mrf.mxu0
  %v904 = vadd.f32 0.0, %v903
  %905 = vmatmul.bf16.gmra.mxu0 %v520
  %v906 = vpop.f32.mrf.mxu0
  %v907 = vadd.f32 0.0, %v906
  %v908 = vpop.f32.mrf.mxu0
  %v909 = vadd.f32 0.0, %v908
  %910 = vmatmul.bf16.gmra.mxu0 %v523
  %v911 = vpop.f32.mrf.mxu0
  %v912 = vadd.f32 0.0, %v911
  %v913 = vpop.f32.mrf.mxu0
  %v914 = vadd.f32 0.0, %v913
  %915 = vmatmul.bf16.gmra.mxu0 %v526
  %v916 = vpop.f32.mrf.mxu0
  %v917 = vadd.f32 0.0, %v916
  %v918 = vpop.f32.mrf.mxu0
  %v919 = vadd.f32 0.0, %v918
  %920 = vmatmul.bf16.gmra.mxu0 %v529
  %v921 = vpop.f32.mrf.mxu0
  %v922 = vadd.f32 0.0, %v921
  %v923 = vpop.f32.mrf.mxu0
  %v924 = vadd.f32 0.0, %v923
  %925 = vmatmul.bf16.gmra.mxu0 %v532
  %v926 = vpop.f32.mrf.mxu0
  %v927 = vadd.f32 0.0, %v926
  %v928 = vpop.f32.mrf.mxu0
  %v929 = vadd.f32 0.0, %v928
  %930 = vmatmul.bf16.gmra.mxu0 %v535
  %v931 = vpop.f32.mrf.mxu0
  %v932 = vadd.f32 0.0, %v931
  %v933 = vpop.f32.mrf.mxu0
  %v934 = vadd.f32 0.0, %v933
  %935 = vmatmul.bf16.gmra.mxu0 %v538
  %v936 = vpop.f32.mrf.mxu0
  %v937 = vadd.f32 0.0, %v936
  %v938 = vpop.f32.mrf.mxu0
  %v939 = vadd.f32 0.0, %v938
  %940 = vmatmul.bf16.gmra.mxu0 %v541
  %v941 = vpop.f32.mrf.mxu0
  %v942 = vadd.f32 0.0, %v941
  %v943 = vpop.f32.mrf.mxu0
  %v944 = vadd.f32 0.0, %v943
  %945 = vmatmul.bf16.gmra.mxu0 %v544
  %v946 = vpop.f32.mrf.mxu0
  %v947 = vadd.f32 0.0, %v946
  %v948 = vpop.f32.mrf.mxu0
  %v949 = vadd.f32 0.0, %v948
  %950 = vmatmul.bf16.gmra.mxu0 %v547
  %v951 = vpop.f32.mrf.mxu0
  %v952 = vadd.f32 0.0, %v951
  %v953 = vpop.f32.mrf.mxu0
  %v954 = vadd.f32 0.0, %v953
  %955 = vmatmul.bf16.gmra.mxu0 %v550
  %v956 = vpop.f32.mrf.mxu0
  %v957 = vadd.f32 0.0, %v956
  %v958 = vpop.f32.mrf.mxu0
  %v959 = vadd.f32 0.0, %v958
  %960 = vmatmul.bf16.gmra.mxu0 %v553
  %v961 = vpop.f32.mrf.mxu0
  %v962 = vadd.f32 0.0, %v961
  %v963 = vpop.f32.mrf.mxu0
  %v964 = vadd.f32 0.0, %v963
  %965 = vmatmul.bf16.gmra.mxu0 %v556
  %v966 = vpop.f32.mrf.mxu0
  %v967 = vadd.f32 0.0, %v966
  %v968 = vpop.f32.mrf.mxu0
  %v969 = vadd.f32 0.0, %v968
  %970 = vmatmul.bf16.gmra.mxu0 %v559
  %v971 = vpop.f32.mrf.mxu0
  %v972 = vadd.f32 0.0, %v971
  %v973 = vpop.f32.mrf.mxu0
  %v974 = vadd.f32 0.0, %v973
  %975 = vmatmul.bf16.gmra.mxu0 %v562
  %v976 = vpop.f32.mrf.mxu0
  %v977 = vadd.f32 0.0, %v976
  %v978 = vpop.f32.mrf.mxu0
  %v979 = vadd.f32 0.0, %v978
  %980 = vmatmul.bf16.gmra.mxu0 %v565
  %v981 = vpop.f32.mrf.mxu0
  %v982 = vadd.f32 0.0, %v981
  %v983 = vpop.f32.mrf.mxu0
  %v984 = vadd.f32 0.0, %v983
  %985 = vmatmul.bf16.gmra.mxu0 %v568
  %v986 = vpop.f32.mrf.mxu0
  %v987 = vadd.f32 0.0, %v986
  %v988 = vpop.f32.mrf.mxu0
  %v989 = vadd.f32 0.0, %v988
  %990 = vmatmul.bf16.gmra.mxu0 %v571
  %v991 = vpop.f32.mrf.mxu0
  %v992 = vadd.f32 0.0, %v991
  %v993 = vpop.f32.mrf.mxu0
  %v994 = vadd.f32 0.0, %v993
  %995 = vmatmul.bf16.gmra.mxu0 %v574
  %v996 = vpop.f32.mrf.mxu0
  %v997 = vadd.f32 0.0, %v996
  %v998 = vpop.f32.mrf.mxu0
  %v999 = vadd.f32 0.0, %v998
  %1000 = vmatmul.bf16.gmra.mxu0 %v577
  %v1001 = vpop.f32.mrf.mxu0
  %v1002 = vadd.f32 0.0, %v1001
  %v1003 = vpop.f32.mrf.mxu0
  %v1004 = vadd.f32 0.0, %v1003
  %1005 = vmatmul.bf16.gmra.mxu0 %v580
  %v1006 = vpop.f32.mrf.mxu0
  %v1007 = vadd.f32 0.0, %v1006
  %v1008 = vpop.f32.mrf.mxu0
  %v1009 = vadd.f32 0.0, %v1008
  %1010 = vmatmul.bf16.gmra.mxu0 %v583
  %v1011 = vpop.f32.mrf.mxu0
  %v1012 = vadd.f32 0.0, %v1011
  %v1013 = vpop.f32.mrf.mxu0
  %v1014 = vadd.f32 0.0, %v1013
  %1015 = vmatmul.bf16.gmra.mxu0 %v586
  %v1016 = vpop.f32.mrf.mxu0
  %v1017 = vadd.f32 0.0, %v1016
  %v1018 = vpop.f32.mrf.mxu0
  %v1019 = vadd.f32 0.0, %v1018
  %1020 = vmatmul.bf16.gmra.mxu0 %v589
  %v1021 = vpop.f32.mrf.mxu0
  %v1022 = vadd.f32 0.0, %v1021
  %v1023 = vpop.f32.mrf.mxu0
  %v1024 = vadd.f32 0.0, %v1023
  %1025 = vmatmul.bf16.gmra.mxu0 %v592
  %v1026 = vpop.f32.mrf.mxu0
  %v1027 = vadd.f32 0.0, %v1026
  %v1028 = vpop.f32.mrf.mxu0
  %v1029 = vadd.f32 0.0, %v1028
  %1030 = vmatmul.bf16.gmra.mxu0 %v595
  %v1031 = vpop.f32.mrf.mxu0
  %v1032 = vadd.f32 0.0, %v1031
  %v1033 = vpop.f32.mrf.mxu0
  %v1034 = vadd.f32 0.0, %v1033
  %1035 = vdwg.mxu0
  %1036 = vmatpush.bf16.msra.mxu0 %v749
  %1037 = vmatpush.bf16.msra.mxu0 %v748
  %1038 = vmatpush.bf16.msra.mxu0 %v747
  %1039 = vmatpush.bf16.msra.mxu0 %v746
  %1040 = vmatpush.bf16.msra.mxu0 %v745
  %1041 = vmatpush.bf16.msra.mxu0 %v744
  %1042 = vmatpush.bf16.msra.mxu0 %v743
  %1043 = vmatpush.bf16.msra.mxu0 %v742
  %1044 = vmatmul.bf16.gmra.mxu0 %v503
  %v1045 = vpop.f32.mrf.mxu0
  %v1046 = vadd.f32 %v877, %v1045
  %v1047 = vpop.f32.mrf.mxu0
  %v1048 = vadd.f32 %v879, %v1047
  %1049 = vmatmul.bf16.gmra.mxu0 %v506
  %v1050 = vpop.f32.mrf.mxu0
  %v1051 = vadd.f32 %v882, %v1050
  %v1052 = vpop.f32.mrf.mxu0
  %v1053 = vadd.f32 %v884, %v1052
  %1054 = vmatmul.bf16.gmra.mxu0 %v509
  %v1055 = vpop.f32.mrf.mxu0
  %v1056 = vadd.f32 %v887, %v1055
  %v1057 = vpop.f32.mrf.mxu0
  %v1058 = vadd.f32 %v889, %v1057
  %1059 = vmatmul.bf16.gmra.mxu0 %v512
  %v1060 = vpop.f32.mrf.mxu0
  %v1061 = vadd.f32 %v892, %v1060
  %v1062 = vpop.f32.mrf.mxu0
  %v1063 = vadd.f32 %v894, %v1062
  %1064 = vmatmul.bf16.gmra.mxu0 %v515
  %v1065 = vpop.f32.mrf.mxu0
  %v1066 = vadd.f32 %v897, %v1065
  %v1067 = vpop.f32.mrf.mxu0
  %v1068 = vadd.f32 %v899, %v1067
  %1069 = vmatmul.bf16.gmra.mxu0 %v518
  %v1070 = vpop.f32.mrf.mxu0
  %v1071 = vadd.f32 %v902, %v1070
  %v1072 = vpop.f32.mrf.mxu0
  %v1073 = vadd.f32 %v904, %v1072
  %1074 = vmatmul.bf16.gmra.mxu0 %v521
  %v1075 = vpop.f32.mrf.mxu0
  %v1076 = vadd.f32 %v907, %v1075
  %v1077 = vpop.f32.mrf.mxu0
  %v1078 = vadd.f32 %v909, %v1077
  %1079 = vmatmul.bf16.gmra.mxu0 %v524
  %v1080 = vpop.f32.mrf.mxu0
  %v1081 = vadd.f32 %v912, %v1080
  %v1082 = vpop.f32.mrf.mxu0
  %v1083 = vadd.f32 %v914, %v1082
  %1084 = vmatmul.bf16.gmra.mxu0 %v527
  %v1085 = vpop.f32.mrf.mxu0
  %v1086 = vadd.f32 %v917, %v1085
  %v1087 = vpop.f32.mrf.mxu0
  %v1088 = vadd.f32 %v919, %v1087
  %1089 = vmatmul.bf16.gmra.mxu0 %v530
  %v1090 = vpop.f32.mrf.mxu0
  %v1091 = vadd.f32 %v922, %v1090
  %v1092 = vpop.f32.mrf.mxu0
  %v1093 = vadd.f32 %v924, %v1092
  %1094 = vmatmul.bf16.gmra.mxu0 %v533
  %v1095 = vpop.f32.mrf.mxu0
  %v1096 = vadd.f32 %v927, %v1095
  %v1097 = vpop.f32.mrf.mxu0
  %v1098 = vadd.f32 %v929, %v1097
  %1099 = vmatmul.bf16.gmra.mxu0 %v536
  %v1100 = vpop.f32.mrf.mxu0
  %v1101 = vadd.f32 %v932, %v1100
  %v1102 = vpop.f32.mrf.mxu0
  %v1103 = vadd.f32 %v934, %v1102
  %1104 = vmatmul.bf16.gmra.mxu0 %v539
  %v1105 = vpop.f32.mrf.mxu0
  %v1106 = vadd.f32 %v937, %v1105
  %v1107 = vpop.f32.mrf.mxu0
  %v1108 = vadd.f32 %v939, %v1107
  %1109 = vmatmul.bf16.gmra.mxu0 %v542
  %v1110 = vpop.f32.mrf.mxu0
  %v1111 = vadd.f32 %v942, %v1110
  %v1112 = vpop.f32.mrf.mxu0
  %v1113 = vadd.f32 %v944, %v1112
  %1114 = vmatmul.bf16.gmra.mxu0 %v545
  %v1115 = vpop.f32.mrf.mxu0
  %v1116 = vadd.f32 %v947, %v1115
  %v1117 = vpop.f32.mrf.mxu0
  %v1118 = vadd.f32 %v949, %v1117
  %1119 = vmatmul.bf16.gmra.mxu0 %v548
  %v1120 = vpop.f32.mrf.mxu0
  %v1121 = vadd.f32 %v952, %v1120
  %v1122 = vpop.f32.mrf.mxu0
  %v1123 = vadd.f32 %v954, %v1122
  %1124 = vmatmul.bf16.gmra.mxu0 %v551
  %v1125 = vpop.f32.mrf.mxu0
  %v1126 = vadd.f32 %v957, %v1125
  %v1127 = vpop.f32.mrf.mxu0
  %v1128 = vadd.f32 %v959, %v1127
  %1129 = vmatmul.bf16.gmra.mxu0 %v554
  %v1130 = vpop.f32.mrf.mxu0
  %v1131 = vadd.f32 %v962, %v1130
  %v1132 = vpop.f32.mrf.mxu0
  %v1133 = vadd.f32 %v964, %v1132
  %1134 = vmatmul.bf16.gmra.mxu0 %v557
  %v1135 = vpop.f32.mrf.mxu0
  %v1136 = vadd.f32 %v967, %v1135
  %v1137 = vpop.f32.mrf.mxu0
  %v1138 = vadd.f32 %v969, %v1137
  %1139 = vmatmul.bf16.gmra.mxu0 %v560
  %v1140 = vpop.f32.mrf.mxu0
  %v1141 = vadd.f32 %v972, %v1140
  %v1142 = vpop.f32.mrf.mxu0
  %v1143 = vadd.f32 %v974, %v1142
  %1144 = vmatmul.bf16.gmra.mxu0 %v563
  %v1145 = vpop.f32.mrf.mxu0
  %v1146 = vadd.f32 %v977, %v1145
  %v1147 = vpop.f32.mrf.mxu0
  %v1148 = vadd.f32 %v979, %v1147
  %1149 = vmatmul.bf16.gmra.mxu0 %v566
  %v1150 = vpop.f32.mrf.mxu0
  %v1151 = vadd.f32 %v982, %v1150
  %v1152 = vpop.f32.mrf.mxu0
  %v1153 = vadd.f32 %v984, %v1152
  %1154 = vmatmul.bf16.gmra.mxu0 %v569
  %v1155 = vpop.f32.mrf.mxu0
  %v1156 = vadd.f32 %v987, %v1155
  %v1157 = vpop.f32.mrf.mxu0
  %v1158 = vadd.f32 %v989, %v1157
  %1159 = vmatmul.bf16.gmra.mxu0 %v572
  %v1160 = vpop.f32.mrf.mxu0
  %v1161 = vadd.f32 %v992, %v1160
  %v1162 = vpop.f32.mrf.mxu0
  %v1163 = vadd.f32 %v994, %v1162
  %1164 = vmatmul.bf16.gmra.mxu0 %v575
  %v1165 = vpop.f32.mrf.mxu0
  %v1166 = vadd.f32 %v997, %v1165
  %v1167 = vpop.f32.mrf.mxu0
  %v1168 = vadd.f32 %v999, %v1167
  %1169 = vmatmul.bf16.gmra.mxu0 %v578
  %v1170 = vpop.f32.mrf.mxu0
  %v1171 = vadd.f32 %v1002, %v1170
  %v1172 = vpop.f32.mrf.mxu0
  %v1173 = vadd.f32 %v1004, %v1172
  %1174 = vmatmul.bf16.gmra.mxu0 %v581
  %v1175 = vpop.f32.mrf.mxu0
  %v1176 = vadd.f32 %v1007, %v1175
  %v1177 = vpop.f32.mrf.mxu0
  %v1178 = vadd.f32 %v1009, %v1177
  %1179 = vmatmul.bf16.gmra.mxu0 %v584
  %v1180 = vpop.f32.mrf.mxu0
  %v1181 = vadd.f32 %v1012, %v1180
  %v1182 = vpop.f32.mrf.mxu0
  %v1183 = vadd.f32 %v1014, %v1182
  %1184 = vmatmul.bf16.gmra.mxu0 %v587
  %v1185 = vpop.f32.mrf.mxu0
  %v1186 = vadd.f32 %v1017, %v1185
  %v1187 = vpop.f32.mrf.mxu0
  %v1188 = vadd.f32 %v1019, %v1187
  %1189 = vmatmul.bf16.gmra.mxu0 %v590
  %v1190 = vpop.f32.mrf.mxu0
  %v1191 = vadd.f32 %v1022, %v1190
  %v1192 = vpop.f32.mrf.mxu0
  %v1193 = vadd.f32 %v1024, %v1192
  %1194 = vmatmul.bf16.gmra.mxu0 %v593
  %v1195 = vpop.f32.mrf.mxu0
  %v1196 = vadd.f32 %v1027, %v1195
  %v1197 = vpop.f32.mrf.mxu0
  %v1198 = vadd.f32 %v1029, %v1197
  %1199 = vmatmul.bf16.gmra.mxu0 %v596
  %v1200 = vpop.f32.mrf.mxu0
  %v1201 = vadd.f32 %v1032, %v1200
  %v1202 = vpop.f32.mrf.mxu0
  %v1203 = vadd.f32 %v1034, %v1202
  %1204 = vdwg.mxu0
  %1205 = vmatpush.bf16.msra.mxu0 0
  %1206 = vmatpush.bf16.msra.mxu0 0
  %1207 = vmatpush.bf16.msra.mxu0 0
  %1208 = vmatpush.bf16.msra.mxu0 0
  %1209 = vmatpush.bf16.msra.mxu0 0
  %1210 = vmatpush.bf16.msra.mxu0 0
  %1211 = vmatpush.bf16.msra.mxu0 %v751
  %1212 = vmatpush.bf16.msra.mxu0 %v750
  %1213 = vmatmul.bf16.gmra.mxu0 %v772
  %v1214 = vpop.f32.mrf.mxu0
  %v1215 = vadd.f32 %v1046, %v1214
  %v1216 = vpop.f32.mrf.mxu0
  %v1217 = vadd.f32 %v1048, %v1216
  %1218 = vmatmul.bf16.gmra.mxu0 %v775
  %v1219 = vpop.f32.mrf.mxu0
  %v1220 = vadd.f32 %v1051, %v1219
  %v1221 = vpop.f32.mrf.mxu0
  %v1222 = vadd.f32 %v1053, %v1221
  %1223 = vmatmul.bf16.gmra.mxu0 %v778
  %v1224 = vpop.f32.mrf.mxu0
  %v1225 = vadd.f32 %v1056, %v1224
  %v1226 = vpop.f32.mrf.mxu0
  %v1227 = vadd.f32 %v1058, %v1226
  %1228 = vmatmul.bf16.gmra.mxu0 %v781
  %v1229 = vpop.f32.mrf.mxu0
  %v1230 = vadd.f32 %v1061, %v1229
  %v1231 = vpop.f32.mrf.mxu0
  %v1232 = vadd.f32 %v1063, %v1231
  %1233 = vmatmul.bf16.gmra.mxu0 %v784
  %v1234 = vpop.f32.mrf.mxu0
  %v1235 = vadd.f32 %v1066, %v1234
  %v1236 = vpop.f32.mrf.mxu0
  %v1237 = vadd.f32 %v1068, %v1236
  %1238 = vmatmul.bf16.gmra.mxu0 %v787
  %v1239 = vpop.f32.mrf.mxu0
  %v1240 = vadd.f32 %v1071, %v1239
  %v1241 = vpop.f32.mrf.mxu0
  %v1242 = vadd.f32 %v1073, %v1241
  %1243 = vmatmul.bf16.gmra.mxu0 %v790
  %v1244 = vpop.f32.mrf.mxu0
  %v1245 = vadd.f32 %v1076, %v1244
  %v1246 = vpop.f32.mrf.mxu0
  %v1247 = vadd.f32 %v1078, %v1246
  %1248 = vmatmul.bf16.gmra.mxu0 %v793
  %v1249 = vpop.f32.mrf.mxu0
  %v1250 = vadd.f32 %v1081, %v1249
  %v1251 = vpop.f32.mrf.mxu0
  %v1252 = vadd.f32 %v1083, %v1251
  %1253 = vmatmul.bf16.gmra.mxu0 %v796
  %v1254 = vpop.f32.mrf.mxu0
  %v1255 = vadd.f32 %v1086, %v1254
  %v1256 = vpop.f32.mrf.mxu0
  %v1257 = vadd.f32 %v1088, %v1256
  %1258 = vmatmul.bf16.gmra.mxu0 %v799
  %v1259 = vpop.f32.mrf.mxu0
  %v1260 = vadd.f32 %v1091, %v1259
  %v1261 = vpop.f32.mrf.mxu0
  %v1262 = vadd.f32 %v1093, %v1261
  %1263 = vmatmul.bf16.gmra.mxu0 %v802
  %v1264 = vpop.f32.mrf.mxu0
  %v1265 = vadd.f32 %v1096, %v1264
  %v1266 = vpop.f32.mrf.mxu0
  %v1267 = vadd.f32 %v1098, %v1266
  %1268 = vmatmul.bf16.gmra.mxu0 %v805
  %v1269 = vpop.f32.mrf.mxu0
  %v1270 = vadd.f32 %v1101, %v1269
  %v1271 = vpop.f32.mrf.mxu0
  %v1272 = vadd.f32 %v1103, %v1271
  %1273 = vmatmul.bf16.gmra.mxu0 %v808
  %v1274 = vpop.f32.mrf.mxu0
  %v1275 = vadd.f32 %v1106, %v1274
  %v1276 = vpop.f32.mrf.mxu0
  %v1277 = vadd.f32 %v1108, %v1276
  %1278 = vmatmul.bf16.gmra.mxu0 %v811
  %v1279 = vpop.f32.mrf.mxu0
  %v1280 = vadd.f32 %v1111, %v1279
  %v1281 = vpop.f32.mrf.mxu0
  %v1282 = vadd.f32 %v1113, %v1281
  %1283 = vmatmul.bf16.gmra.mxu0 %v814
  %v1284 = vpop.f32.mrf.mxu0
  %v1285 = vadd.f32 %v1116, %v1284
  %v1286 = vpop.f32.mrf.mxu0
  %v1287 = vadd.f32 %v1118, %v1286
  %1288 = vmatmul.bf16.gmra.mxu0 %v817
  %v1289 = vpop.f32.mrf.mxu0
  %v1290 = vadd.f32 %v1121, %v1289
  %v1291 = vpop.f32.mrf.mxu0
  %v1292 = vadd.f32 %v1123, %v1291
  %1293 = vmatmul.bf16.gmra.mxu0 %v820
  %v1294 = vpop.f32.mrf.mxu0
  %v1295 = vadd.f32 %v1126, %v1294
  %v1296 = vpop.f32.mrf.mxu0
  %v1297 = vadd.f32 %v1128, %v1296
  %1298 = vmatmul.bf16.gmra.mxu0 %v823
  %v1299 = vpop.f32.mrf.mxu0
  %v1300 = vadd.f32 %v1131, %v1299
  %v1301 = vpop.f32.mrf.mxu0
  %v1302 = vadd.f32 %v1133, %v1301
  %1303 = vmatmul.bf16.gmra.mxu0 %v826
  %v1304 = vpop.f32.mrf.mxu0
  %v1305 = vadd.f32 %v1136, %v1304
  %v1306 = vpop.f32.mrf.mxu0
  %v1307 = vadd.f32 %v1138, %v1306
  %1308 = vmatmul.bf16.gmra.mxu0 %v829
  %v1309 = vpop.f32.mrf.mxu0
  %v1310 = vadd.f32 %v1141, %v1309
  %v1311 = vpop.f32.mrf.mxu0
  %v1312 = vadd.f32 %v1143, %v1311
  %1313 = vmatmul.bf16.gmra.mxu0 %v832
  %v1314 = vpop.f32.mrf.mxu0
  %v1315 = vadd.f32 %v1146, %v1314
  %v1316 = vpop.f32.mrf.mxu0
  %v1317 = vadd.f32 %v1148, %v1316
  %1318 = vmatmul.bf16.gmra.mxu0 %v835
  %v1319 = vpop.f32.mrf.mxu0
  %v1320 = vadd.f32 %v1151, %v1319
  %v1321 = vpop.f32.mrf.mxu0
  %v1322 = vadd.f32 %v1153, %v1321
  %1323 = vmatmul.bf16.gmra.mxu0 %v838
  %v1324 = vpop.f32.mrf.mxu0
  %v1325 = vadd.f32 %v1156, %v1324
  %v1326 = vpop.f32.mrf.mxu0
  %v1327 = vadd.f32 %v1158, %v1326
  %1328 = vmatmul.bf16.gmra.mxu0 %v841
  %v1329 = vpop.f32.mrf.mxu0
  %v1330 = vadd.f32 %v1161, %v1329
  %v1331 = vpop.f32.mrf.mxu0
  %v1332 = vadd.f32 %v1163, %v1331
  %1333 = vmatmul.bf16.gmra.mxu0 %v844
  %v1334 = vpop.f32.mrf.mxu0
  %v1335 = vadd.f32 %v1166, %v1334
  %v1336 = vpop.f32.mrf.mxu0
  %v1337 = vadd.f32 %v1168, %v1336
  %1338 = vmatmul.bf16.gmra.mxu0 %v847
  %v1339 = vpop.f32.mrf.mxu0
  %v1340 = vadd.f32 %v1171, %v1339
  %v1341 = vpop.f32.mrf.mxu0
  %v1342 = vadd.f32 %v1173, %v1341
  %1343 = vmatmul.bf16.gmra.mxu0 %v850
  %v1344 = vpop.f32.mrf.mxu0
  %v1345 = vadd.f32 %v1176, %v1344
  %v1346 = vpop.f32.mrf.mxu0
  %v1347 = vadd.f32 %v1178, %v1346
  %1348 = vmatmul.bf16.gmra.mxu0 %v853
  %v1349 = vpop.f32.mrf.mxu0
  %v1350 = vadd.f32 %v1181, %v1349
  %v1351 = vpop.f32.mrf.mxu0
  %v1352 = vadd.f32 %v1183, %v1351
  %1353 = vmatmul.bf16.gmra.mxu0 %v856
  %v1354 = vpop.f32.mrf.mxu0
  %v1355 = vadd.f32 %v1186, %v1354
  %v1356 = vpop.f32.mrf.mxu0
  %v1357 = vadd.f32 %v1188, %v1356
  %1358 = vmatmul.bf16.gmra.mxu0 %v859
  %v1359 = vpop.f32.mrf.mxu0
  %v1360 = vadd.f32 %v1191, %v1359
  %v1361 = vpop.f32.mrf.mxu0
  %v1362 = vadd.f32 %v1193, %v1361
  %1363 = vmatmul.bf16.gmra.mxu0 %v862
  %v1364 = vpop.f32.mrf.mxu0
  %v1365 = vadd.f32 %v1196, %v1364
  %v1366 = vpop.f32.mrf.mxu0
  %v1367 = vadd.f32 %v1198, %v1366
  %1368 = vmatmul.bf16.gmra.mxu0 %v865
  %v1369 = vpop.f32.mrf.mxu0
  %v1370 = vadd.f32 %v1201, %v1369
  %v1371 = vpop.f32.mrf.mxu0
  %v1372 = vadd.f32 %v1203, %v1371
  %1373 = vdwg.mxu0
  %v1374 = vld [vmem:[%s2] sm:$0xff]
  %v1375 = vld [vmem:[%s2 + $0x8] sm:$0xff]
  %v1376 = vld [vmem:[%s2 + $0x10] sm:$0xff]
  %v1377 = vld [vmem:[%s2 + $0x18] sm:$0xff]
  %v1378 = vld [vmem:[%s2 + $0x20] sm:$0xff]
  %v1379 = vld [vmem:[%s2 + $0x28] sm:$0xff]
  %v1380 = vld [vmem:[%s2 + $0x30] sm:$0xff]
  %v1381 = vld [vmem:[%s2 + $0x38] sm:$0xff]
  %v1382 = vld [vmem:[%s2 + $0x40] sm:$0xff]
  %v1383 = vld [vmem:[%s2 + $0x48] sm:$0xff]
  %v1384 = vld [vmem:[%s2 + $0x50] sm:$0xff]
  %v1385 = vld [vmem:[%s2 + $0x58] sm:$0xff]
  %v1386 = vld [vmem:[%s2 + $0x60] sm:$0xff]
  %v1387 = vld [vmem:[%s2 + $0x68] sm:$0xff]
  %v1388 = vld [vmem:[%s2 + $0x70] sm:$0xff]
  %v1389 = vld [vmem:[%s2 + $0x78] sm:$0xff]
  %v1390 = vld [vmem:[%s2 + $0x80] sm:$0xff]
  %v1391 = vld [vmem:[%s2 + $0x88] sm:$0xff]
  %v1392 = vld [vmem:[%s2 + $0x90] sm:$0xff]
  %v1393 = vld [vmem:[%s2 + $0x98] sm:$0xff]
  %v1394 = vld [vmem:[%s2 + $0xa0] sm:$0xff]
  %v1395 = vld [vmem:[%s2 + $0xa8] sm:$0xff]
  %v1396 = vld [vmem:[%s2 + $0xb0] sm:$0xff]
  %v1397 = vld [vmem:[%s2 + $0xb8] sm:$0xff]
  %v1398 = vld [vmem:[%s2 + $0xc0] sm:$0xff]
  %v1399 = vld [vmem:[%s2 + $0xc8] sm:$0xff]
  %v1400 = vld [vmem:[%s2 + $0xd0] sm:$0xff]
  %v1401 = vld [vmem:[%s2 + $0xd8] sm:$0xff]
  %v1402 = vld [vmem:[%s2 + $0xe0] sm:$0xff]
  %v1403 = vld [vmem:[%s2 + $0xe8] sm:$0xff]
  %v1404 = vld [vmem:[%s2 + $0xf0] sm:$0xff]
  %v1405 = vld [vmem:[%s2 + $0xf8] sm:$0xff]
  %v1406 = vld [vmem:[%s2 + $0x100] sm:$0xff]
  %v1407 = vld [vmem:[%s2 + $0x108] sm:$0xff]
  %v1408 = vld [vmem:[%s2 + $0x110] sm:$0xff]
  %v1409 = vld [vmem:[%s2 + $0x118] sm:$0xff]
  %v1410 = vld [vmem:[%s2 + $0x120] sm:$0xff]
  %v1411 = vld [vmem:[%s2 + $0x128] sm:$0xff]
  %v1412 = vld [vmem:[%s2 + $0x130] sm:$0xff]
  %v1413 = vld [vmem:[%s2 + $0x138] sm:$0xff]
  %v1414 = vld [vmem:[%s2 + $0x140] sm:$0xff]
  %v1415 = vld [vmem:[%s2 + $0x148] sm:$0xff]
  %v1416 = vld [vmem:[%s2 + $0x150] sm:$0xff]
  %v1417 = vld [vmem:[%s2 + $0x158] sm:$0xff]
  %v1418 = vld [vmem:[%s2 + $0x160] sm:$0xff]
  %v1419 = vld [vmem:[%s2 + $0x168] sm:$0xff]
  %v1420 = vld [vmem:[%s2 + $0x170] sm:$0xff]
  %v1421 = vld [vmem:[%s2 + $0x178] sm:$0xff]
  %v1422 = vld [vmem:[%s2 + $0x180] sm:$0xff]
  %v1423 = vld [vmem:[%s2 + $0x188] sm:$0xff]
  %v1424 = vld [vmem:[%s2 + $0x190] sm:$0xff]
  %v1425 = vld [vmem:[%s2 + $0x198] sm:$0xff]
  %v1426 = vld [vmem:[%s2 + $0x1a0] sm:$0xff]
  %v1427 = vld [vmem:[%s2 + $0x1a8] sm:$0xff]
  %v1428 = vld [vmem:[%s2 + $0x1b0] sm:$0xff]
  %v1429 = vld [vmem:[%s2 + $0x1b8] sm:$0xff]
  %v1430 = vld [vmem:[%s2 + $0x1c0] sm:$0xff]
  %v1431 = vld [vmem:[%s2 + $0x1c8] sm:$0xff]
  %v1432 = vld [vmem:[%s2 + $0x1d0] sm:$0xff]
  %v1433 = vld [vmem:[%s2 + $0x1d8] sm:$0xff]
  %v1434 = vld [vmem:[%s2 + $0x1e0] sm:$0xff]
  %v1435 = vld [vmem:[%s2 + $0x1e8] sm:$0xff]
  %v1436 = vld [vmem:[%s2 + $0x1f0] sm:$0xff]
  %v1437 = vld [vmem:[%s2 + $0x1f8] sm:$0xff]
  %v1438 = vmul.f32 %v1215, %v1374
  %v1439 = vmul.f32 %v1217, %v1375
  %v1440 = vmul.f32 %v1220, %v1376
  %v1441 = vmul.f32 %v1222, %v1377
  %v1442 = vmul.f32 %v1225, %v1378
  %v1443 = vmul.f32 %v1227, %v1379
  %v1444 = vmul.f32 %v1230, %v1380
  %v1445 = vmul.f32 %v1232, %v1381
  %v1446 = vmul.f32 %v1235, %v1382
  %v1447 = vmul.f32 %v1237, %v1383
  %v1448 = vmul.f32 %v1240, %v1384
  %v1449 = vmul.f32 %v1242, %v1385
  %v1450 = vmul.f32 %v1245, %v1386
  %v1451 = vmul.f32 %v1247, %v1387
  %v1452 = vmul.f32 %v1250, %v1388
  %v1453 = vmul.f32 %v1252, %v1389
  %v1454 = vmul.f32 %v1255, %v1390
  %v1455 = vmul.f32 %v1257, %v1391
  %v1456 = vmul.f32 %v1260, %v1392
  %v1457 = vmul.f32 %v1262, %v1393
  %v1458 = vmul.f32 %v1265, %v1394
  %v1459 = vmul.f32 %v1267, %v1395
  %v1460 = vmul.f32 %v1270, %v1396
  %v1461 = vmul.f32 %v1272, %v1397
  %v1462 = vmul.f32 %v1275, %v1398
  %v1463 = vmul.f32 %v1277, %v1399
  %v1464 = vmul.f32 %v1280, %v1400
  %v1465 = vmul.f32 %v1282, %v1401
  %v1466 = vmul.f32 %v1285, %v1402
  %v1467 = vmul.f32 %v1287, %v1403
  %v1468 = vmul.f32 %v1290, %v1404
  %v1469 = vmul.f32 %v1292, %v1405
  %v1470 = vmul.f32 %v1295, %v1406
  %v1471 = vmul.f32 %v1297, %v1407
  %v1472 = vmul.f32 %v1300, %v1408
  %v1473 = vmul.f32 %v1302, %v1409
  %v1474 = vmul.f32 %v1305, %v1410
  %v1475 = vmul.f32 %v1307, %v1411
  %v1476 = vmul.f32 %v1310, %v1412
  %v1477 = vmul.f32 %v1312, %v1413
  %v1478 = vmul.f32 %v1315, %v1414
  %v1479 = vmul.f32 %v1317, %v1415
  %v1480 = vmul.f32 %v1320, %v1416
  %v1481 = vmul.f32 %v1322, %v1417
  %v1482 = vmul.f32 %v1325, %v1418
  %v1483 = vmul.f32 %v1327, %v1419
  %v1484 = vmul.f32 %v1330, %v1420
  %v1485 = vmul.f32 %v1332, %v1421
  %v1486 = vmul.f32 %v1335, %v1422
  %v1487 = vmul.f32 %v1337, %v1423
  %v1488 = vmul.f32 %v1340, %v1424
  %v1489 = vmul.f32 %v1342, %v1425
  %v1490 = vmul.f32 %v1345, %v1426
  %v1491 = vmul.f32 %v1347, %v1427
  %v1492 = vmul.f32 %v1350, %v1428
  %v1493 = vmul.f32 %v1352, %v1429
  %v1494 = vmul.f32 %v1355, %v1430
  %v1495 = vmul.f32 %v1357, %v1431
  %v1496 = vmul.f32 %v1360, %v1432
  %v1497 = vmul.f32 %v1362, %v1433
  %v1498 = vmul.f32 %v1365, %v1434
  %v1499 = vmul.f32 %v1367, %v1435
  %v1500 = vmul.f32 %v1370, %v1436
  %v1501 = vmul.f32 %v1372, %v1437
  %v1502 = vld [vmem:[%s3] sm:$0x1]
  %v1504 = vperm.slane %v1502, 0
  %v1506 = vadd.f32 %v1438, %v1504
  %v1507 = vadd.f32 %v1439, %v1504
  %v1508 = vadd.f32 %v1440, %v1504
  %v1509 = vadd.f32 %v1441, %v1504
  %v1510 = vadd.f32 %v1442, %v1504
  %v1511 = vadd.f32 %v1443, %v1504
  %v1512 = vadd.f32 %v1444, %v1504
  %v1513 = vadd.f32 %v1445, %v1504
  %v1514 = vadd.f32 %v1446, %v1504
  %v1515 = vadd.f32 %v1447, %v1504
  %v1516 = vadd.f32 %v1448, %v1504
  %v1517 = vadd.f32 %v1449, %v1504
  %v1518 = vadd.f32 %v1450, %v1504
  %v1519 = vadd.f32 %v1451, %v1504
  %v1520 = vadd.f32 %v1452, %v1504
  %v1521 = vadd.f32 %v1453, %v1504
  %v1522 = vadd.f32 %v1454, %v1504
  %v1523 = vadd.f32 %v1455, %v1504
  %v1524 = vadd.f32 %v1456, %v1504
  %v1525 = vadd.f32 %v1457, %v1504
  %v1526 = vadd.f32 %v1458, %v1504
  %v1527 = vadd.f32 %v1459, %v1504
  %v1528 = vadd.f32 %v1460, %v1504
  %v1529 = vadd.f32 %v1461, %v1504
  %v1530 = vadd.f32 %v1462, %v1504
  %v1531 = vadd.f32 %v1463, %v1504
  %v1532 = vadd.f32 %v1464, %v1504
  %v1533 = vadd.f32 %v1465, %v1504
  %v1534 = vadd.f32 %v1466, %v1504
  %v1535 = vadd.f32 %v1467, %v1504
  %v1536 = vadd.f32 %v1468, %v1504
  %v1537 = vadd.f32 %v1469, %v1504
  %v1538 = vadd.f32 %v1470, %v1504
  %v1539 = vadd.f32 %v1471, %v1504
  %v1540 = vadd.f32 %v1472, %v1504
  %v1541 = vadd.f32 %v1473, %v1504
  %v1542 = vadd.f32 %v1474, %v1504
  %v1543 = vadd.f32 %v1475, %v1504
  %v1544 = vadd.f32 %v1476, %v1504
  %v1545 = vadd.f32 %v1477, %v1504
  %v1546 = vadd.f32 %v1478, %v1504
  %v1547 = vadd.f32 %v1479, %v1504
  %v1548 = vadd.f32 %v1480, %v1504
  %v1549 = vadd.f32 %v1481, %v1504
  %v1550 = vadd.f32 %v1482, %v1504
  %v1551 = vadd.f32 %v1483, %v1504
  %v1552 = vadd.f32 %v1484, %v1504
  %v1553 = vadd.f32 %v1485, %v1504
  %v1554 = vadd.f32 %v1486, %v1504
  %v1555 = vadd.f32 %v1487, %v1504
  %v1556 = vadd.f32 %v1488, %v1504
  %v1557 = vadd.f32 %v1489, %v1504
  %v1558 = vadd.f32 %v1490, %v1504
  %v1559 = vadd.f32 %v1491, %v1504
  %v1560 = vadd.f32 %v1492, %v1504
  %v1561 = vadd.f32 %v1493, %v1504
  %v1562 = vadd.f32 %v1494, %v1504
  %v1563 = vadd.f32 %v1495, %v1504
  %v1564 = vadd.f32 %v1496, %v1504
  %v1565 = vadd.f32 %v1497, %v1504
  %v1566 = vadd.f32 %v1498, %v1504
  %v1567 = vadd.f32 %v1499, %v1504
  %v1568 = vadd.f32 %v1500, %v1504
  %v1569 = vadd.f32 %v1501, %v1504
  %vm1570 = vcmp.gt.f32.partialorder %v1506, 0.0
  %vm1571 = vcmp.gt.f32.partialorder %v1507, 0.0
  %vm1572 = vcmp.gt.f32.partialorder %v1508, 0.0
  %vm1573 = vcmp.gt.f32.partialorder %v1509, 0.0
  %vm1574 = vcmp.gt.f32.partialorder %v1510, 0.0
  %vm1575 = vcmp.gt.f32.partialorder %v1511, 0.0
  %vm1576 = vcmp.gt.f32.partialorder %v1512, 0.0
  %vm1577 = vcmp.gt.f32.partialorder %v1513, 0.0
  %vm1578 = vcmp.gt.f32.partialorder %v1514, 0.0
  %vm1579 = vcmp.gt.f32.partialorder %v1515, 0.0
  %vm1580 = vcmp.gt.f32.partialorder %v1516, 0.0
  %vm1581 = vcmp.gt.f32.partialorder %v1517, 0.0
  %vm1582 = vcmp.gt.f32.partialorder %v1518, 0.0
  %vm1583 = vcmp.gt.f32.partialorder %v1519, 0.0
  %vm1584 = vcmp.gt.f32.partialorder %v1520, 0.0
  %vm1585 = vcmp.gt.f32.partialorder %v1521, 0.0
  %vm1586 = vcmp.gt.f32.partialorder %v1522, 0.0
  %vm1587 = vcmp.gt.f32.partialorder %v1523, 0.0
  %vm1588 = vcmp.gt.f32.partialorder %v1524, 0.0
  %vm1589 = vcmp.gt.f32.partialorder %v1525, 0.0
  %vm1590 = vcmp.gt.f32.partialorder %v1526, 0.0
  %vm1591 = vcmp.gt.f32.partialorder %v1527, 0.0
  %vm1592 = vcmp.gt.f32.partialorder %v1528, 0.0
  %vm1593 = vcmp.gt.f32.partialorder %v1529, 0.0
  %vm1594 = vcmp.gt.f32.partialorder %v1530, 0.0
  %vm1595 = vcmp.gt.f32.partialorder %v1531, 0.0
  %vm1596 = vcmp.gt.f32.partialorder %v1532, 0.0
  %vm1597 = vcmp.gt.f32.partialorder %v1533, 0.0
  %vm1598 = vcmp.gt.f32.partialorder %v1534, 0.0
  %vm1599 = vcmp.gt.f32.partialorder %v1535, 0.0
  %vm1600 = vcmp.gt.f32.partialorder %v1536, 0.0
  %vm1601 = vcmp.gt.f32.partialorder %v1537, 0.0
  %vm1602 = vcmp.gt.f32.partialorder %v1538, 0.0
  %vm1603 = vcmp.gt.f32.partialorder %v1539, 0.0
  %vm1604 = vcmp.gt.f32.partialorder %v1540, 0.0
  %vm1605 = vcmp.gt.f32.partialorder %v1541, 0.0
  %vm1606 = vcmp.gt.f32.partialorder %v1542, 0.0
  %vm1607 = vcmp.gt.f32.partialorder %v1543, 0.0
  %vm1608 = vcmp.gt.f32.partialorder %v1544, 0.0
  %vm1609 = vcmp.gt.f32.partialorder %v1545, 0.0
  %vm1610 = vcmp.gt.f32.partialorder %v1546, 0.0
  %vm1611 = vcmp.gt.f32.partialorder %v1547, 0.0
  %vm1612 = vcmp.gt.f32.partialorder %v1548, 0.0
  %vm1613 = vcmp.gt.f32.partialorder %v1549, 0.0
  %vm1614 = vcmp.gt.f32.partialorder %v1550, 0.0
  %vm1615 = vcmp.gt.f32.partialorder %v1551, 0.0
  %vm1616 = vcmp.gt.f32.partialorder %v1552, 0.0
  %vm1617 = vcmp.gt.f32.partialorder %v1553, 0.0
  %vm1618 = vcmp.gt.f32.partialorder %v1554, 0.0
  %vm1619 = vcmp.gt.f32.partialorder %v1555, 0.0
  %vm1620 = vcmp.gt.f32.partialorder %v1556, 0.0
  %vm1621 = vcmp.gt.f32.partialorder %v1557, 0.0
  %vm1622 = vcmp.gt.f32.partialorder %v1558, 0.0
  %vm1623 = vcmp.gt.f32.partialorder %v1559, 0.0
  %vm1624 = vcmp.gt.f32.partialorder %v1560, 0.0
  %vm1625 = vcmp.gt.f32.partialorder %v1561, 0.0
  %vm1626 = vcmp.gt.f32.partialorder %v1562, 0.0
  %vm1627 = vcmp.gt.f32.partialorder %v1563, 0.0
  %vm1628 = vcmp.gt.f32.partialorder %v1564, 0.0
  %vm1629 = vcmp.gt.f32.partialorder %v1565, 0.0
  %vm1630 = vcmp.gt.f32.partialorder %v1566, 0.0
  %vm1631 = vcmp.gt.f32.partialorder %v1567, 0.0
  %vm1632 = vcmp.gt.f32.partialorder %v1568, 0.0
  %vm1633 = vcmp.gt.f32.partialorder %v1569, 0.0
  %v1634 = vmul.f32 %v1506, 0.2
  %v1635 = vmul.f32 %v1507, 0.2
  %v1636 = vmul.f32 %v1508, 0.2
  %v1637 = vmul.f32 %v1509, 0.2
  %v1638 = vmul.f32 %v1510, 0.2
  %v1639 = vmul.f32 %v1511, 0.2
  %v1640 = vmul.f32 %v1512, 0.2
  %v1641 = vmul.f32 %v1513, 0.2
  %v1642 = vmul.f32 %v1514, 0.2
  %v1643 = vmul.f32 %v1515, 0.2
  %v1644 = vmul.f32 %v1516, 0.2
  %v1645 = vmul.f32 %v1517, 0.2
  %v1646 = vmul.f32 %v1518, 0.2
  %v1647 = vmul.f32 %v1519, 0.2
  %v1648 = vmul.f32 %v1520, 0.2
  %v1649 = vmul.f32 %v1521, 0.2
  %v1650 = vmul.f32 %v1522, 0.2
  %v1651 = vmul.f32 %v1523, 0.2
  %v1652 = vmul.f32 %v1524, 0.2
  %v1653 = vmul.f32 %v1525, 0.2
  %v1654 = vmul.f32 %v1526, 0.2
  %v1655 = vmul.f32 %v1527, 0.2
  %v1656 = vmul.f32 %v1528, 0.2
  %v1657 = vmul.f32 %v1529, 0.2
  %v1658 = vmul.f32 %v1530, 0.2
  %v1659 = vmul.f32 %v1531, 0.2
  %v1660 = vmul.f32 %v1532, 0.2
  %v1661 = vmul.f32 %v1533, 0.2
  %v1662 = vmul.f32 %v1534, 0.2
  %v1663 = vmul.f32 %v1535, 0.2
  %v1664 = vmul.f32 %v1536, 0.2
  %v1665 = vmul.f32 %v1537, 0.2
  %v1666 = vmul.f32 %v1538, 0.2
  %v1667 = vmul.f32 %v1539, 0.2
  %v1668 = vmul.f32 %v1540, 0.2
  %v1669 = vmul.f32 %v1541, 0.2
  %v1670 = vmul.f32 %v1542, 0.2
  %v1671 = vmul.f32 %v1543, 0.2
  %v1672 = vmul.f32 %v1544, 0.2
  %v1673 = vmul.f32 %v1545, 0.2
  %v1674 = vmul.f32 %v1546, 0.2
  %v1675 = vmul.f32 %v1547, 0.2
  %v1676 = vmul.f32 %v1548, 0.2
  %v1677 = vmul.f32 %v1549, 0.2
  %v1678 = vmul.f32 %v1550, 0.2
  %v1679 = vmul.f32 %v1551, 0.2
  %v1680 = vmul.f32 %v1552, 0.2
  %v1681 = vmul.f32 %v1553, 0.2
  %v1682 = vmul.f32 %v1554, 0.2
  %v1683 = vmul.f32 %v1555, 0.2
  %v1684 = vmul.f32 %v1556, 0.2
  %v1685 = vmul.f32 %v1557, 0.2
  %v1686 = vmul.f32 %v1558, 0.2
  %v1687 = vmul.f32 %v1559, 0.2
  %v1688 = vmul.f32 %v1560, 0.2
  %v1689 = vmul.f32 %v1561, 0.2
  %v1690 = vmul.f32 %v1562, 0.2
  %v1691 = vmul.f32 %v1563, 0.2
  %v1692 = vmul.f32 %v1564, 0.2
  %v1693 = vmul.f32 %v1565, 0.2
  %v1694 = vmul.f32 %v1566, 0.2
  %v1695 = vmul.f32 %v1567, 0.2
  %v1696 = vmul.f32 %v1568, 0.2
  %v1697 = vmul.f32 %v1569, 0.2
  %v1698 = vsel %vm1570, %v1506, %v1634
  %v1699 = vsel %vm1571, %v1507, %v1635
  %v1700 = vsel %vm1572, %v1508, %v1636
  %v1701 = vsel %vm1573, %v1509, %v1637
  %v1702 = vsel %vm1574, %v1510, %v1638
  %v1703 = vsel %vm1575, %v1511, %v1639
  %v1704 = vsel %vm1576, %v1512, %v1640
  %v1705 = vsel %vm1577, %v1513, %v1641
  %v1706 = vsel %vm1578, %v1514, %v1642
  %v1707 = vsel %vm1579, %v1515, %v1643
  %v1708 = vsel %vm1580, %v1516, %v1644
  %v1709 = vsel %vm1581, %v1517, %v1645
  %v1710 = vsel %vm1582, %v1518, %v1646
  %v1711 = vsel %vm1583, %v1519, %v1647
  %v1712 = vsel %vm1584, %v1520, %v1648
  %v1713 = vsel %vm1585, %v1521, %v1649
  %v1714 = vsel %vm1586, %v1522, %v1650
  %v1715 = vsel %vm1587, %v1523, %v1651
  %v1716 = vsel %vm1588, %v1524, %v1652
  %v1717 = vsel %vm1589, %v1525, %v1653
  %v1718 = vsel %vm1590, %v1526, %v1654
  %v1719 = vsel %vm1591, %v1527, %v1655
  %v1720 = vsel %vm1592, %v1528, %v1656
  %v1721 = vsel %vm1593, %v1529, %v1657
  %v1722 = vsel %vm1594, %v1530, %v1658
  %v1723 = vsel %vm1595, %v1531, %v1659
  %v1724 = vsel %vm1596, %v1532, %v1660
  %v1725 = vsel %vm1597, %v1533, %v1661
  %v1726 = vsel %vm1598, %v1534, %v1662
  %v1727 = vsel %vm1599, %v1535, %v1663
  %v1728 = vsel %vm1600, %v1536, %v1664
  %v1729 = vsel %vm1601, %v1537, %v1665
  %v1730 = vsel %vm1602, %v1538, %v1666
  %v1731 = vsel %vm1603, %v1539, %v1667
  %v1732 = vsel %vm1604, %v1540, %v1668
  %v1733 = vsel %vm1605, %v1541, %v1669
  %v1734 = vsel %vm1606, %v1542, %v1670
  %v1735 = vsel %vm1607, %v1543, %v1671
  %v1736 = vsel %vm1608, %v1544, %v1672
  %v1737 = vsel %vm1609, %v1545, %v1673
  %v1738 = vsel %vm1610, %v1546, %v1674
  %v1739 = vsel %vm1611, %v1547, %v1675
  %v1740 = vsel %vm1612, %v1548, %v1676
  %v1741 = vsel %vm1613, %v1549, %v1677
  %v1742 = vsel %vm1614, %v1550, %v1678
  %v1743 = vsel %vm1615, %v1551, %v1679
  %v1744 = vsel %vm1616, %v1552, %v1680
  %v1745 = vsel %vm1617, %v1553, %v1681
  %v1746 = vsel %vm1618, %v1554, %v1682
  %v1747 = vsel %vm1619, %v1555, %v1683
  %v1748 = vsel %vm1620, %v1556, %v1684
  %v1749 = vsel %vm1621, %v1557, %v1685
  %v1750 = vsel %vm1622, %v1558, %v1686
  %v1751 = vsel %vm1623, %v1559, %v1687
  %v1752 = vsel %vm1624, %v1560, %v1688
  %v1753 = vsel %vm1625, %v1561, %v1689
  %v1754 = vsel %vm1626, %v1562, %v1690
  %v1755 = vsel %vm1627, %v1563, %v1691
  %v1756 = vsel %vm1628, %v1564, %v1692
  %v1757 = vsel %vm1629, %v1565, %v1693
  %v1758 = vsel %vm1630, %v1566, %v1694
  %v1759 = vsel %vm1631, %v1567, %v1695
  %v1760 = vsel %vm1632, %v1568, %v1696
  %v1761 = vsel %vm1633, %v1569, %v1697
  %1762 = vst.msk [vmem:[%s4] sm:$0xff] %vm770, %v1698
  %1763 = vst.msk [vmem:[%s4 + $0x8] sm:$0xff] %vm770, %v1699
  %1764 = vst.msk [vmem:[%s4 + $0x10] sm:$0xff] %vm770, %v1700
  %1765 = vst.msk [vmem:[%s4 + $0x18] sm:$0xff] %vm770, %v1701
  %1766 = vst.msk [vmem:[%s4 + $0x20] sm:$0xff] %vm770, %v1702
  %1767 = vst.msk [vmem:[%s4 + $0x28] sm:$0xff] %vm770, %v1703
  %1768 = vst.msk [vmem:[%s4 + $0x30] sm:$0xff] %vm770, %v1704
  %1769 = vst.msk [vmem:[%s4 + $0x38] sm:$0xff] %vm770, %v1705
  %1770 = vst.msk [vmem:[%s4 + $0x40] sm:$0xff] %vm770, %v1706
  %1771 = vst.msk [vmem:[%s4 + $0x48] sm:$0xff] %vm770, %v1707
  %1772 = vst.msk [vmem:[%s4 + $0x50] sm:$0xff] %vm770, %v1708
  %1773 = vst.msk [vmem:[%s4 + $0x58] sm:$0xff] %vm770, %v1709
  %1774 = vst.msk [vmem:[%s4 + $0x60] sm:$0xff] %vm770, %v1710
  %1775 = vst.msk [vmem:[%s4 + $0x68] sm:$0xff] %vm770, %v1711
  %1776 = vst.msk [vmem:[%s4 + $0x70] sm:$0xff] %vm770, %v1712
  %1777 = vst.msk [vmem:[%s4 + $0x78] sm:$0xff] %vm770, %v1713
  %1778 = vst.msk [vmem:[%s4 + $0x80] sm:$0xff] %vm770, %v1714
  %1779 = vst.msk [vmem:[%s4 + $0x88] sm:$0xff] %vm770, %v1715
  %1780 = vst.msk [vmem:[%s4 + $0x90] sm:$0xff] %vm770, %v1716
  %1781 = vst.msk [vmem:[%s4 + $0x98] sm:$0xff] %vm770, %v1717
  %1782 = vst.msk [vmem:[%s4 + $0xa0] sm:$0xff] %vm770, %v1718
  %1783 = vst.msk [vmem:[%s4 + $0xa8] sm:$0xff] %vm770, %v1719
  %1784 = vst.msk [vmem:[%s4 + $0xb0] sm:$0xff] %vm770, %v1720
  %1785 = vst.msk [vmem:[%s4 + $0xb8] sm:$0xff] %vm770, %v1721
  %1786 = vst.msk [vmem:[%s4 + $0xc0] sm:$0xff] %vm770, %v1722
  %1787 = vst.msk [vmem:[%s4 + $0xc8] sm:$0xff] %vm770, %v1723
  %1788 = vst.msk [vmem:[%s4 + $0xd0] sm:$0xff] %vm770, %v1724
  %1789 = vst.msk [vmem:[%s4 + $0xd8] sm:$0xff] %vm770, %v1725
  %1790 = vst.msk [vmem:[%s4 + $0xe0] sm:$0xff] %vm770, %v1726
  %1791 = vst.msk [vmem:[%s4 + $0xe8] sm:$0xff] %vm770, %v1727
  %1792 = vst.msk [vmem:[%s4 + $0xf0] sm:$0xff] %vm770, %v1728
  %1793 = vst.msk [vmem:[%s4 + $0xf8] sm:$0xff] %vm770, %v1729
  %1794 = vst.msk [vmem:[%s4 + $0x100] sm:$0xff] %vm770, %v1730
  %1795 = vst.msk [vmem:[%s4 + $0x108] sm:$0xff] %vm770, %v1731
  %1796 = vst.msk [vmem:[%s4 + $0x110] sm:$0xff] %vm770, %v1732
  %1797 = vst.msk [vmem:[%s4 + $0x118] sm:$0xff] %vm770, %v1733
  %1798 = vst.msk [vmem:[%s4 + $0x120] sm:$0xff] %vm770, %v1734
  %1799 = vst.msk [vmem:[%s4 + $0x128] sm:$0xff] %vm770, %v1735
  %1800 = vst.msk [vmem:[%s4 + $0x130] sm:$0xff] %vm770, %v1736
  %1801 = vst.msk [vmem:[%s4 + $0x138] sm:$0xff] %vm770, %v1737
  %1802 = vst.msk [vmem:[%s4 + $0x140] sm:$0xff] %vm770, %v1738
  %1803 = vst.msk [vmem:[%s4 + $0x148] sm:$0xff] %vm770, %v1739
  %1804 = vst.msk [vmem:[%s4 + $0x150] sm:$0xff] %vm770, %v1740
  %1805 = vst.msk [vmem:[%s4 + $0x158] sm:$0xff] %vm770, %v1741
  %1806 = vst.msk [vmem:[%s4 + $0x160] sm:$0xff] %vm770, %v1742
  %1807 = vst.msk [vmem:[%s4 + $0x168] sm:$0xff] %vm770, %v1743
  %1808 = vst.msk [vmem:[%s4 + $0x170] sm:$0xff] %vm770, %v1744
  %1809 = vst.msk [vmem:[%s4 + $0x178] sm:$0xff] %vm770, %v1745
  %1810 = vst.msk [vmem:[%s4 + $0x180] sm:$0xff] %vm770, %v1746
  %1811 = vst.msk [vmem:[%s4 + $0x188] sm:$0xff] %vm770, %v1747
  %1812 = vst.msk [vmem:[%s4 + $0x190] sm:$0xff] %vm770, %v1748
  %1813 = vst.msk [vmem:[%s4 + $0x198] sm:$0xff] %vm770, %v1749
  %1814 = vst.msk [vmem:[%s4 + $0x1a0] sm:$0xff] %vm770, %v1750
  %1815 = vst.msk [vmem:[%s4 + $0x1a8] sm:$0xff] %vm770, %v1751
  %1816 = vst.msk [vmem:[%s4 + $0x1b0] sm:$0xff] %vm770, %v1752
  %1817 = vst.msk [vmem:[%s4 + $0x1b8] sm:$0xff] %vm770, %v1753
  %1818 = vst.msk [vmem:[%s4 + $0x1c0] sm:$0xff] %vm770, %v1754
  %1819 = vst.msk [vmem:[%s4 + $0x1c8] sm:$0xff] %vm770, %v1755
  %1820 = vst.msk [vmem:[%s4 + $0x1d0] sm:$0xff] %vm770, %v1756
  %1821 = vst.msk [vmem:[%s4 + $0x1d8] sm:$0xff] %vm770, %v1757
  %1822 = vst.msk [vmem:[%s4 + $0x1e0] sm:$0xff] %vm770, %v1758
  %1823 = vst.msk [vmem:[%s4 + $0x1e8] sm:$0xff] %vm770, %v1759
  %1824 = vst.msk [vmem:[%s4 + $0x1f0] sm:$0xff] %vm770, %v1760
  %1825 = vst.msk [vmem:[%s4 + $0x1f8] sm:$0xff] %vm770, %v1761
  // Predicated region
  $region18: #{e4e_initialized_forward.19} parent=0 // pred_check
    _
  $region19: #{e4e_initialized_forward.19} parent=0 // pred_check_branch
    %1827 = sbr.rel (0) target = $region21
  $region20: #{e4e_initialized_forward.19} parent=0 // pred_region
    _
  $region21: #{e4e_initialized_forward.19} parent=0 // pred_fallthru
    _
  // Predicated region
  $region22: #{e4e_initialized_forward.19} parent=0 // pred_check
    _
  $region23: #{e4e_initialized_forward.19} parent=0 // pred_check_branch
    %1829 = sbr.rel (0) target = $region25
  $region24: #{e4e_initialized_forward.19} parent=0 // pred_region
    _
  $region25: #{e4e_initialized_forward.19} parent=0 // pred_fallthru
    _

</llo_original>
